<compile_context>
chip_gen: v5e
topology: v5e:2x2
jax: 0.10.0
libtpu: 0.0.40
codegen_flags: <defaults>
</compile_context>

<pallas_src>
import math

import jax
import jax.numpy as jnp
from jax.experimental import pallas as pl
from jax.experimental.pallas import tpu as pltpu


_INV_SQRT2 = 0.7071067811865476


def _erf_approx(x):
    # Abramowitz & Stegun 7.1.26 rational approximation, |error| <= 1.5e-7.
    ax = jnp.abs(x)
    t = 1.0 / (1.0 + 0.3275911 * ax)
    poly = t * (0.254829592 + t * (-0.284496736 + t * (1.421413741
               + t * (-1.453152027 + t * 1.061405429))))
    y = 1.0 - poly * jnp.exp(-ax * ax)
    return jnp.where(x >= 0, y, -y)


def _gelu_exact(x):
    # Matches torch.nn.GELU() default (erf-based, not tanh approximation).
    return 0.5 * x * (1.0 + _erf_approx(x * _INV_SQRT2))


def _layernorm(x, gamma, beta, eps):
    # Two-pass (centered) LN: 2 XLU reductions per row, same count as the
    # sum/sum-of-squares formulation but numerically safer.
    mu = jnp.mean(x, axis=-1, keepdims=True)
    xc = x - mu
    var = jnp.mean(xc * xc, axis=-1, keepdims=True)
    return xc * jax.lax.rsqrt(var + eps) * gamma + beta


# ----------------------------------------------------------------------------
# Fused adapter kernel (one token tile per grid step).
# ----------------------------------------------------------------------------
def _make_adapter_kernel(ln_option, eps, add_residual, has_res_input):
    def kernel(*refs):
        if has_res_input:
            (x_ref, res_ref, wd_ref, bd_ref, wu_ref, bu_ref,
             g_ref, b_ref, o_ref) = refs
        else:
            (x_ref, wd_ref, bd_ref, wu_ref, bu_ref,
             g_ref, b_ref, o_ref) = refs
            res_ref = None

        x = x_ref[...].astype(jnp.float32)                      # (tm, D)
        h = x
        if ln_option == 'in':
            h = _layernorm(h, g_ref[...], b_ref[...], eps)

        # bf16 operands on the MXU, f32 accumulation (preferred_element_type).
        down = jnp.dot(h.astype(wd_ref.dtype), wd_ref[...],
                       preferred_element_type=jnp.float32) + bd_ref[...]
        down = _gelu_exact(down)
        # TODO(synk): dropout is identity here (p=0.0 / eval mode); training
        # dropout would need pltpu.prng_seed + pltpu.stateful_bernoulli.
        up = jnp.dot(down.astype(wu_ref.dtype), wu_ref[...],
                     preferred_element_type=jnp.float32) + bu_ref[...]
        # static adapter_scale is folded into wu/bu on the host.
        if ln_option == 'out':
            up = _layernorm(up, g_ref[...], b_ref[...], eps)
        if add_residual:
            if has_res_input:
                up = up + res_ref[...].astype(jnp.float32)
            else:
                up = up + x          # residual == x: reuse tile already in VMEM
        o_ref[...] = up.astype(o_ref.dtype)

    return kernel


def _round_up(n, m):
    return ((n + m - 1) // m) * m


def _choose_token_tile(M, block_tokens):
    """Sublane-aligned token tile; keep >= 2 grid steps when possible so the
    v7x megacore can split the single "parallel" axis across both TCs."""
    if M <= 8:
        return M                                   # full-extent block
    tm = min(block_tokens, _round_up(M, 8))
    if pl.cdiv(M, tm) < 2:
        tm = _round_up(-(-M // 2), 8)
    return tm


def adapter_forward(x, params, *, adapter_layernorm_option='out',
                    adapter_scale=1.0, add_residual=False, residual=None,
                    eps=1e-5, block_tokens=512, matmul_dtype=jnp.bfloat16):
    """Adapter.forward.

    params:
      'down_w' (d_model, bottleneck)  == torch down_proj.weight.T
      'down_b' (bottleneck,)
      'up_w'   (bottleneck, d_model)  == torch up_proj.weight.T
      'up_b'   (d_model,)
      'ln_w', 'ln_b' (d_model,)       (LayerNorm affine params, if LN used)
    adapter_scale: static float ('1.0' default), folded into up_proj params.
    # TODO(synk): 'learnable_scalar' would need the scale passed as an SMEM
    # scalar input instead of a static float folded into the weights.
    """
    d_model = x.shape[-1]
    bottleneck = params['down_w'].shape[1]
    scale = float(adapter_scale)
    use_ln = adapter_layernorm_option in ('in', 'out')

    xf = x.reshape(-1, d_model)
    M = xf.shape[0]

    # Only DMA a separate residual tile if it actually differs from x.
    has_res_input = add_residual and (residual is not None) and (residual is not x)
    resf = residual.reshape(-1, d_model) if has_res_input else None

    tm = _choose_token_tile(M, block_tokens)
    grid = (pl.cdiv(M, tm),)          # ragged last block handled by Pallas

    # Matmul operands in bf16 (halves weight DMA, MXU-native); biases and LN
    # params stay f32 (added post-accumulation). Static scale folded in.
    wd = params['down_w'].astype(matmul_dtype)
    up_w = params['up_w'] if scale == 1.0 else params['up_w'] * scale
    up_b = params['up_b'] if scale == 1.0 else params['up_b'] * scale
    wu = up_w.astype(matmul_dtype)
    bd = params['down_b'].reshape(1, bottleneck).astype(jnp.float32)
    bu = up_b.reshape(1, d_model).astype(jnp.float32)
    if use_ln:
        gamma = params['ln_w'].reshape(1, d_model).astype(jnp.float32)
        beta = params['ln_b'].reshape(1, d_model).astype(jnp.float32)
    else:
        gamma = jnp.ones((1, d_model), jnp.float32)
        beta = jnp.zeros((1, d_model), jnp.float32)

    tok_spec = pl.BlockSpec((tm, d_model), lambda i: (i, 0))
    const = lambda shape: pl.BlockSpec(shape, lambda i: (0, 0))  # VMEM-resident

    in_specs = [tok_spec]
    inputs = [xf]
    if has_res_input:
        in_specs.append(tok_spec)
        inputs.append(resf)
    in_specs += [const((d_model, bottleneck)), const((1, bottleneck)),
                 const((bottleneck, d_model)), const((1, d_model)),
                 const((1, d_model)), const((1, d_model))]
    inputs += [wd, bd, wu, bu, gamma, beta]

    kernel = _make_adapter_kernel(adapter_layernorm_option, eps,
                                  add_residual, has_res_input)

    out = pl.pallas_call(
        kernel,
        out_shape=jax.ShapeDtypeStruct((M, d_model), x.dtype),
        grid=grid,
        in_specs=in_specs,
        out_specs=tok_spec,
        compiler_params=pltpu.CompilerParams(
            dimension_semantics=("parallel",)),
    )(*inputs)

    return out.reshape(x.shape)


# ----------------------------------------------------------------------------
# Pure-JAX reference (mirrors the PyTorch forward) for sanity checks.
# ----------------------------------------------------------------------------
def _reference_adapter(x, params, *, adapter_layernorm_option='out',
                       adapter_scale=1.0, add_residual=False, residual=None,
                       eps=1e-5):
    residual = x if residual is None else residual
    h = x
    if adapter_layernorm_option == 'in':
        h = _layernorm(h, params['ln_w'], params['ln_b'], eps)
    down = jnp.dot(h, params['down_w'],
                   precision=jax.lax.Precision.HIGHEST) + params['down_b']
    down = 0.5 * down * (1.0 + jax.scipy.special.erf(down * _INV_SQRT2))
    up = jnp.dot(down, params['up_w'],
                 precision=jax.lax.Precision.HIGHEST) + params['up_b']
    up = up * adapter_scale
    if adapter_layernorm_option == 'out':
        up = _layernorm(up, params['ln_w'], params['ln_b'], eps)
    return up + residual if add_residual else up


if __name__ == "__main__":
    key = jax.random.PRNGKey(0)
    d_model, bottleneck = 768, 128        # module defaults
    batch, n_tok = 2, 197                 # ViT tokens (14*14 + cls); ragged tail

    ks = jax.random.split(key, 7)
    x = jax.random.normal(ks[0], (batch, n_tok, d_model), jnp.float32)
    # Random (non-zero) parameters: the lora init zeroes up_proj, which would
    # make the output trivially LayerNorm(0); random weights give a real check.
    params = {
        'down_w': jax.random.normal(ks[1], (d_model, bottleneck), jnp.float32)
                  * (1.0 / math.sqrt(d_model)),
        'down_b': jax.random.normal(ks[2], (bottleneck,), jnp.float32) * 0.02,
        'up_w': jax.random.normal(ks[3], (bottleneck, d_model), jnp.float32)
                * (1.0 / math.sqrt(bottleneck)),
        'up_b': jax.random.normal(ks[4], (d_model,), jnp.float32) * 0.02,
        'ln_w': 1.0 + 0.1 * jax.random.normal(ks[5], (d_model,), jnp.float32),
        'ln_b': 0.1 * jax.random.normal(ks[6], (d_model,), jnp.float32),
    }

    # Default module config: adapter_layernorm_option='out', scale=1.0,
    # add_residual=False (the default forward call).
    out = jax.block_until_ready(adapter_forward(x, params))
    ref = _reference_adapter(x, params)
    assert out.shape == x.shape
    # bf16 MXU operands vs HIGHEST-precision f32 reference -> tolerance ~2e-2.
    assert jnp.allclose(out, ref, atol=2e-2, rtol=2e-2), (
        "out-LN path mismatch, max abs diff = "
        f"{float(jnp.max(jnp.abs(out - ref)))}")

    # Alternate path: LayerNorm 'in', scaled, residual added (residual == x,
    # so no second residual DMA inside the kernel).
    out2 = jax.block_until_ready(
        adapter_forward(x, params, adapter_layernorm_option='in',
                        adapter_scale=0.5, add_residual=True))
    ref2 = _reference_adapter(x, params, adapter_layernorm_option='in',
                              adapter_scale=0.5, add_residual=True)
    assert jnp.allclose(out2, ref2, atol=2e-2, rtol=2e-2), (
        "in-LN + residual path mismatch, max abs diff = "
        f"{float(jnp.max(jnp.abs(out2 - ref2)))}")

    print("KERNEL_OK")
</pallas_src>

<mosaic_0001>
module attributes {stable_mosaic.version = 11 : i64} {
  func.func @kernel(%arg0: i32, %arg1: memref<200x768xf32, #tpu.memory_space<vmem>>, %arg2: memref<768x128xbf16, #tpu.memory_space<vmem>>, %arg3: memref<1x128xf32, #tpu.memory_space<vmem>>, %arg4: memref<128x768xbf16, #tpu.memory_space<vmem>>, %arg5: memref<1x768xf32, #tpu.memory_space<vmem>>, %arg6: memref<1x768xf32, #tpu.memory_space<vmem>>, %arg7: memref<1x768xf32, #tpu.memory_space<vmem>>, %arg8: memref<200x768xf32, #tpu.memory_space<vmem>>) attributes {dimension_semantics = [#tpu.dimension_semantics<parallel>], iteration_bounds = array<i64: 2>, scalar_prefetch = 0 : i64, scratch_operands = 0 : i64, tpu.core_type = #tpu.core_type<tc>, window_params = [{transform_indices = @transform_0, window_bounds = array<i64: 200, 768>}, {pipeline_mode = #tpu.pipeline_mode<synchronous>, transform_indices = @transform_1, window_bounds = array<i64: 768, 128>}, {pipeline_mode = #tpu.pipeline_mode<synchronous>, transform_indices = @transform_2, window_bounds = array<i64: 1, 128>}, {pipeline_mode = #tpu.pipeline_mode<synchronous>, transform_indices = @transform_3, window_bounds = array<i64: 128, 768>}, {pipeline_mode = #tpu.pipeline_mode<synchronous>, transform_indices = @transform_4, window_bounds = array<i64: 1, 768>}, {pipeline_mode = #tpu.pipeline_mode<synchronous>, transform_indices = @transform_5, window_bounds = array<i64: 1, 768>}, {pipeline_mode = #tpu.pipeline_mode<synchronous>, transform_indices = @transform_6, window_bounds = array<i64: 1, 768>}, {transform_indices = @transform_7, window_bounds = array<i64: 200, 768>}]} {
    %c0 = arith.constant 0 : index
    %c0_0 = arith.constant 0 : index
    %0 = vector.load %arg1[%c0, %c0_0] : memref<200x768xf32, #tpu.memory_space<vmem>>, vector<200x768xf32>
    %1 = arith.truncf %0 : vector<200x768xf32> to vector<200x768xbf16>
    %c0_1 = arith.constant 0 : index
    %c0_2 = arith.constant 0 : index
    %2 = vector.load %arg2[%c0_1, %c0_2] : memref<768x128xbf16, #tpu.memory_space<vmem>>, vector<768x128xbf16>
    %cst = arith.constant dense<0.000000e+00> : vector<200x128xf32>
    %3 = tpu.matmul %1, %2, %cst {dimension_numbers = #tpu.dot_dimension_numbers<[1], [0], [0], [1], [0, 0, 1, 1], [], []>} : vector<200x768xbf16>, vector<768x128xbf16>, vector<200x128xf32> -> vector<200x128xf32>
    %c0_3 = arith.constant 0 : index
    %c0_4 = arith.constant 0 : index
    %4 = vector.load %arg3[%c0_3, %c0_4] : memref<1x128xf32, #tpu.memory_space<vmem>>, vector<1x128xf32>
    %5 = vector.broadcast %4 : vector<1x128xf32> to vector<200x128xf32>
    %6 = arith.addf %3, %5 : vector<200x128xf32>
    %cst_5 = arith.constant 5.000000e-01 : f32
    %7 = vector.broadcast %cst_5 : f32 to vector<200x128xf32>
    %8 = arith.mulf %7, %6 : vector<200x128xf32>
    %cst_6 = arith.constant 0.707106769 : f32
    %9 = vector.broadcast %cst_6 : f32 to vector<200x128xf32>
    %10 = arith.mulf %6, %9 : vector<200x128xf32>
    %11 = math.absf %10 : vector<200x128xf32>
    %cst_7 = arith.constant 0.327591091 : f32
    %12 = vector.broadcast %cst_7 : f32 to vector<200x128xf32>
    %13 = arith.mulf %12, %11 : vector<200x128xf32>
    %cst_8 = arith.constant 1.000000e+00 : f32
    %14 = vector.broadcast %cst_8 : f32 to vector<200x128xf32>
    %15 = arith.addf %14, %13 : vector<200x128xf32>
    %cst_9 = arith.constant 1.000000e+00 : f32
    %16 = vector.broadcast %cst_9 : f32 to vector<200x128xf32>
    %17 = arith.divf %16, %15 : vector<200x128xf32>
    %cst_10 = arith.constant 1.06140542 : f32
    %18 = vector.broadcast %cst_10 : f32 to vector<200x128xf32>
    %19 = arith.mulf %17, %18 : vector<200x128xf32>
    %cst_11 = arith.constant -1.45315206 : f32
    %20 = vector.broadcast %cst_11 : f32 to vector<200x128xf32>
    %21 = arith.addf %20, %19 : vector<200x128xf32>
    %22 = arith.mulf %17, %21 : vector<200x128xf32>
    %cst_12 = arith.constant 1.42141378 : f32
    %23 = vector.broadcast %cst_12 : f32 to vector<200x128xf32>
    %24 = arith.addf %23, %22 : vector<200x128xf32>
    %25 = arith.mulf %17, %24 : vector<200x128xf32>
    %cst_13 = arith.constant -0.284496725 : f32
    %26 = vector.broadcast %cst_13 : f32 to vector<200x128xf32>
    %27 = arith.addf %26, %25 : vector<200x128xf32>
    %28 = arith.mulf %17, %27 : vector<200x128xf32>
    %cst_14 = arith.constant 0.254829586 : f32
    %29 = vector.broadcast %cst_14 : f32 to vector<200x128xf32>
    %30 = arith.addf %29, %28 : vector<200x128xf32>
    %31 = arith.mulf %17, %30 : vector<200x128xf32>
    %cst_15 = arith.constant 0.000000e+00 : f32
    %32 = vector.broadcast %cst_15 : f32 to vector<200x128xf32>
    %33 = arith.subf %32, %11 : vector<200x128xf32>
    %34 = arith.mulf %33, %11 : vector<200x128xf32>
    %35 = math.exp %34 : vector<200x128xf32>
    %36 = arith.mulf %31, %35 : vector<200x128xf32>
    %cst_16 = arith.constant 1.000000e+00 : f32
    %37 = vector.broadcast %cst_16 : f32 to vector<200x128xf32>
    %38 = arith.subf %37, %36 : vector<200x128xf32>
    %cst_17 = arith.constant 0.000000e+00 : f32
    %39 = vector.broadcast %cst_17 : f32 to vector<200x128xf32>
    %40 = arith.cmpf oge, %10, %39 : vector<200x128xf32>
    %cst_18 = arith.constant 0.000000e+00 : f32
    %41 = vector.broadcast %cst_18 : f32 to vector<200x128xf32>
    %42 = arith.subf %41, %38 : vector<200x128xf32>
    %43 = arith.select %40, %38, %42 : vector<200x128xi1>, vector<200x128xf32>
    %cst_19 = arith.constant 1.000000e+00 : f32
    %44 = vector.broadcast %cst_19 : f32 to vector<200x128xf32>
    %45 = arith.addf %44, %43 : vector<200x128xf32>
    %46 = arith.mulf %8, %45 : vector<200x128xf32>
    %47 = arith.truncf %46 : vector<200x128xf32> to vector<200x128xbf16>
    %c0_20 = arith.constant 0 : index
    %c0_21 = arith.constant 0 : index
    %48 = vector.load %arg4[%c0_20, %c0_21] : memref<128x768xbf16, #tpu.memory_space<vmem>>, vector<128x768xbf16>
    %cst_22 = arith.constant dense<0.000000e+00> : vector<200x768xf32>
    %49 = tpu.matmul %47, %48, %cst_22 {dimension_numbers = #tpu.dot_dimension_numbers<[1], [0], [0], [1], [0, 0, 1, 1], [], []>} : vector<200x128xbf16>, vector<128x768xbf16>, vector<200x768xf32> -> vector<200x768xf32>
    %c0_23 = arith.constant 0 : index
    %c0_24 = arith.constant 0 : index
    %50 = vector.load %arg5[%c0_23, %c0_24] : memref<1x768xf32, #tpu.memory_space<vmem>>, vector<1x768xf32>
    %51 = vector.broadcast %50 : vector<1x768xf32> to vector<200x768xf32>
    %52 = arith.addf %49, %51 : vector<200x768xf32>
    %c0_25 = arith.constant 0 : index
    %c0_26 = arith.constant 0 : index
    %53 = vector.load %arg6[%c0_25, %c0_26] : memref<1x768xf32, #tpu.memory_space<vmem>>, vector<1x768xf32>
    %c0_27 = arith.constant 0 : index
    %c0_28 = arith.constant 0 : index
    %54 = vector.load %arg7[%c0_27, %c0_28] : memref<1x768xf32, #tpu.memory_space<vmem>>, vector<1x768xf32>
    %cst_29 = arith.constant dense<0.000000e+00> : vector<200xf32>
    %55 = vector.multi_reduction <add>, %52, %cst_29 [1] : vector<200x768xf32> to vector<200xf32>
    %56 = vector.shape_cast %55 : vector<200xf32> to vector<200x1xf32>
    %cst_30 = arith.constant 7.680000e+02 : f32
    %57 = vector.broadcast %cst_30 : f32 to vector<200x1xf32>
    %58 = arith.divf %56, %57 : vector<200x1xf32>
    %59 = vector.broadcast %58 : vector<200x1xf32> to vector<200x768xf32>
    %60 = arith.subf %52, %59 : vector<200x768xf32>
    %61 = arith.mulf %60, %60 : vector<200x768xf32>
    %cst_31 = arith.constant dense<0.000000e+00> : vector<200xf32>
    %62 = vector.multi_reduction <add>, %61, %cst_31 [1] : vector<200x768xf32> to vector<200xf32>
    %63 = vector.shape_cast %62 : vector<200xf32> to vector<200x1xf32>
    %cst_32 = arith.constant 7.680000e+02 : f32
    %64 = vector.broadcast %cst_32 : f32 to vector<200x1xf32>
    %65 = arith.divf %63, %64 : vector<200x1xf32>
    %cst_33 = arith.constant 9.99999974E-6 : f32
    %66 = vector.broadcast %cst_33 : f32 to vector<200x1xf32>
    %67 = arith.addf %65, %66 : vector<200x1xf32>
    %68 = math.rsqrt %67 : vector<200x1xf32>
    %69 = vector.broadcast %68 : vector<200x1xf32> to vector<200x768xf32>
    %70 = arith.mulf %60, %69 : vector<200x768xf32>
    %71 = vector.broadcast %53 : vector<1x768xf32> to vector<200x768xf32>
    %72 = arith.mulf %70, %71 : vector<200x768xf32>
    %73 = vector.broadcast %54 : vector<1x768xf32> to vector<200x768xf32>
    %74 = arith.addf %72, %73 : vector<200x768xf32>
    %c0_34 = arith.constant 0 : index
    %c0_35 = arith.constant 0 : index
    %75 = vector.load %arg8[%c0_34, %c0_35] : memref<200x768xf32, #tpu.memory_space<vmem>>, vector<200x768xf32>
    tpu.vector_store %arg8[%c0_34, %c0_35], %74 {strides = array<i32>} : memref<200x768xf32, #tpu.memory_space<vmem>>, vector<200x768xf32>,
    return
  }
  func.func @transform_0(%arg0: i32) -> (i32, i32) {
    %c0_i32 = arith.constant 0 : i32
    %c0_i32_0 = arith.constant 0 : i32
    return %arg0, %c0_i32 : i32, i32
  }
  func.func @transform_1(%arg0: i32) -> (i32, i32) {
    %c0_i32 = arith.constant 0 : i32
    %c0_i32_0 = arith.constant 0 : i32
    %c0_i32_1 = arith.constant 0 : i32
    return %c0_i32, %c0_i32_0 : i32, i32
  }
  func.func @transform_2(%arg0: i32) -> (i32, i32) {
    %c0_i32 = arith.constant 0 : i32
    %c0_i32_0 = arith.constant 0 : i32
    %c0_i32_1 = arith.constant 0 : i32
    return %c0_i32, %c0_i32_0 : i32, i32
  }
  func.func @transform_3(%arg0: i32) -> (i32, i32) {
    %c0_i32 = arith.constant 0 : i32
    %c0_i32_0 = arith.constant 0 : i32
    %c0_i32_1 = arith.constant 0 : i32
    return %c0_i32, %c0_i32_0 : i32, i32
  }
  func.func @transform_4(%arg0: i32) -> (i32, i32) {
    %c0_i32 = arith.constant 0 : i32
    %c0_i32_0 = arith.constant 0 : i32
    %c0_i32_1 = arith.constant 0 : i32
    return %c0_i32, %c0_i32_0 : i32, i32
  }
  func.func @transform_5(%arg0: i32) -> (i32, i32) {
    %c0_i32 = arith.constant 0 : i32
    %c0_i32_0 = arith.constant 0 : i32
    %c0_i32_1 = arith.constant 0 : i32
    return %c0_i32, %c0_i32_0 : i32, i32
  }
  func.func @transform_6(%arg0: i32) -> (i32, i32) {
    %c0_i32 = arith.constant 0 : i32
    %c0_i32_0 = arith.constant 0 : i32
    %c0_i32_1 = arith.constant 0 : i32
    return %c0_i32, %c0_i32_0 : i32, i32
  }
  func.func @transform_7(%arg0: i32) -> (i32, i32) {
    %c0_i32 = arith.constant 0 : i32
    %c0_i32_0 = arith.constant 0 : i32
    return %arg0, %c0_i32 : i32, i32
  }
}

</mosaic_0001>

<llo_original>
// kernel: tpu_custom_call.1
$region0: #{tpu_custom_call.1}
  #allocation0 [shape = 'u32[]', space=smem, size = 0x4, offset = 0x4, fixed_abs, tag = 'smem constant byte address 0x4 - core index']
  #allocation1 [shape = 'u32[72,128]{1,0:T(1,128)}', space=vmem, size = 0x9000, scoped, tag = 'internal scratch']
  %s0 = inlined_call_operand.hbm [shape: f32[394,768], index: 0, kind: input, shape index: {}]
  %s1 = inlined_call_operand.hbm [shape: bf16[768,128], index: 1, kind: input, shape index: {}]
  %s2 = inlined_call_operand.hbm [shape: f32[1,128], index: 2, kind: input, shape index: {}]
  %s3 = inlined_call_operand.hbm [shape: bf16[128,768], index: 3, kind: input, shape index: {}]
  %s4 = inlined_call_operand.hbm [shape: f32[1,768], index: 4, kind: input, shape index: {}]
  %s5 = inlined_call_operand.hbm [shape: f32[1,768], index: 5, kind: input, shape index: {}]
  %s6 = inlined_call_operand.hbm [shape: f32[1,768], index: 6, kind: input, shape index: {}]
  %s7 = inlined_call_operand.hbm [shape: f32[394,768], index: 7, kind: output, shape index: {}]
  %s8 = sld [smem:[#allocation0]]
  $region89: #{tpu_custom_call.1} parent=0
    _
  %s10 = ssub.s32 1, %s8
  %s11 = scalar_select 0, %s10, %s8
  $region1: #{tpu_custom_call.1} parent=0
    #allocation2 [shape = 'u8[1228800]{0}', space=vmem, size = 0x12c000, scoped, tag = 'input window, operand 0']
    #allocation3 [shape = 's32[2]{0}', space=sflag, size = 0x8, scoped, tag = 'scoped memory for tpu_custom_call.1']
    #allocation4 [shape = 's32[2]{0}', space=sflag, size = 0x8, scoped, tag = 'scoped memory for tpu_custom_call.1']
    #allocation5 [shape = 'u8[196608]{0}', space=vmem, size = 0x30000, scoped, tag = 'input window, operand 1, single buffered']
    #allocation6 [shape = 's32[1]{0}', space=sflag, size = 0x4, scoped, tag = 'scoped memory for tpu_custom_call.1']
    #allocation7 [shape = 'u8[512]{0}', space=vmem, size = 0x400, scoped, tag = 'input window, operand 2, single buffered']
    #allocation8 [shape = 'u8[196608]{0}', space=vmem, size = 0x30000, scoped, tag = 'input window, operand 3, single buffered']
    #allocation9 [shape = 's32[1]{0}', space=sflag, size = 0x4, scoped, tag = 'scoped memory for tpu_custom_call.1']
    #allocation10 [shape = 'u8[3072]{0}', space=vmem, size = 0xc00, scoped, tag = 'input window, operand 4, single buffered']
    #allocation11 [shape = 'u8[3072]{0}', space=vmem, size = 0xc00, scoped, tag = 'input window, operand 5, single buffered']
    #allocation12 [shape = 's32[1]{0}', space=sflag, size = 0x4, scoped, tag = 'scoped memory for tpu_custom_call.1']
    #allocation13 [shape = 'u8[3072]{0}', space=vmem, size = 0xc00, scoped, tag = 'input window, operand 6, single buffered']
    #allocation14 [shape = 'u8[1228800]{0}', space=vmem, size = 0x12c000, scoped, tag = 'output window, operand 0']
    %12 = vsyncpa [#allocation3], 0
    %s13 = scalar_lea.sflag [#allocation3], 1
    %14 = vsyncpa %s13, 0
    %15 = vsyncpa [#allocation6], 0
    %16 = vsyncpa [#allocation9], 0
    %17 = vsyncpa [#allocation12], 0
    %18 = vsyncpa [#allocation4], 0
    %s19 = scalar_lea.sflag [#allocation4], 1
    %20 = vsyncpa %s19, 0
    loop: start=0, step=1, limit=4
    $region2: #{tpu_custom_call.1} parent=1 // loop_pre_header
      _
    $region3: #{tpu_custom_call.1} parent=1 // loop_header
      %s22 = sphi 0, %s26
      %p23 = scmp.ge.s32.totalorder %s22, 4
      %s32 = sphi 0, %s34
      %s35 = sphi 0, %s32
      %s36 = sphi 0, %s35
      %s52 = sphi 0, %s36
      %s56 = sphi 0, %s56
      %s58 = sphi 0, %s56
      %s59 = sphi 0, %s58
      %s73 = sphi 0, %s59
      %s77 = sphi 0, %s77
      %s79 = sphi 0, %s77
      %s80 = sphi 0, %s79
      %s94 = sphi 0, %s80
      %s98 = sphi 0, %s98
      %s100 = sphi 0, %s98
      %s101 = sphi 0, %s100
      %s115 = sphi 0, %s101
      %s119 = sphi 0, %s119
      %s121 = sphi 0, %s119
      %s122 = sphi 0, %s121
      %s136 = sphi 0, %s122
      %s140 = sphi 0, %s140
      %s142 = sphi 0, %s140
      %s143 = sphi 0, %s142
      %s157 = sphi 0, %s143
      %s161 = sphi 0, %s161
      %s163 = sphi 0, %s161
      %s164 = sphi 0, %s163
      %s178 = sphi 0, %s164
      %s184 = sphi 0, %s186
      %s187 = sphi 0, %s184
      %s188 = sphi 0, %s187
      %s204 = sphi 0, %s188
    $region4: #{tpu_custom_call.1} parent=1 // loop_header_branch
      %25 = sbr.rel (%p23) target = $region8
    $region5: #{tpu_custom_call.1} parent=1 // loop_body
      %s27 = ssub.s32 %s22, 1
      %s28 = ssub.s32 %s22, 2
      %s29 = sadd.s32 %s22, 1
      %s30 = ssub.s32 %s22, %s29
      %p31 = scmp.eq.s32.totalorder %s30, 0
      %s33 = sadd.s32 %s32, 1
      %s34 = scalar_select %p31, %s32, %s33
      %p37 = pneg %p31
      %p38 = scmp.eq.s32.totalorder %s22, 1
      %p39 = por %p37, %p38
      %p40 = scmp.ne.s32.totalorder %s32, %s35
      %p41 = scmp.eq.s32.totalorder %s22, 0
      %p42 = por %p40, %p41
      %p43 = scmp.ne.s32.totalorder %s32, %s35
      %p44 = scmp.eq.s32.totalorder %s27, 1
      %p45 = por %p43, %p44
      %p46 = scmp.ne.s32.totalorder %s35, %s36
      %p47 = scmp.eq.s32.totalorder %s27, 0
      %p48 = por %p46, %p47
      %p49 = scmp.ne.s32.totalorder %s35, %s36
      %p50 = scmp.eq.s32.totalorder %s28, 1
      %p51 = por %p49, %p50
      %p53 = scmp.ne.s32.totalorder %s36, %s52
      %p54 = scmp.eq.s32.totalorder %s28, 0
      %p55 = por %p53, %p54
      %s57 = sadd.s32 %s56, 1
      %p60 = scmp.eq.s32.totalorder %s22, 1
      %p61 = scmp.ne.s32.totalorder %s56, %s58
      %p62 = scmp.eq.s32.totalorder %s22, 0
      %p63 = por %p61, %p62
      %p64 = scmp.ne.s32.totalorder %s56, %s58
      %p65 = scmp.eq.s32.totalorder %s27, 1
      %p66 = por %p64, %p65
      %p67 = scmp.ne.s32.totalorder %s58, %s59
      %p68 = scmp.eq.s32.totalorder %s27, 0
      %p69 = por %p67, %p68
      %p70 = scmp.ne.s32.totalorder %s58, %s59
      %p71 = scmp.eq.s32.totalorder %s28, 1
      %p72 = por %p70, %p71
      %p74 = scmp.ne.s32.totalorder %s59, %s73
      %p75 = scmp.eq.s32.totalorder %s28, 0
      %p76 = por %p74, %p75
      %s78 = sadd.s32 %s77, 1
      %p81 = scmp.eq.s32.totalorder %s22, 1
      %p82 = scmp.ne.s32.totalorder %s77, %s79
      %p83 = scmp.eq.s32.totalorder %s22, 0
      %p84 = por %p82, %p83
      %p85 = scmp.ne.s32.totalorder %s77, %s79
      %p86 = scmp.eq.s32.totalorder %s27, 1
      %p87 = por %p85, %p86
      %p88 = scmp.ne.s32.totalorder %s79, %s80
      %p89 = scmp.eq.s32.totalorder %s27, 0
      %p90 = por %p88, %p89
      %p91 = scmp.ne.s32.totalorder %s79, %s80
      %p92 = scmp.eq.s32.totalorder %s28, 1
      %p93 = por %p91, %p92
      %p95 = scmp.ne.s32.totalorder %s80, %s94
      %p96 = scmp.eq.s32.totalorder %s28, 0
      %p97 = por %p95, %p96
      %s99 = sadd.s32 %s98, 1
      %p102 = scmp.eq.s32.totalorder %s22, 1
      %p103 = scmp.ne.s32.totalorder %s98, %s100
      %p104 = scmp.eq.s32.totalorder %s22, 0
      %p105 = por %p103, %p104
      %p106 = scmp.ne.s32.totalorder %s98, %s100
      %p107 = scmp.eq.s32.totalorder %s27, 1
      %p108 = por %p106, %p107
      %p109 = scmp.ne.s32.totalorder %s100, %s101
      %p110 = scmp.eq.s32.totalorder %s27, 0
      %p111 = por %p109, %p110
      %p112 = scmp.ne.s32.totalorder %s100, %s101
      %p113 = scmp.eq.s32.totalorder %s28, 1
      %p114 = por %p112, %p113
      %p116 = scmp.ne.s32.totalorder %s101, %s115
      %p117 = scmp.eq.s32.totalorder %s28, 0
      %p118 = por %p116, %p117
      %s120 = sadd.s32 %s119, 1
      %p123 = scmp.eq.s32.totalorder %s22, 1
      %p124 = scmp.ne.s32.totalorder %s119, %s121
      %p125 = scmp.eq.s32.totalorder %s22, 0
      %p126 = por %p124, %p125
      %p127 = scmp.ne.s32.totalorder %s119, %s121
      %p128 = scmp.eq.s32.totalorder %s27, 1
      %p129 = por %p127, %p128
      %p130 = scmp.ne.s32.totalorder %s121, %s122
      %p131 = scmp.eq.s32.totalorder %s27, 0
      %p132 = por %p130, %p131
      %p133 = scmp.ne.s32.totalorder %s121, %s122
      %p134 = scmp.eq.s32.totalorder %s28, 1
      %p135 = por %p133, %p134
      %p137 = scmp.ne.s32.totalorder %s122, %s136
      %p138 = scmp.eq.s32.totalorder %s28, 0
      %p139 = por %p137, %p138
      %s141 = sadd.s32 %s140, 1
      %p144 = scmp.eq.s32.totalorder %s22, 1
      %p145 = scmp.ne.s32.totalorder %s140, %s142
      %p146 = scmp.eq.s32.totalorder %s22, 0
      %p147 = por %p145, %p146
      %p148 = scmp.ne.s32.totalorder %s140, %s142
      %p149 = scmp.eq.s32.totalorder %s27, 1
      %p150 = por %p148, %p149
      %p151 = scmp.ne.s32.totalorder %s142, %s143
      %p152 = scmp.eq.s32.totalorder %s27, 0
      %p153 = por %p151, %p152
      %p154 = scmp.ne.s32.totalorder %s142, %s143
      %p155 = scmp.eq.s32.totalorder %s28, 1
      %p156 = por %p154, %p155
      %p158 = scmp.ne.s32.totalorder %s143, %s157
      %p159 = scmp.eq.s32.totalorder %s28, 0
      %p160 = por %p158, %p159
      %s162 = sadd.s32 %s161, 1
      %p165 = scmp.eq.s32.totalorder %s22, 1
      %p166 = scmp.ne.s32.totalorder %s161, %s163
      %p167 = scmp.eq.s32.totalorder %s22, 0
      %p168 = por %p166, %p167
      %p169 = scmp.ne.s32.totalorder %s161, %s163
      %p170 = scmp.eq.s32.totalorder %s27, 1
      %p171 = por %p169, %p170
      %p172 = scmp.ne.s32.totalorder %s163, %s164
      %p173 = scmp.eq.s32.totalorder %s27, 0
      %p174 = por %p172, %p173
      %p175 = scmp.ne.s32.totalorder %s163, %s164
      %p176 = scmp.eq.s32.totalorder %s28, 1
      %p177 = por %p175, %p176
      %p179 = scmp.ne.s32.totalorder %s164, %s178
      %p180 = scmp.eq.s32.totalorder %s28, 0
      %p181 = por %p179, %p180
      %s182 = ssub.s32 %s22, %s29
      %p183 = scmp.eq.s32.totalorder %s182, 0
      %s185 = sadd.s32 %s184, 1
      %s186 = scalar_select %p183, %s184, %s185
      %p189 = pneg %p183
      %p190 = scmp.eq.s32.totalorder %s22, 1
      %p191 = por %p189, %p190
      %p192 = scmp.ne.s32.totalorder %s184, %s187
      %p193 = scmp.eq.s32.totalorder %s22, 0
      %p194 = por %p192, %p193
      %p195 = scmp.ne.s32.totalorder %s184, %s187
      %p196 = scmp.eq.s32.totalorder %s27, 1
      %p197 = por %p195, %p196
      %p198 = scmp.ne.s32.totalorder %s187, %s188
      %p199 = scmp.eq.s32.totalorder %s27, 0
      %p200 = por %p198, %p199
      %p201 = scmp.ne.s32.totalorder %s187, %s188
      %p202 = scmp.eq.s32.totalorder %s28, 1
      %p203 = por %p201, %p202
      %p205 = scmp.ne.s32.totalorder %s188, %s204
      %p206 = scmp.eq.s32.totalorder %s28, 0
      %p207 = por %p205, %p206
      %p208 = scmp.le.s32.totalorder 1, %s22
      %p209 = scmp.lt.s32.totalorder %s22, 3
      %p210 = pnand %p208, %p209
      %p211 = pneg %p210
      // Predicated region
      $region9: #{tpu_custom_call.1} parent=5 // pred_check
        _
      $region10: #{tpu_custom_call.1} parent=5 // pred_check_branch
        %213 = sbr.rel (%p210) target = $region12
      $region11: #{tpu_custom_call.1} parent=5 // pred_region
        %s214 = ssub.s32 %s22, 1
        // Predicated region
        $region13: #{tpu_custom_call.1} parent=11 // pred_check
          %p215 = pneg %p69
        $region14: #{tpu_custom_call.1} parent=11 // pred_check_branch
          %217 = sbr.rel (%p215) target = $region16
        $region15: #{tpu_custom_call.1} parent=11 // pred_region
          %219 = vsyncadd [#allocation6], 0
          %s220 = sshll.u32 %s1, 4
          %s221 = int_to_ptr.hbm [resolvable:$true] %s220
          %s222 = sshll.u32 [#allocation5], 4
          %s223 = int_to_ptr.vmem [resolvable:$true] %s222
          %228 = dma.hbm_to_vmem [thread:$0]  %s221, 6144, %s223, [#allocation6], 64, 64, 4
        $region16: #{tpu_custom_call.1} parent=11 // pred_fallthru
          _
        // Predicated region
        $region17: #{tpu_custom_call.1} parent=11 // pred_check
          %p229 = pneg %p90
        $region18: #{tpu_custom_call.1} parent=11 // pred_check_branch
          %231 = sbr.rel (%p229) target = $region20
        $region19: #{tpu_custom_call.1} parent=11 // pred_region
          %233 = vsyncadd [#allocation6], 0
          %s235 = sshll.u32 %s2, 4
          %s236 = int_to_ptr.hbm [resolvable:$true] %s235
          %s237 = sshll.u32 [#allocation7], 4
          %s238 = int_to_ptr.vmem [resolvable:$true] %s237
          %240 = dma.hbm_to_vmem [thread:$0]  %s236, 16, %s238, [#allocation6]
        $region20: #{tpu_custom_call.1} parent=11 // pred_fallthru
          _
        // Predicated region
        $region21: #{tpu_custom_call.1} parent=11 // pred_check
          %p241 = pneg %p111
        $region22: #{tpu_custom_call.1} parent=11 // pred_check_branch
          %243 = sbr.rel (%p241) target = $region24
        $region23: #{tpu_custom_call.1} parent=11 // pred_region
          %245 = vsyncadd [#allocation9], 0
          %s246 = sshll.u32 %s3, 4
          %s247 = int_to_ptr.hbm [resolvable:$true] %s246
          %s248 = sshll.u32 [#allocation8], 4
          %s249 = int_to_ptr.vmem [resolvable:$true] %s248
          %254 = dma.hbm_to_vmem [thread:$0]  %s247, 6144, %s249, [#allocation9], 384, 384, 24
        $region24: #{tpu_custom_call.1} parent=11 // pred_fallthru
          _
        // Predicated region
        $region25: #{tpu_custom_call.1} parent=11 // pred_check
          %p255 = pneg %p132
        $region26: #{tpu_custom_call.1} parent=11 // pred_check_branch
          %257 = sbr.rel (%p255) target = $region28
        $region27: #{tpu_custom_call.1} parent=11 // pred_region
          %259 = vsyncadd [#allocation9], 0
          %s261 = sshll.u32 %s4, 4
          %s262 = int_to_ptr.hbm [resolvable:$true] %s261
          %s263 = sshll.u32 [#allocation10], 4
          %s264 = int_to_ptr.vmem [resolvable:$true] %s263
          %266 = dma.hbm_to_vmem [thread:$0]  %s262, 96, %s264, [#allocation9]
        $region28: #{tpu_custom_call.1} parent=11 // pred_fallthru
          _
        // Predicated region
        $region29: #{tpu_custom_call.1} parent=11 // pred_check
          %p267 = pneg %p153
        $region30: #{tpu_custom_call.1} parent=11 // pred_check_branch
          %269 = sbr.rel (%p267) target = $region32
        $region31: #{tpu_custom_call.1} parent=11 // pred_region
          %271 = vsyncadd [#allocation12], 0
          %s273 = sshll.u32 %s5, 4
          %s274 = int_to_ptr.hbm [resolvable:$true] %s273
          %s275 = sshll.u32 [#allocation11], 4
          %s276 = int_to_ptr.vmem [resolvable:$true] %s275
          %278 = dma.hbm_to_vmem [thread:$0]  %s274, 96, %s276, [#allocation12]
        $region32: #{tpu_custom_call.1} parent=11 // pred_fallthru
          _
        // Predicated region
        $region33: #{tpu_custom_call.1} parent=11 // pred_check
          %p279 = pneg %p174
        $region34: #{tpu_custom_call.1} parent=11 // pred_check_branch
          %281 = sbr.rel (%p279) target = $region36
        $region35: #{tpu_custom_call.1} parent=11 // pred_region
          %283 = vsyncadd [#allocation12], 0
          %s285 = sshll.u32 %s6, 4
          %s286 = int_to_ptr.hbm [resolvable:$true] %s285
          %s287 = sshll.u32 [#allocation13], 4
          %s288 = int_to_ptr.vmem [resolvable:$true] %s287
          %290 = dma.hbm_to_vmem [thread:$0]  %s286, 96, %s288, [#allocation12]
        $region36: #{tpu_custom_call.1} parent=11 // pred_fallthru
          _
      $region12: #{tpu_custom_call.1} parent=5 // pred_fallthru
        _
      %p291 = scmp.lt.s32.totalorder %s22, 2
      // Predicated region
      $region37: #{tpu_custom_call.1} parent=5 // pred_check
        %p292 = pneg %p291
      $region38: #{tpu_custom_call.1} parent=5 // pred_check_branch
        %294 = sbr.rel (%p292) target = $region40
      $region39: #{tpu_custom_call.1} parent=5 // pred_region
        // Predicated region
        $region41: #{tpu_custom_call.1} parent=39 // pred_check
          %p295 = pneg %p42
        $region42: #{tpu_custom_call.1} parent=39 // pred_check_branch
          %297 = sbr.rel (%p295) target = $region44
        $region43: #{tpu_custom_call.1} parent=39 // pred_region
          %s298 = sand.u32 %s32, 1
          %s299 = scalar_lea.sflag [#allocation3], %s298
          %s300 = sand.u32 %s32, 1
          %s301 = smul.addr %s300, 1200
          %s302 = scalar_lea.vmem [#allocation2], %s301
          %s303 = smul.u32 25, %s22
          %305 = vsyncadd %s299, 0
          %s306 = smul.addr %s303, 6
          %s307 = smul.addr %s306, 8
          %s308 = scalar_lea.hbm %s0, %s307
          %s309 = sshll.u32 %s308, 4
          %s310 = int_to_ptr.hbm [resolvable:$true] %s309
          %s311 = sshll.u32 %s302, 4
          %s312 = int_to_ptr.vmem [resolvable:$true] %s311
          %317 = dma.hbm_to_vmem [thread:$0]  %s310, 19200, %s312, %s299, 768, 768, 48
        $region44: #{tpu_custom_call.1} parent=39 // pred_fallthru
          _
      $region40: #{tpu_custom_call.1} parent=5 // pred_fallthru
        _
      %p318 = scmp.le.s32.totalorder 1, %s22
      %p319 = scmp.lt.s32.totalorder %s22, 3
      %p320 = pnand %p318, %p319
      %p321 = pneg %p320
      // Predicated region
      $region45: #{tpu_custom_call.1} parent=5 // pred_check
        _
      $region46: #{tpu_custom_call.1} parent=5 // pred_check_branch
        %323 = sbr.rel (%p320) target = $region48
      $region47: #{tpu_custom_call.1} parent=5 // pred_region
        %s324 = ssub.s32 %s22, 1
        %s325 = sand.u32 %s35, 1
        %s326 = scalar_lea.sflag [#allocation3], %s325
        %s327 = sand.u32 %s35, 1
        %s328 = smul.addr %s327, 1200
        %s329 = scalar_lea.vmem [#allocation2], %s328
        // Predicated region
        $region49: #{tpu_custom_call.1} parent=47 // pred_check
          %p330 = pneg %p48
        $region50: #{tpu_custom_call.1} parent=47 // pred_check_branch
          %332 = sbr.rel (%p330) target = $region52
        $region51: #{tpu_custom_call.1} parent=47 // pred_region
          %334 = dma.done %s326, 19200
        $region52: #{tpu_custom_call.1} parent=47 // pred_fallthru
          _
        // Predicated region
        $region53: #{tpu_custom_call.1} parent=47 // pred_check
          %p335 = pneg %p69
        $region54: #{tpu_custom_call.1} parent=47 // pred_check_branch
          %337 = sbr.rel (%p335) target = $region56
        $region55: #{tpu_custom_call.1} parent=47 // pred_region
          %339 = dma.done [#allocation6], 6144
        $region56: #{tpu_custom_call.1} parent=47 // pred_fallthru
          _
        // Predicated region
        $region57: #{tpu_custom_call.1} parent=47 // pred_check
          %p340 = pneg %p90
        $region58: #{tpu_custom_call.1} parent=47 // pred_check_branch
          %342 = sbr.rel (%p340) target = $region60
        $region59: #{tpu_custom_call.1} parent=47 // pred_region
          %344 = dma.done [#allocation6], 16
        $region60: #{tpu_custom_call.1} parent=47 // pred_fallthru
          _
        // Predicated region
        $region61: #{tpu_custom_call.1} parent=47 // pred_check
          %p345 = pneg %p111
        $region62: #{tpu_custom_call.1} parent=47 // pred_check_branch
          %347 = sbr.rel (%p345) target = $region64
        $region63: #{tpu_custom_call.1} parent=47 // pred_region
          %349 = dma.done [#allocation9], 6144
        $region64: #{tpu_custom_call.1} parent=47 // pred_fallthru
          _
        // Predicated region
        $region65: #{tpu_custom_call.1} parent=47 // pred_check
          %p350 = pneg %p132
        $region66: #{tpu_custom_call.1} parent=47 // pred_check_branch
          %352 = sbr.rel (%p350) target = $region68
        $region67: #{tpu_custom_call.1} parent=47 // pred_region
          %354 = dma.done [#allocation9], 96
        $region68: #{tpu_custom_call.1} parent=47 // pred_fallthru
          _
        // Predicated region
        $region69: #{tpu_custom_call.1} parent=47 // pred_check
          %p355 = pneg %p153
        $region70: #{tpu_custom_call.1} parent=47 // pred_check_branch
          %357 = sbr.rel (%p355) target = $region72
        $region71: #{tpu_custom_call.1} parent=47 // pred_region
          %359 = dma.done [#allocation12], 96
        $region72: #{tpu_custom_call.1} parent=47 // pred_fallthru
          _
        // Predicated region
        $region73: #{tpu_custom_call.1} parent=47 // pred_check
          %p360 = pneg %p174
        $region74: #{tpu_custom_call.1} parent=47 // pred_check_branch
          %362 = sbr.rel (%p360) target = $region76
        $region75: #{tpu_custom_call.1} parent=47 // pred_region
          %364 = dma.done [#allocation12], 96
        $region76: #{tpu_custom_call.1} parent=47 // pred_fallthru
          _
        %s365 = sand.u32 %s35, 1
        %s366 = scalar_lea.sflag [#allocation3], %s365
        %s367 = sand.u32 %s35, 1
        %s368 = smul.addr %s367, 1200
        %s369 = scalar_lea.vmem [#allocation2], %s368
        %p370 = pneg %p48
        %p371 = pneg %p45
        %p372 = pneg %p69
        %p373 = pneg %p66
        %p374 = pneg %p90
        %p375 = pneg %p87
        %p376 = pneg %p111
        %p377 = pneg %p108
        %p378 = pneg %p132
        %p379 = pneg %p129
        %p380 = pneg %p153
        %p381 = pneg %p150
        %p382 = pneg %p174
        %p383 = pneg %p171
        %p384 = pneg %p200
        %p385 = pneg %p197
        %s386 = sand.u32 %s187, 1
        %s387 = scalar_lea.sflag [#allocation4], %s386
        %s388 = sand.u32 %s187, 1
        %s389 = smul.addr %s388, 1200
        %s390 = scalar_lea.vmem [#allocation14], %s389
        %s391 = smul.u32 25, %s27
        %s392 = smul.u32 25, %s27
        %v393 = vld [vmem:[%s329] sm:$0xff]
        %v394 = vld [vmem:[%s329 + $0x8] sm:$0xff]
        %v395 = vld [vmem:[%s329 + $0x10] sm:$0xff]
        %v396 = vld [vmem:[%s329 + $0x18] sm:$0xff]
        %v397 = vld [vmem:[%s329 + $0x20] sm:$0xff]
        %v398 = vld [vmem:[%s329 + $0x28] sm:$0xff]
        %v399 = vld [vmem:[%s329 + $0x30] sm:$0xff]
        %v400 = vld [vmem:[%s329 + $0x38] sm:$0xff]
        %v401 = vld [vmem:[%s329 + $0x40] sm:$0xff]
        %v402 = vld [vmem:[%s329 + $0x48] sm:$0xff]
        %v403 = vld [vmem:[%s329 + $0x50] sm:$0xff]
        %v404 = vld [vmem:[%s329 + $0x58] sm:$0xff]
        %v405 = vld [vmem:[%s329 + $0x60] sm:$0xff]
        %v406 = vld [vmem:[%s329 + $0x68] sm:$0xff]
        %v407 = vld [vmem:[%s329 + $0x70] sm:$0xff]
        %v408 = vld [vmem:[%s329 + $0x78] sm:$0xff]
        %v409 = vld [vmem:[%s329 + $0x80] sm:$0xff]
        %v410 = vld [vmem:[%s329 + $0x88] sm:$0xff]
        %v411 = vld [vmem:[%s329 + $0x90] sm:$0xff]
        %v412 = vld [vmem:[%s329 + $0x98] sm:$0xff]
        %v413 = vld [vmem:[%s329 + $0xa0] sm:$0xff]
        %v414 = vld [vmem:[%s329 + $0xa8] sm:$0xff]
        %v415 = vld [vmem:[%s329 + $0xb0] sm:$0xff]
        %v416 = vld [vmem:[%s329 + $0xb8] sm:$0xff]
        %v417 = vld [vmem:[%s329 + $0xc0] sm:$0xff]
        %v418 = vld [vmem:[%s329 + $0xc8] sm:$0xff]
        %v419 = vld [vmem:[%s329 + $0xd0] sm:$0xff]
        %v420 = vld [vmem:[%s329 + $0xd8] sm:$0xff]
        %v421 = vld [vmem:[%s329 + $0xe0] sm:$0xff]
        %v422 = vld [vmem:[%s329 + $0xe8] sm:$0xff]
        %v423 = vld [vmem:[%s329 + $0xf0] sm:$0xff]
        %v424 = vld [vmem:[%s329 + $0xf8] sm:$0xff]
        %v425 = vld [vmem:[%s329 + $0x100] sm:$0xff]
        %v426 = vld [vmem:[%s329 + $0x108] sm:$0xff]
        %v427 = vld [vmem:[%s329 + $0x110] sm:$0xff]
        %v428 = vld [vmem:[%s329 + $0x118] sm:$0xff]
        %v429 = vld [vmem:[%s329 + $0x120] sm:$0xff]
        %v430 = vld [vmem:[%s329 + $0x128] sm:$0xff]
        %v431 = vld [vmem:[%s329 + $0x130] sm:$0xff]
        %v432 = vld [vmem:[%s329 + $0x138] sm:$0xff]
        %v433 = vld [vmem:[%s329 + $0x140] sm:$0xff]
        %v434 = vld [vmem:[%s329 + $0x148] sm:$0xff]
        %v435 = vld [vmem:[%s329 + $0x150] sm:$0xff]
        %v436 = vld [vmem:[%s329 + $0x158] sm:$0xff]
        %v437 = vld [vmem:[%s329 + $0x160] sm:$0xff]
        %v438 = vld [vmem:[%s329 + $0x168] sm:$0xff]
        %v439 = vld [vmem:[%s329 + $0x170] sm:$0xff]
        %v440 = vld [vmem:[%s329 + $0x178] sm:$0xff]
        %v441 = vld [vmem:[%s329 + $0x180] sm:$0xff]
        %v442 = vld [vmem:[%s329 + $0x188] sm:$0xff]
        %v443 = vld [vmem:[%s329 + $0x190] sm:$0xff]
        %v444 = vld [vmem:[%s329 + $0x198] sm:$0xff]
        %v445 = vld [vmem:[%s329 + $0x1a0] sm:$0xff]
        %v446 = vld [vmem:[%s329 + $0x1a8] sm:$0xff]
        %v447 = vld [vmem:[%s329 + $0x1b0] sm:$0xff]
        %v448 = vld [vmem:[%s329 + $0x1b8] sm:$0xff]
        %v449 = vld [vmem:[%s329 + $0x1c0] sm:$0xff]
        %v450 = vld [vmem:[%s329 + $0x1c8] sm:$0xff]
        %v451 = vld [vmem:[%s329 + $0x1d0] sm:$0xff]
        %v452 = vld [vmem:[%s329 + $0x1d8] sm:$0xff]
        %v453 = vld [vmem:[%s329 + $0x1e0] sm:$0xff]
        %v454 = vld [vmem:[%s329 + $0x1e8] sm:$0xff]
        %v455 = vld [vmem:[%s329 + $0x1f0] sm:$0xff]
        %v456 = vld [vmem:[%s329 + $0x1f8] sm:$0xff]
        %v457 = vld [vmem:[%s329 + $0x200] sm:$0xff]
        %v458 = vld [vmem:[%s329 + $0x208] sm:$0xff]
        %v459 = vld [vmem:[%s329 + $0x210] sm:$0xff]
        %v460 = vld [vmem:[%s329 + $0x218] sm:$0xff]
        %v461 = vld [vmem:[%s329 + $0x220] sm:$0xff]
        %v462 = vld [vmem:[%s329 + $0x228] sm:$0xff]
        %v463 = vld [vmem:[%s329 + $0x230] sm:$0xff]
        %v464 = vld [vmem:[%s329 + $0x238] sm:$0xff]
        %v465 = vld [vmem:[%s329 + $0x240] sm:$0xff]
        %v466 = vld [vmem:[%s329 + $0x248] sm:$0xff]
        %v467 = vld [vmem:[%s329 + $0x250] sm:$0xff]
        %v468 = vld [vmem:[%s329 + $0x258] sm:$0xff]
        %v469 = vld [vmem:[%s329 + $0x260] sm:$0xff]
        %v470 = vld [vmem:[%s329 + $0x268] sm:$0xff]
        %v471 = vld [vmem:[%s329 + $0x270] sm:$0xff]
        %v472 = vld [vmem:[%s329 + $0x278] sm:$0xff]
        %v473 = vld [vmem:[%s329 + $0x280] sm:$0xff]
        %v474 = vld [vmem:[%s329 + $0x288] sm:$0xff]
        %v475 = vld [vmem:[%s329 + $0x290] sm:$0xff]
        %v476 = vld [vmem:[%s329 + $0x298] sm:$0xff]
        %v477 = vld [vmem:[%s329 + $0x2a0] sm:$0xff]
        %v478 = vld [vmem:[%s329 + $0x2a8] sm:$0xff]
        %v479 = vld [vmem:[%s329 + $0x2b0] sm:$0xff]
        %v480 = vld [vmem:[%s329 + $0x2b8] sm:$0xff]
        %v481 = vld [vmem:[%s329 + $0x2c0] sm:$0xff]
        %v482 = vld [vmem:[%s329 + $0x2c8] sm:$0xff]
        %v483 = vld [vmem:[%s329 + $0x2d0] sm:$0xff]
        %v484 = vld [vmem:[%s329 + $0x2d8] sm:$0xff]
        %v485 = vld [vmem:[%s329 + $0x2e0] sm:$0xff]
        %v486 = vld [vmem:[%s329 + $0x2e8] sm:$0xff]
        %v487 = vld [vmem:[%s329 + $0x2f0] sm:$0xff]
        %v488 = vld [vmem:[%s329 + $0x2f8] sm:$0xff]
        %v489 = vld [vmem:[%s329 + $0x300] sm:$0xff]
        %v490 = vld [vmem:[%s329 + $0x308] sm:$0xff]
        %v491 = vld [vmem:[%s329 + $0x310] sm:$0xff]
        %v492 = vld [vmem:[%s329 + $0x318] sm:$0xff]
        %v493 = vld [vmem:[%s329 + $0x320] sm:$0xff]
        %v494 = vld [vmem:[%s329 + $0x328] sm:$0xff]
        %v495 = vld [vmem:[%s329 + $0x330] sm:$0xff]
        %v496 = vld [vmem:[%s329 + $0x338] sm:$0xff]
        %v497 = vld [vmem:[%s329 + $0x340] sm:$0xff]
        %v498 = vld [vmem:[%s329 + $0x348] sm:$0xff]
        %v499 = vld [vmem:[%s329 + $0x350] sm:$0xff]
        %v500 = vld [vmem:[%s329 + $0x358] sm:$0xff]
        %v501 = vld [vmem:[%s329 + $0x360] sm:$0xff]
        %v502 = vld [vmem:[%s329 + $0x368] sm:$0xff]
        %v503 = vld [vmem:[%s329 + $0x370] sm:$0xff]
        %v504 = vld [vmem:[%s329 + $0x378] sm:$0xff]
        %v505 = vld [vmem:[%s329 + $0x380] sm:$0xff]
        %v506 = vld [vmem:[%s329 + $0x388] sm:$0xff]
        %v507 = vld [vmem:[%s329 + $0x390] sm:$0xff]
        %v508 = vld [vmem:[%s329 + $0x398] sm:$0xff]
        %v509 = vld [vmem:[%s329 + $0x3a0] sm:$0xff]
        %v510 = vld [vmem:[%s329 + $0x3a8] sm:$0xff]
        %v511 = vld [vmem:[%s329 + $0x3b0] sm:$0xff]
        %v512 = vld [vmem:[%s329 + $0x3b8] sm:$0xff]
        %v513 = vld [vmem:[%s329 + $0x3c0] sm:$0xff]
        %v514 = vld [vmem:[%s329 + $0x3c8] sm:$0xff]
        %v515 = vld [vmem:[%s329 + $0x3d0] sm:$0xff]
        %v516 = vld [vmem:[%s329 + $0x3d8] sm:$0xff]
        %v517 = vld [vmem:[%s329 + $0x3e0] sm:$0xff]
        %v518 = vld [vmem:[%s329 + $0x3e8] sm:$0xff]
        %v519 = vld [vmem:[%s329 + $0x3f0] sm:$0xff]
        %v520 = vld [vmem:[%s329 + $0x3f8] sm:$0xff]
        %v521 = vld [vmem:[%s329 + $0x400] sm:$0xff]
        %v522 = vld [vmem:[%s329 + $0x408] sm:$0xff]
        %v523 = vld [vmem:[%s329 + $0x410] sm:$0xff]
        %v524 = vld [vmem:[%s329 + $0x418] sm:$0xff]
        %v525 = vld [vmem:[%s329 + $0x420] sm:$0xff]
        %v526 = vld [vmem:[%s329 + $0x428] sm:$0xff]
        %v527 = vld [vmem:[%s329 + $0x430] sm:$0xff]
        %v528 = vld [vmem:[%s329 + $0x438] sm:$0xff]
        %v529 = vld [vmem:[%s329 + $0x440] sm:$0xff]
        %v530 = vld [vmem:[%s329 + $0x448] sm:$0xff]
        %v531 = vld [vmem:[%s329 + $0x450] sm:$0xff]
        %v532 = vld [vmem:[%s329 + $0x458] sm:$0xff]
        %v533 = vld [vmem:[%s329 + $0x460] sm:$0xff]
        %v534 = vld [vmem:[%s329 + $0x468] sm:$0xff]
        %v535 = vld [vmem:[%s329 + $0x470] sm:$0xff]
        %v536 = vld [vmem:[%s329 + $0x478] sm:$0xff]
        %v537 = vld [vmem:[%s329 + $0x480] sm:$0xff]
        %v538 = vld [vmem:[%s329 + $0x488] sm:$0xff]
        %v539 = vld [vmem:[%s329 + $0x490] sm:$0xff]
        %v540 = vld [vmem:[%s329 + $0x498] sm:$0xff]
        %v541 = vld [vmem:[%s329 + $0x4a0] sm:$0xff]
        %v542 = vld [vmem:[%s329 + $0x4a8] sm:$0xff]
        %v543 = vpack.c.bf16 %v399, %v393
        %v544 = vpack.c.bf16 %v400, %v394
        %v545 = vpack.c.bf16 %v401, %v395
        %v546 = vpack.c.bf16 %v402, %v396
        %v547 = vpack.c.bf16 %v403, %v397
        %v548 = vpack.c.bf16 %v404, %v398
        %v549 = vpack.c.bf16 %v411, %v405
        %v550 = vpack.c.bf16 %v412, %v406
        %v551 = vpack.c.bf16 %v413, %v407
        %v552 = vpack.c.bf16 %v414, %v408
        %v553 = vpack.c.bf16 %v415, %v409
        %v554 = vpack.c.bf16 %v416, %v410
        %v555 = vpack.c.bf16 %v423, %v417
        %v556 = vpack.c.bf16 %v424, %v418
        %v557 = vpack.c.bf16 %v425, %v419
        %v558 = vpack.c.bf16 %v426, %v420
        %v559 = vpack.c.bf16 %v427, %v421
        %v560 = vpack.c.bf16 %v428, %v422
        %v561 = vpack.c.bf16 %v435, %v429
        %v562 = vpack.c.bf16 %v436, %v430
        %v563 = vpack.c.bf16 %v437, %v431
        %v564 = vpack.c.bf16 %v438, %v432
        %v565 = vpack.c.bf16 %v439, %v433
        %v566 = vpack.c.bf16 %v440, %v434
        %v567 = vpack.c.bf16 %v447, %v441
        %v568 = vpack.c.bf16 %v448, %v442
        %v569 = vpack.c.bf16 %v449, %v443
        %v570 = vpack.c.bf16 %v450, %v444
        %v571 = vpack.c.bf16 %v451, %v445
        %v572 = vpack.c.bf16 %v452, %v446
        %v573 = vpack.c.bf16 %v459, %v453
        %v574 = vpack.c.bf16 %v460, %v454
        %v575 = vpack.c.bf16 %v461, %v455
        %v576 = vpack.c.bf16 %v462, %v456
        %v577 = vpack.c.bf16 %v463, %v457
        %v578 = vpack.c.bf16 %v464, %v458
        %v579 = vpack.c.bf16 %v471, %v465
        %v580 = vpack.c.bf16 %v472, %v466
        %v581 = vpack.c.bf16 %v473, %v467
        %v582 = vpack.c.bf16 %v474, %v468
        %v583 = vpack.c.bf16 %v475, %v469
        %v584 = vpack.c.bf16 %v476, %v470
        %v585 = vpack.c.bf16 %v483, %v477
        %v586 = vpack.c.bf16 %v484, %v478
        %v587 = vpack.c.bf16 %v485, %v479
        %v588 = vpack.c.bf16 %v486, %v480
        %v589 = vpack.c.bf16 %v487, %v481
        %v590 = vpack.c.bf16 %v488, %v482
        %v591 = vpack.c.bf16 %v495, %v489
        %v592 = vpack.c.bf16 %v496, %v490
        %v593 = vpack.c.bf16 %v497, %v491
        %v594 = vpack.c.bf16 %v498, %v492
        %v595 = vpack.c.bf16 %v499, %v493
        %v596 = vpack.c.bf16 %v500, %v494
        %v597 = vpack.c.bf16 %v507, %v501
        %v598 = vpack.c.bf16 %v508, %v502
        %v599 = vpack.c.bf16 %v509, %v503
        %v600 = vpack.c.bf16 %v510, %v504
        %v601 = vpack.c.bf16 %v511, %v505
        %v602 = vpack.c.bf16 %v512, %v506
        %v603 = vpack.c.bf16 %v519, %v513
        %v604 = vpack.c.bf16 %v520, %v514
        %v605 = vpack.c.bf16 %v521, %v515
        %v606 = vpack.c.bf16 %v522, %v516
        %v607 = vpack.c.bf16 %v523, %v517
        %v608 = vpack.c.bf16 %v524, %v518
        %v609 = vpack.c.bf16 %v531, %v525
        %v610 = vpack.c.bf16 %v532, %v526
        %v611 = vpack.c.bf16 %v533, %v527
        %v612 = vpack.c.bf16 %v534, %v528
        %v613 = vpack.c.bf16 %v535, %v529
        %v614 = vpack.c.bf16 %v536, %v530
        %v615 = vpack.c.bf16 %v537, %v537
        %v616 = vpack.c.bf16 %v538, %v538
        %v617 = vpack.c.bf16 %v539, %v539
        %v618 = vpack.c.bf16 %v540, %v540
        %v619 = vpack.c.bf16 %v541, %v541
        %v620 = vpack.c.bf16 %v542, %v542
        %v621 = vld [vmem:[#allocation5] sm:$0xf]
        %v622 = vld [vmem:[#allocation5 + $0x4] sm:$0xf]
        %v623 = vld [vmem:[#allocation5 + $0x8] sm:$0xf]
        %v624 = vld [vmem:[#allocation5 + $0xc] sm:$0xf]
        %v625 = vld [vmem:[#allocation5 + $0x10] sm:$0xf]
        %v626 = vld [vmem:[#allocation5 + $0x14] sm:$0xf]
        %v627 = vld [vmem:[#allocation5 + $0x18] sm:$0xf]
        %v628 = vld [vmem:[#allocation5 + $0x1c] sm:$0xf]
        %v629 = vld [vmem:[#allocation5 + $0x20] sm:$0xf]
        %v630 = vld [vmem:[#allocation5 + $0x24] sm:$0xf]
        %v631 = vld [vmem:[#allocation5 + $0x28] sm:$0xf]
        %v632 = vld [vmem:[#allocation5 + $0x2c] sm:$0xf]
        %v633 = vld [vmem:[#allocation5 + $0x30] sm:$0xf]
        %v634 = vld [vmem:[#allocation5 + $0x34] sm:$0xf]
        %v635 = vld [vmem:[#allocation5 + $0x38] sm:$0xf]
        %v636 = vld [vmem:[#allocation5 + $0x3c] sm:$0xf]
        %v637 = vld [vmem:[#allocation5 + $0x40] sm:$0xf]
        %v638 = vld [vmem:[#allocation5 + $0x44] sm:$0xf]
        %v639 = vld [vmem:[#allocation5 + $0x48] sm:$0xf]
        %v640 = vld [vmem:[#allocation5 + $0x4c] sm:$0xf]
        %v641 = vld [vmem:[#allocation5 + $0x50] sm:$0xf]
        %v642 = vld [vmem:[#allocation5 + $0x54] sm:$0xf]
        %v643 = vld [vmem:[#allocation5 + $0x58] sm:$0xf]
        %v644 = vld [vmem:[#allocation5 + $0x5c] sm:$0xf]
        %v645 = vld [vmem:[#allocation5 + $0x60] sm:$0xf]
        %v646 = vld [vmem:[#allocation5 + $0x64] sm:$0xf]
        %v647 = vld [vmem:[#allocation5 + $0x68] sm:$0xf]
        %v648 = vld [vmem:[#allocation5 + $0x6c] sm:$0xf]
        %v649 = vld [vmem:[#allocation5 + $0x70] sm:$0xf]
        %v650 = vld [vmem:[#allocation5 + $0x74] sm:$0xf]
        %v651 = vld [vmem:[#allocation5 + $0x78] sm:$0xf]
        %v652 = vld [vmem:[#allocation5 + $0x7c] sm:$0xf]
        %v653 = vld [vmem:[#allocation5 + $0x80] sm:$0xf]
        %v654 = vld [vmem:[#allocation5 + $0x84] sm:$0xf]
        %v655 = vld [vmem:[#allocation5 + $0x88] sm:$0xf]
        %v656 = vld [vmem:[#allocation5 + $0x8c] sm:$0xf]
        %v657 = vld [vmem:[#allocation5 + $0x90] sm:$0xf]
        %v658 = vld [vmem:[#allocation5 + $0x94] sm:$0xf]
        %v659 = vld [vmem:[#allocation5 + $0x98] sm:$0xf]
        %v660 = vld [vmem:[#allocation5 + $0x9c] sm:$0xf]
        %v661 = vld [vmem:[#allocation5 + $0xa0] sm:$0xf]
        %v662 = vld [vmem:[#allocation5 + $0xa4] sm:$0xf]
        %v663 = vld [vmem:[#allocation5 + $0xa8] sm:$0xf]
        %v664 = vld [vmem:[#allocation5 + $0xac] sm:$0xf]
        %v665 = vld [vmem:[#allocation5 + $0xb0] sm:$0xf]
        %v666 = vld [vmem:[#allocation5 + $0xb4] sm:$0xf]
        %v667 = vld [vmem:[#allocation5 + $0xb8] sm:$0xf]
        %v668 = vld [vmem:[#allocation5 + $0xbc] sm:$0xf]
        %v669 = vld [vmem:[#allocation5 + $0xc0] sm:$0xf]
        %v670 = vld [vmem:[#allocation5 + $0xc4] sm:$0xf]
        %v671 = vld [vmem:[#allocation5 + $0xc8] sm:$0xf]
        %v672 = vld [vmem:[#allocation5 + $0xcc] sm:$0xf]
        %v673 = vld [vmem:[#allocation5 + $0xd0] sm:$0xf]
        %v674 = vld [vmem:[#allocation5 + $0xd4] sm:$0xf]
        %v675 = vld [vmem:[#allocation5 + $0xd8] sm:$0xf]
        %v676 = vld [vmem:[#allocation5 + $0xdc] sm:$0xf]
        %v677 = vld [vmem:[#allocation5 + $0xe0] sm:$0xf]
        %v678 = vld [vmem:[#allocation5 + $0xe4] sm:$0xf]
        %v679 = vld [vmem:[#allocation5 + $0xe8] sm:$0xf]
        %v680 = vld [vmem:[#allocation5 + $0xec] sm:$0xf]
        %v681 = vld [vmem:[#allocation5 + $0xf0] sm:$0xf]
        %v682 = vld [vmem:[#allocation5 + $0xf4] sm:$0xf]
        %v683 = vld [vmem:[#allocation5 + $0xf8] sm:$0xf]
        %v684 = vld [vmem:[#allocation5 + $0xfc] sm:$0xf]
        %v685 = vld [vmem:[#allocation5 + $0x100] sm:$0xf]
        %v686 = vld [vmem:[#allocation5 + $0x104] sm:$0xf]
        %v687 = vld [vmem:[#allocation5 + $0x108] sm:$0xf]
        %v688 = vld [vmem:[#allocation5 + $0x10c] sm:$0xf]
        %v689 = vld [vmem:[#allocation5 + $0x110] sm:$0xf]
        %v690 = vld [vmem:[#allocation5 + $0x114] sm:$0xf]
        %v691 = vld [vmem:[#allocation5 + $0x118] sm:$0xf]
        %v692 = vld [vmem:[#allocation5 + $0x11c] sm:$0xf]
        %v693 = vld [vmem:[#allocation5 + $0x120] sm:$0xf]
        %v694 = vld [vmem:[#allocation5 + $0x124] sm:$0xf]
        %v695 = vld [vmem:[#allocation5 + $0x128] sm:$0xf]
        %v696 = vld [vmem:[#allocation5 + $0x12c] sm:$0xf]
        %v697 = vld [vmem:[#allocation5 + $0x130] sm:$0xf]
        %v698 = vld [vmem:[#allocation5 + $0x134] sm:$0xf]
        %v699 = vld [vmem:[#allocation5 + $0x138] sm:$0xf]
        %v700 = vld [vmem:[#allocation5 + $0x13c] sm:$0xf]
        %v701 = vld [vmem:[#allocation5 + $0x140] sm:$0xf]
        %v702 = vld [vmem:[#allocation5 + $0x144] sm:$0xf]
        %v703 = vld [vmem:[#allocation5 + $0x148] sm:$0xf]
        %v704 = vld [vmem:[#allocation5 + $0x14c] sm:$0xf]
        %v705 = vld [vmem:[#allocation5 + $0x150] sm:$0xf]
        %v706 = vld [vmem:[#allocation5 + $0x154] sm:$0xf]
        %v707 = vld [vmem:[#allocation5 + $0x158] sm:$0xf]
        %v708 = vld [vmem:[#allocation5 + $0x15c] sm:$0xf]
        %v709 = vld [vmem:[#allocation5 + $0x160] sm:$0xf]
        %v710 = vld [vmem:[#allocation5 + $0x164] sm:$0xf]
        %v711 = vld [vmem:[#allocation5 + $0x168] sm:$0xf]
        %v712 = vld [vmem:[#allocation5 + $0x16c] sm:$0xf]
        %v713 = vld [vmem:[#allocation5 + $0x170] sm:$0xf]
        %v714 = vld [vmem:[#allocation5 + $0x174] sm:$0xf]
        %v715 = vld [vmem:[#allocation5 + $0x178] sm:$0xf]
        %v716 = vld [vmem:[#allocation5 + $0x17c] sm:$0xf]
        %v717 = vld [vmem:[#allocation7] sm:$0x1]
        %v719 = vperm.slane %v717, 0
        %v817 = vunpack.c.l.b16 %v621
        %v818 = vunpack.c.l.b16 %v622
        %v819 = vunpack.c.l.b16 %v623
        %v820 = vunpack.c.l.b16 %v624
        %v821 = vunpack.c.l.b16 %v625
        %v822 = vunpack.c.l.b16 %v626
        %v823 = vunpack.c.l.b16 %v627
        %v824 = vunpack.c.l.b16 %v628
        %v825 = vunpack.c.l.b16 %v629
        %v826 = vunpack.c.l.b16 %v630
        %v827 = vunpack.c.l.b16 %v631
        %v828 = vunpack.c.l.b16 %v632
        %v829 = vunpack.c.l.b16 %v633
        %v830 = vunpack.c.l.b16 %v634
        %v831 = vunpack.c.l.b16 %v635
        %v832 = vunpack.c.l.b16 %v636
        %v833 = vunpack.c.l.b16 %v637
        %v834 = vunpack.c.l.b16 %v638
        %v835 = vunpack.c.l.b16 %v639
        %v836 = vunpack.c.l.b16 %v640
        %v837 = vunpack.c.l.b16 %v641
        %v838 = vunpack.c.l.b16 %v642
        %v839 = vunpack.c.l.b16 %v643
        %v840 = vunpack.c.l.b16 %v644
        %v841 = vunpack.c.l.b16 %v645
        %v842 = vunpack.c.l.b16 %v646
        %v843 = vunpack.c.l.b16 %v647
        %v844 = vunpack.c.l.b16 %v648
        %v845 = vunpack.c.l.b16 %v649
        %v846 = vunpack.c.l.b16 %v650
        %v847 = vunpack.c.l.b16 %v651
        %v848 = vunpack.c.l.b16 %v652
        %v849 = vunpack.c.l.b16 %v653
        %v850 = vunpack.c.l.b16 %v654
        %v851 = vunpack.c.l.b16 %v655
        %v852 = vunpack.c.l.b16 %v656
        %v853 = vunpack.c.l.b16 %v657
        %v854 = vunpack.c.l.b16 %v658
        %v855 = vunpack.c.l.b16 %v659
        %v856 = vunpack.c.l.b16 %v660
        %v857 = vunpack.c.l.b16 %v661
        %v858 = vunpack.c.l.b16 %v662
        %v859 = vunpack.c.l.b16 %v663
        %v860 = vunpack.c.l.b16 %v664
        %v861 = vunpack.c.l.b16 %v665
        %v862 = vunpack.c.l.b16 %v666
        %v863 = vunpack.c.l.b16 %v667
        %v864 = vunpack.c.l.b16 %v668
        %v865 = vunpack.c.l.b16 %v669
        %v866 = vunpack.c.l.b16 %v670
        %v867 = vunpack.c.l.b16 %v671
        %v868 = vunpack.c.l.b16 %v672
        %v869 = vunpack.c.l.b16 %v673
        %v870 = vunpack.c.l.b16 %v674
        %v871 = vunpack.c.l.b16 %v675
        %v872 = vunpack.c.l.b16 %v676
        %v873 = vunpack.c.l.b16 %v677
        %v874 = vunpack.c.l.b16 %v678
        %v875 = vunpack.c.l.b16 %v679
        %v876 = vunpack.c.l.b16 %v680
        %v877 = vunpack.c.l.b16 %v681
        %v878 = vunpack.c.l.b16 %v682
        %v879 = vunpack.c.l.b16 %v683
        %v880 = vunpack.c.l.b16 %v684
        %v881 = vunpack.c.l.b16 %v685
        %v882 = vunpack.c.l.b16 %v686
        %v883 = vunpack.c.l.b16 %v687
        %v884 = vunpack.c.l.b16 %v688
        %v885 = vunpack.c.l.b16 %v689
        %v886 = vunpack.c.l.b16 %v690
        %v887 = vunpack.c.l.b16 %v691
        %v888 = vunpack.c.l.b16 %v692
        %v889 = vunpack.c.l.b16 %v693
        %v890 = vunpack.c.l.b16 %v694
        %v891 = vunpack.c.l.b16 %v695
        %v892 = vunpack.c.l.b16 %v696
        %v893 = vunpack.c.l.b16 %v697
        %v894 = vunpack.c.l.b16 %v698
        %v895 = vunpack.c.l.b16 %v699
        %v896 = vunpack.c.l.b16 %v700
        %v897 = vunpack.c.l.b16 %v701
        %v898 = vunpack.c.l.b16 %v702
        %v899 = vunpack.c.l.b16 %v703
        %v900 = vunpack.c.l.b16 %v704
        %v901 = vunpack.c.l.b16 %v705
        %v902 = vunpack.c.l.b16 %v706
        %v903 = vunpack.c.l.b16 %v707
        %v904 = vunpack.c.l.b16 %v708
        %v905 = vunpack.c.l.b16 %v709
        %v906 = vunpack.c.l.b16 %v710
        %v907 = vunpack.c.l.b16 %v711
        %v908 = vunpack.c.l.b16 %v712
        %v909 = vunpack.c.l.b16 %v713
        %v910 = vunpack.c.l.b16 %v714
        %v911 = vunpack.c.l.b16 %v715
        %v912 = vunpack.c.l.b16 %v716
        %v913 = vpack.c.b16 %v818, %v817
        %v914 = vpack.c.b16 %v820, %v819
        %v915 = vpack.c.b16 %v822, %v821
        %v916 = vpack.c.b16 %v824, %v823
        %v917 = vpack.c.b16 %v826, %v825
        %v918 = vpack.c.b16 %v828, %v827
        %v919 = vpack.c.b16 %v830, %v829
        %v920 = vpack.c.b16 %v832, %v831
        %v921 = vpack.c.b16 %v834, %v833
        %v922 = vpack.c.b16 %v836, %v835
        %v923 = vpack.c.b16 %v838, %v837
        %v924 = vpack.c.b16 %v840, %v839
        %v925 = vpack.c.b16 %v842, %v841
        %v926 = vpack.c.b16 %v844, %v843
        %v927 = vpack.c.b16 %v846, %v845
        %v928 = vpack.c.b16 %v848, %v847
        %v929 = vpack.c.b16 %v850, %v849
        %v930 = vpack.c.b16 %v852, %v851
        %v931 = vpack.c.b16 %v854, %v853
        %v932 = vpack.c.b16 %v856, %v855
        %v933 = vpack.c.b16 %v858, %v857
        %v934 = vpack.c.b16 %v860, %v859
        %v935 = vpack.c.b16 %v862, %v861
        %v936 = vpack.c.b16 %v864, %v863
        %v937 = vpack.c.b16 %v866, %v865
        %v938 = vpack.c.b16 %v868, %v867
        %v939 = vpack.c.b16 %v870, %v869
        %v940 = vpack.c.b16 %v872, %v871
        %v941 = vpack.c.b16 %v874, %v873
        %v942 = vpack.c.b16 %v876, %v875
        %v943 = vpack.c.b16 %v878, %v877
        %v944 = vpack.c.b16 %v880, %v879
        %v945 = vpack.c.b16 %v882, %v881
        %v946 = vpack.c.b16 %v884, %v883
        %v947 = vpack.c.b16 %v886, %v885
        %v948 = vpack.c.b16 %v888, %v887
        %v949 = vpack.c.b16 %v890, %v889
        %v950 = vpack.c.b16 %v892, %v891
        %v951 = vpack.c.b16 %v894, %v893
        %v952 = vpack.c.b16 %v896, %v895
        %v953 = vpack.c.b16 %v898, %v897
        %v954 = vpack.c.b16 %v900, %v899
        %v955 = vpack.c.b16 %v902, %v901
        %v956 = vpack.c.b16 %v904, %v903
        %v957 = vpack.c.b16 %v906, %v905
        %v958 = vpack.c.b16 %v908, %v907
        %v959 = vpack.c.b16 %v910, %v909
        %v960 = vpack.c.b16 %v912, %v911
        %1009 = vmatpush.bf16.msra.mxu0 %v920
        %1010 = vmatpush.bf16.msra.mxu0 %v919
        %1011 = vmatpush.bf16.msra.mxu0 %v918
        %1012 = vmatpush.bf16.msra.mxu0 %v917
        %1013 = vmatpush.bf16.msra.mxu0 %v916
        %1014 = vmatpush.bf16.msra.mxu0 %v915
        %1015 = vmatpush.bf16.msra.mxu0 %v914
        %1016 = vmatpush.bf16.msra.mxu0 %v913
        %1017 = vmatmul.bf16.gmra.mxu0 %v543
        %v1018 = vpop.f32.mrf.mxu0
        %v1019 = vadd.f32 %v719, %v1018
        %v1020 = vpop.f32.mrf.mxu0
        %v1021 = vadd.f32 %v719, %v1020
        %1022 = vmatmul.bf16.gmra.mxu0 %v549
        %v1023 = vpop.f32.mrf.mxu0
        %v1024 = vadd.f32 %v719, %v1023
        %v1025 = vpop.f32.mrf.mxu0
        %v1026 = vadd.f32 %v719, %v1025
        %1027 = vmatmul.bf16.gmra.mxu0 %v555
        %v1028 = vpop.f32.mrf.mxu0
        %v1029 = vadd.f32 %v719, %v1028
        %v1030 = vpop.f32.mrf.mxu0
        %v1031 = vadd.f32 %v719, %v1030
        %1032 = vmatmul.bf16.gmra.mxu0 %v561
        %v1033 = vpop.f32.mrf.mxu0
        %v1034 = vadd.f32 %v719, %v1033
        %v1035 = vpop.f32.mrf.mxu0
        %v1036 = vadd.f32 %v719, %v1035
        %1037 = vmatmul.bf16.gmra.mxu0 %v567
        %v1038 = vpop.f32.mrf.mxu0
        %v1039 = vadd.f32 %v719, %v1038
        %v1040 = vpop.f32.mrf.mxu0
        %v1041 = vadd.f32 %v719, %v1040
        %1042 = vmatmul.bf16.gmra.mxu0 %v573
        %v1043 = vpop.f32.mrf.mxu0
        %v1044 = vadd.f32 %v719, %v1043
        %v1045 = vpop.f32.mrf.mxu0
        %v1046 = vadd.f32 %v719, %v1045
        %1047 = vmatmul.bf16.gmra.mxu0 %v579
        %v1048 = vpop.f32.mrf.mxu0
        %v1049 = vadd.f32 %v719, %v1048
        %v1050 = vpop.f32.mrf.mxu0
        %v1051 = vadd.f32 %v719, %v1050
        %1052 = vmatmul.bf16.gmra.mxu0 %v585
        %v1053 = vpop.f32.mrf.mxu0
        %v1054 = vadd.f32 %v719, %v1053
        %v1055 = vpop.f32.mrf.mxu0
        %v1056 = vadd.f32 %v719, %v1055
        %1057 = vmatmul.bf16.gmra.mxu0 %v591
        %v1058 = vpop.f32.mrf.mxu0
        %v1059 = vadd.f32 %v719, %v1058
        %v1060 = vpop.f32.mrf.mxu0
        %v1061 = vadd.f32 %v719, %v1060
        %1062 = vmatmul.bf16.gmra.mxu0 %v597
        %v1063 = vpop.f32.mrf.mxu0
        %v1064 = vadd.f32 %v719, %v1063
        %v1065 = vpop.f32.mrf.mxu0
        %v1066 = vadd.f32 %v719, %v1065
        %1067 = vmatmul.bf16.gmra.mxu0 %v603
        %v1068 = vpop.f32.mrf.mxu0
        %v1069 = vadd.f32 %v719, %v1068
        %v1070 = vpop.f32.mrf.mxu0
        %v1071 = vadd.f32 %v719, %v1070
        %1072 = vmatmul.bf16.gmra.mxu0 %v609
        %v1073 = vpop.f32.mrf.mxu0
        %v1074 = vadd.f32 %v719, %v1073
        %v1075 = vpop.f32.mrf.mxu0
        %v1076 = vadd.f32 %v719, %v1075
        %1077 = vmatmul.bf16.gmra.mxu0 %v615
        %v1078 = vpop.f32.mrf.mxu0
        %v1079 = vadd.f32 %v719, %v1078
        %v1080 = vpop.f32.mrf.mxu0
        %1081 = vdwg.mxu0
        %1082 = vmatpush.bf16.msra.mxu0 %v928
        %1083 = vmatpush.bf16.msra.mxu0 %v927
        %1084 = vmatpush.bf16.msra.mxu0 %v926
        %1085 = vmatpush.bf16.msra.mxu0 %v925
        %1086 = vmatpush.bf16.msra.mxu0 %v924
        %1087 = vmatpush.bf16.msra.mxu0 %v923
        %1088 = vmatpush.bf16.msra.mxu0 %v922
        %1089 = vmatpush.bf16.msra.mxu0 %v921
        %1090 = vmatmul.bf16.gmra.mxu0 %v544
        %v1091 = vpop.f32.mrf.mxu0
        %v1092 = vadd.f32 %v1019, %v1091
        %v1093 = vpop.f32.mrf.mxu0
        %v1094 = vadd.f32 %v1021, %v1093
        %1095 = vmatmul.bf16.gmra.mxu0 %v550
        %v1096 = vpop.f32.mrf.mxu0
        %v1097 = vadd.f32 %v1024, %v1096
        %v1098 = vpop.f32.mrf.mxu0
        %v1099 = vadd.f32 %v1026, %v1098
        %1100 = vmatmul.bf16.gmra.mxu0 %v556
        %v1101 = vpop.f32.mrf.mxu0
        %v1102 = vadd.f32 %v1029, %v1101
        %v1103 = vpop.f32.mrf.mxu0
        %v1104 = vadd.f32 %v1031, %v1103
        %1105 = vmatmul.bf16.gmra.mxu0 %v562
        %v1106 = vpop.f32.mrf.mxu0
        %v1107 = vadd.f32 %v1034, %v1106
        %v1108 = vpop.f32.mrf.mxu0
        %v1109 = vadd.f32 %v1036, %v1108
        %1110 = vmatmul.bf16.gmra.mxu0 %v568
        %v1111 = vpop.f32.mrf.mxu0
        %v1112 = vadd.f32 %v1039, %v1111
        %v1113 = vpop.f32.mrf.mxu0
        %v1114 = vadd.f32 %v1041, %v1113
        %1115 = vmatmul.bf16.gmra.mxu0 %v574
        %v1116 = vpop.f32.mrf.mxu0
        %v1117 = vadd.f32 %v1044, %v1116
        %v1118 = vpop.f32.mrf.mxu0
        %v1119 = vadd.f32 %v1046, %v1118
        %1120 = vmatmul.bf16.gmra.mxu0 %v580
        %v1121 = vpop.f32.mrf.mxu0
        %v1122 = vadd.f32 %v1049, %v1121
        %v1123 = vpop.f32.mrf.mxu0
        %v1124 = vadd.f32 %v1051, %v1123
        %1125 = vmatmul.bf16.gmra.mxu0 %v586
        %v1126 = vpop.f32.mrf.mxu0
        %v1127 = vadd.f32 %v1054, %v1126
        %v1128 = vpop.f32.mrf.mxu0
        %v1129 = vadd.f32 %v1056, %v1128
        %1130 = vmatmul.bf16.gmra.mxu0 %v592
        %v1131 = vpop.f32.mrf.mxu0
        %v1132 = vadd.f32 %v1059, %v1131
        %v1133 = vpop.f32.mrf.mxu0
        %v1134 = vadd.f32 %v1061, %v1133
        %1135 = vmatmul.bf16.gmra.mxu0 %v598
        %v1136 = vpop.f32.mrf.mxu0
        %v1137 = vadd.f32 %v1064, %v1136
        %v1138 = vpop.f32.mrf.mxu0
        %v1139 = vadd.f32 %v1066, %v1138
        %1140 = vmatmul.bf16.gmra.mxu0 %v604
        %v1141 = vpop.f32.mrf.mxu0
        %v1142 = vadd.f32 %v1069, %v1141
        %v1143 = vpop.f32.mrf.mxu0
        %v1144 = vadd.f32 %v1071, %v1143
        %1145 = vmatmul.bf16.gmra.mxu0 %v610
        %v1146 = vpop.f32.mrf.mxu0
        %v1147 = vadd.f32 %v1074, %v1146
        %v1148 = vpop.f32.mrf.mxu0
        %v1149 = vadd.f32 %v1076, %v1148
        %1150 = vmatmul.bf16.gmra.mxu0 %v616
        %v1151 = vpop.f32.mrf.mxu0
        %v1152 = vadd.f32 %v1079, %v1151
        %v1153 = vpop.f32.mrf.mxu0
        %1154 = vdwg.mxu0
        %1155 = vmatpush.bf16.msra.mxu0 %v936
        %1156 = vmatpush.bf16.msra.mxu0 %v935
        %1157 = vmatpush.bf16.msra.mxu0 %v934
        %1158 = vmatpush.bf16.msra.mxu0 %v933
        %1159 = vmatpush.bf16.msra.mxu0 %v932
        %1160 = vmatpush.bf16.msra.mxu0 %v931
        %1161 = vmatpush.bf16.msra.mxu0 %v930
        %1162 = vmatpush.bf16.msra.mxu0 %v929
        %1163 = vmatmul.bf16.gmra.mxu0 %v545
        %v1164 = vpop.f32.mrf.mxu0
        %v1165 = vadd.f32 %v1092, %v1164
        %v1166 = vpop.f32.mrf.mxu0
        %v1167 = vadd.f32 %v1094, %v1166
        %1168 = vmatmul.bf16.gmra.mxu0 %v551
        %v1169 = vpop.f32.mrf.mxu0
        %v1170 = vadd.f32 %v1097, %v1169
        %v1171 = vpop.f32.mrf.mxu0
        %v1172 = vadd.f32 %v1099, %v1171
        %1173 = vmatmul.bf16.gmra.mxu0 %v557
        %v1174 = vpop.f32.mrf.mxu0
        %v1175 = vadd.f32 %v1102, %v1174
        %v1176 = vpop.f32.mrf.mxu0
        %v1177 = vadd.f32 %v1104, %v1176
        %1178 = vmatmul.bf16.gmra.mxu0 %v563
        %v1179 = vpop.f32.mrf.mxu0
        %v1180 = vadd.f32 %v1107, %v1179
        %v1181 = vpop.f32.mrf.mxu0
        %v1182 = vadd.f32 %v1109, %v1181
        %1183 = vmatmul.bf16.gmra.mxu0 %v569
        %v1184 = vpop.f32.mrf.mxu0
        %v1185 = vadd.f32 %v1112, %v1184
        %v1186 = vpop.f32.mrf.mxu0
        %v1187 = vadd.f32 %v1114, %v1186
        %1188 = vmatmul.bf16.gmra.mxu0 %v575
        %v1189 = vpop.f32.mrf.mxu0
        %v1190 = vadd.f32 %v1117, %v1189
        %v1191 = vpop.f32.mrf.mxu0
        %v1192 = vadd.f32 %v1119, %v1191
        %1193 = vmatmul.bf16.gmra.mxu0 %v581
        %v1194 = vpop.f32.mrf.mxu0
        %v1195 = vadd.f32 %v1122, %v1194
        %v1196 = vpop.f32.mrf.mxu0
        %v1197 = vadd.f32 %v1124, %v1196
        %1198 = vmatmul.bf16.gmra.mxu0 %v587
        %v1199 = vpop.f32.mrf.mxu0
        %v1200 = vadd.f32 %v1127, %v1199
        %v1201 = vpop.f32.mrf.mxu0
        %v1202 = vadd.f32 %v1129, %v1201
        %1203 = vmatmul.bf16.gmra.mxu0 %v593
        %v1204 = vpop.f32.mrf.mxu0
        %v1205 = vadd.f32 %v1132, %v1204
        %v1206 = vpop.f32.mrf.mxu0
        %v1207 = vadd.f32 %v1134, %v1206
        %1208 = vmatmul.bf16.gmra.mxu0 %v599
        %v1209 = vpop.f32.mrf.mxu0
        %v1210 = vadd.f32 %v1137, %v1209
        %v1211 = vpop.f32.mrf.mxu0
        %v1212 = vadd.f32 %v1139, %v1211
        %1213 = vmatmul.bf16.gmra.mxu0 %v605
        %v1214 = vpop.f32.mrf.mxu0
        %v1215 = vadd.f32 %v1142, %v1214
        %v1216 = vpop.f32.mrf.mxu0
        %v1217 = vadd.f32 %v1144, %v1216
        %1218 = vmatmul.bf16.gmra.mxu0 %v611
        %v1219 = vpop.f32.mrf.mxu0
        %v1220 = vadd.f32 %v1147, %v1219
        %v1221 = vpop.f32.mrf.mxu0
        %v1222 = vadd.f32 %v1149, %v1221
        %1223 = vmatmul.bf16.gmra.mxu0 %v617
        %v1224 = vpop.f32.mrf.mxu0
        %v1225 = vadd.f32 %v1152, %v1224
        %v1226 = vpop.f32.mrf.mxu0
        %1227 = vdwg.mxu0
        %1228 = vmatpush.bf16.msra.mxu0 %v944
        %1229 = vmatpush.bf16.msra.mxu0 %v943
        %1230 = vmatpush.bf16.msra.mxu0 %v942
        %1231 = vmatpush.bf16.msra.mxu0 %v941
        %1232 = vmatpush.bf16.msra.mxu0 %v940
        %1233 = vmatpush.bf16.msra.mxu0 %v939
        %1234 = vmatpush.bf16.msra.mxu0 %v938
        %1235 = vmatpush.bf16.msra.mxu0 %v937
        %1236 = vmatmul.bf16.gmra.mxu0 %v546
        %v1237 = vpop.f32.mrf.mxu0
        %v1238 = vadd.f32 %v1165, %v1237
        %v1239 = vpop.f32.mrf.mxu0
        %v1240 = vadd.f32 %v1167, %v1239
        %1241 = vmatmul.bf16.gmra.mxu0 %v552
        %v1242 = vpop.f32.mrf.mxu0
        %v1243 = vadd.f32 %v1170, %v1242
        %v1244 = vpop.f32.mrf.mxu0
        %v1245 = vadd.f32 %v1172, %v1244
        %1246 = vmatmul.bf16.gmra.mxu0 %v558
        %v1247 = vpop.f32.mrf.mxu0
        %v1248 = vadd.f32 %v1175, %v1247
        %v1249 = vpop.f32.mrf.mxu0
        %v1250 = vadd.f32 %v1177, %v1249
        %1251 = vmatmul.bf16.gmra.mxu0 %v564
        %v1252 = vpop.f32.mrf.mxu0
        %v1253 = vadd.f32 %v1180, %v1252
        %v1254 = vpop.f32.mrf.mxu0
        %v1255 = vadd.f32 %v1182, %v1254
        %1256 = vmatmul.bf16.gmra.mxu0 %v570
        %v1257 = vpop.f32.mrf.mxu0
        %v1258 = vadd.f32 %v1185, %v1257
        %v1259 = vpop.f32.mrf.mxu0
        %v1260 = vadd.f32 %v1187, %v1259
        %1261 = vmatmul.bf16.gmra.mxu0 %v576
        %v1262 = vpop.f32.mrf.mxu0
        %v1263 = vadd.f32 %v1190, %v1262
        %v1264 = vpop.f32.mrf.mxu0
        %v1265 = vadd.f32 %v1192, %v1264
        %1266 = vmatmul.bf16.gmra.mxu0 %v582
        %v1267 = vpop.f32.mrf.mxu0
        %v1268 = vadd.f32 %v1195, %v1267
        %v1269 = vpop.f32.mrf.mxu0
        %v1270 = vadd.f32 %v1197, %v1269
        %1271 = vmatmul.bf16.gmra.mxu0 %v588
        %v1272 = vpop.f32.mrf.mxu0
        %v1273 = vadd.f32 %v1200, %v1272
        %v1274 = vpop.f32.mrf.mxu0
        %v1275 = vadd.f32 %v1202, %v1274
        %1276 = vmatmul.bf16.gmra.mxu0 %v594
        %v1277 = vpop.f32.mrf.mxu0
        %v1278 = vadd.f32 %v1205, %v1277
        %v1279 = vpop.f32.mrf.mxu0
        %v1280 = vadd.f32 %v1207, %v1279
        %1281 = vmatmul.bf16.gmra.mxu0 %v600
        %v1282 = vpop.f32.mrf.mxu0
        %v1283 = vadd.f32 %v1210, %v1282
        %v1284 = vpop.f32.mrf.mxu0
        %v1285 = vadd.f32 %v1212, %v1284
        %1286 = vmatmul.bf16.gmra.mxu0 %v606
        %v1287 = vpop.f32.mrf.mxu0
        %v1288 = vadd.f32 %v1215, %v1287
        %v1289 = vpop.f32.mrf.mxu0
        %v1290 = vadd.f32 %v1217, %v1289
        %1291 = vmatmul.bf16.gmra.mxu0 %v612
        %v1292 = vpop.f32.mrf.mxu0
        %v1293 = vadd.f32 %v1220, %v1292
        %v1294 = vpop.f32.mrf.mxu0
        %v1295 = vadd.f32 %v1222, %v1294
        %1296 = vmatmul.bf16.gmra.mxu0 %v618
        %v1297 = vpop.f32.mrf.mxu0
        %v1298 = vadd.f32 %v1225, %v1297
        %v1299 = vpop.f32.mrf.mxu0
        %1300 = vdwg.mxu0
        %1301 = vmatpush.bf16.msra.mxu0 %v952
        %1302 = vmatpush.bf16.msra.mxu0 %v951
        %1303 = vmatpush.bf16.msra.mxu0 %v950
        %1304 = vmatpush.bf16.msra.mxu0 %v949
        %1305 = vmatpush.bf16.msra.mxu0 %v948
        %1306 = vmatpush.bf16.msra.mxu0 %v947
        %1307 = vmatpush.bf16.msra.mxu0 %v946
        %1308 = vmatpush.bf16.msra.mxu0 %v945
        %1309 = vmatmul.bf16.gmra.mxu0 %v547
        %v1310 = vpop.f32.mrf.mxu0
        %v1311 = vadd.f32 %v1238, %v1310
        %v1312 = vpop.f32.mrf.mxu0
        %v1313 = vadd.f32 %v1240, %v1312
        %1314 = vmatmul.bf16.gmra.mxu0 %v553
        %v1315 = vpop.f32.mrf.mxu0
        %v1316 = vadd.f32 %v1243, %v1315
        %v1317 = vpop.f32.mrf.mxu0
        %v1318 = vadd.f32 %v1245, %v1317
        %1319 = vmatmul.bf16.gmra.mxu0 %v559
        %v1320 = vpop.f32.mrf.mxu0
        %v1321 = vadd.f32 %v1248, %v1320
        %v1322 = vpop.f32.mrf.mxu0
        %v1323 = vadd.f32 %v1250, %v1322
        %1324 = vmatmul.bf16.gmra.mxu0 %v565
        %v1325 = vpop.f32.mrf.mxu0
        %v1326 = vadd.f32 %v1253, %v1325
        %v1327 = vpop.f32.mrf.mxu0
        %v1328 = vadd.f32 %v1255, %v1327
        %1329 = vmatmul.bf16.gmra.mxu0 %v571
        %v1330 = vpop.f32.mrf.mxu0
        %v1331 = vadd.f32 %v1258, %v1330
        %v1332 = vpop.f32.mrf.mxu0
        %v1333 = vadd.f32 %v1260, %v1332
        %1334 = vmatmul.bf16.gmra.mxu0 %v577
        %v1335 = vpop.f32.mrf.mxu0
        %v1336 = vadd.f32 %v1263, %v1335
        %v1337 = vpop.f32.mrf.mxu0
        %v1338 = vadd.f32 %v1265, %v1337
        %1339 = vmatmul.bf16.gmra.mxu0 %v583
        %v1340 = vpop.f32.mrf.mxu0
        %v1341 = vadd.f32 %v1268, %v1340
        %v1342 = vpop.f32.mrf.mxu0
        %v1343 = vadd.f32 %v1270, %v1342
        %1344 = vmatmul.bf16.gmra.mxu0 %v589
        %v1345 = vpop.f32.mrf.mxu0
        %v1346 = vadd.f32 %v1273, %v1345
        %v1347 = vpop.f32.mrf.mxu0
        %v1348 = vadd.f32 %v1275, %v1347
        %1349 = vmatmul.bf16.gmra.mxu0 %v595
        %v1350 = vpop.f32.mrf.mxu0
        %v1351 = vadd.f32 %v1278, %v1350
        %v1352 = vpop.f32.mrf.mxu0
        %v1353 = vadd.f32 %v1280, %v1352
        %1354 = vmatmul.bf16.gmra.mxu0 %v601
        %v1355 = vpop.f32.mrf.mxu0
        %v1356 = vadd.f32 %v1283, %v1355
        %v1357 = vpop.f32.mrf.mxu0
        %v1358 = vadd.f32 %v1285, %v1357
        %1359 = vmatmul.bf16.gmra.mxu0 %v607
        %v1360 = vpop.f32.mrf.mxu0
        %v1361 = vadd.f32 %v1288, %v1360
        %v1362 = vpop.f32.mrf.mxu0
        %v1363 = vadd.f32 %v1290, %v1362
        %1364 = vmatmul.bf16.gmra.mxu0 %v613
        %v1365 = vpop.f32.mrf.mxu0
        %v1366 = vadd.f32 %v1293, %v1365
        %v1367 = vpop.f32.mrf.mxu0
        %v1368 = vadd.f32 %v1295, %v1367
        %1369 = vmatmul.bf16.gmra.mxu0 %v619
        %v1370 = vpop.f32.mrf.mxu0
        %v1371 = vadd.f32 %v1298, %v1370
        %v1372 = vpop.f32.mrf.mxu0
        %1373 = vdwg.mxu0
        %1374 = vmatpush.bf16.msra.mxu0 %v960
        %1375 = vmatpush.bf16.msra.mxu0 %v959
        %1376 = vmatpush.bf16.msra.mxu0 %v958
        %1377 = vmatpush.bf16.msra.mxu0 %v957
        %1378 = vmatpush.bf16.msra.mxu0 %v956
        %1379 = vmatpush.bf16.msra.mxu0 %v955
        %1380 = vmatpush.bf16.msra.mxu0 %v954
        %1381 = vmatpush.bf16.msra.mxu0 %v953
        %1382 = vmatmul.bf16.gmra.mxu0 %v548
        %v1383 = vpop.f32.mrf.mxu0
        %v1384 = vadd.f32 %v1311, %v1383
        %v1385 = vpop.f32.mrf.mxu0
        %v1386 = vadd.f32 %v1313, %v1385
        %1387 = vmatmul.bf16.gmra.mxu0 %v554
        %v1388 = vpop.f32.mrf.mxu0
        %v1389 = vadd.f32 %v1316, %v1388
        %v1390 = vpop.f32.mrf.mxu0
        %v1391 = vadd.f32 %v1318, %v1390
        %1392 = vmatmul.bf16.gmra.mxu0 %v560
        %v1393 = vpop.f32.mrf.mxu0
        %v1394 = vadd.f32 %v1321, %v1393
        %v1395 = vpop.f32.mrf.mxu0
        %v1396 = vadd.f32 %v1323, %v1395
        %1397 = vmatmul.bf16.gmra.mxu0 %v566
        %v1398 = vpop.f32.mrf.mxu0
        %v1399 = vadd.f32 %v1326, %v1398
        %v1400 = vpop.f32.mrf.mxu0
        %v1401 = vadd.f32 %v1328, %v1400
        %1402 = vmatmul.bf16.gmra.mxu0 %v572
        %v1403 = vpop.f32.mrf.mxu0
        %v1404 = vadd.f32 %v1331, %v1403
        %v1405 = vpop.f32.mrf.mxu0
        %v1406 = vadd.f32 %v1333, %v1405
        %1407 = vmatmul.bf16.gmra.mxu0 %v578
        %v1408 = vpop.f32.mrf.mxu0
        %v1409 = vadd.f32 %v1336, %v1408
        %v1410 = vpop.f32.mrf.mxu0
        %v1411 = vadd.f32 %v1338, %v1410
        %1412 = vmatmul.bf16.gmra.mxu0 %v584
        %v1413 = vpop.f32.mrf.mxu0
        %v1414 = vadd.f32 %v1341, %v1413
        %v1415 = vpop.f32.mrf.mxu0
        %v1416 = vadd.f32 %v1343, %v1415
        %1417 = vmatmul.bf16.gmra.mxu0 %v590
        %v1418 = vpop.f32.mrf.mxu0
        %v1419 = vadd.f32 %v1346, %v1418
        %v1420 = vpop.f32.mrf.mxu0
        %v1421 = vadd.f32 %v1348, %v1420
        %1422 = vmatmul.bf16.gmra.mxu0 %v596
        %v1423 = vpop.f32.mrf.mxu0
        %v1424 = vadd.f32 %v1351, %v1423
        %v1425 = vpop.f32.mrf.mxu0
        %v1426 = vadd.f32 %v1353, %v1425
        %1427 = vmatmul.bf16.gmra.mxu0 %v602
        %v1428 = vpop.f32.mrf.mxu0
        %v1429 = vadd.f32 %v1356, %v1428
        %v1430 = vpop.f32.mrf.mxu0
        %v1431 = vadd.f32 %v1358, %v1430
        %1432 = vmatmul.bf16.gmra.mxu0 %v608
        %v1433 = vpop.f32.mrf.mxu0
        %v1434 = vadd.f32 %v1361, %v1433
        %v1435 = vpop.f32.mrf.mxu0
        %v1436 = vadd.f32 %v1363, %v1435
        %1437 = vmatmul.bf16.gmra.mxu0 %v614
        %v1438 = vpop.f32.mrf.mxu0
        %v1439 = vadd.f32 %v1366, %v1438
        %v1440 = vpop.f32.mrf.mxu0
        %v1441 = vadd.f32 %v1368, %v1440
        %1442 = vmatmul.bf16.gmra.mxu0 %v620
        %v1443 = vpop.f32.mrf.mxu0
        %v1444 = vadd.f32 %v1371, %v1443
        %v1445 = vpop.f32.mrf.mxu0
        %1446 = vdwg.mxu0
        %v1447 = vmul.f32 %v1384, 0.5
        %v1448 = vmul.f32 %v1386, 0.5
        %v1449 = vmul.f32 %v1389, 0.5
        %v1450 = vmul.f32 %v1391, 0.5
        %v1451 = vmul.f32 %v1394, 0.5
        %v1452 = vmul.f32 %v1396, 0.5
        %v1453 = vmul.f32 %v1399, 0.5
        %v1454 = vmul.f32 %v1401, 0.5
        %v1455 = vmul.f32 %v1404, 0.5
        %v1456 = vmul.f32 %v1406, 0.5
        %v1457 = vmul.f32 %v1409, 0.5
        %v1458 = vmul.f32 %v1411, 0.5
        %v1459 = vmul.f32 %v1414, 0.5
        %v1460 = vmul.f32 %v1416, 0.5
        %v1461 = vmul.f32 %v1419, 0.5
        %v1462 = vmul.f32 %v1421, 0.5
        %v1463 = vmul.f32 %v1424, 0.5
        %v1464 = vmul.f32 %v1426, 0.5
        %v1465 = vmul.f32 %v1429, 0.5
        %v1466 = vmul.f32 %v1431, 0.5
        %v1467 = vmul.f32 %v1434, 0.5
        %v1468 = vmul.f32 %v1436, 0.5
        %v1469 = vmul.f32 %v1439, 0.5
        %v1470 = vmul.f32 %v1441, 0.5
        %v1471 = vmul.f32 %v1444, 0.5
        %v1472 = vmul.f32 %v1384, 0.70710677
        %v1473 = vmul.f32 %v1386, 0.70710677
        %v1474 = vmul.f32 %v1389, 0.70710677
        %v1475 = vmul.f32 %v1391, 0.70710677
        %v1476 = vmul.f32 %v1394, 0.70710677
        %v1477 = vmul.f32 %v1396, 0.70710677
        %v1478 = vmul.f32 %v1399, 0.70710677
        %v1479 = vmul.f32 %v1401, 0.70710677
        %v1480 = vmul.f32 %v1404, 0.70710677
        %v1481 = vmul.f32 %v1406, 0.70710677
        %v1482 = vmul.f32 %v1409, 0.70710677
        %v1483 = vmul.f32 %v1411, 0.70710677
        %v1484 = vmul.f32 %v1414, 0.70710677
        %v1485 = vmul.f32 %v1416, 0.70710677
        %v1486 = vmul.f32 %v1419, 0.70710677
        %v1487 = vmul.f32 %v1421, 0.70710677
        %v1488 = vmul.f32 %v1424, 0.70710677
        %v1489 = vmul.f32 %v1426, 0.70710677
        %v1490 = vmul.f32 %v1429, 0.70710677
        %v1491 = vmul.f32 %v1431, 0.70710677
        %v1492 = vmul.f32 %v1434, 0.70710677
        %v1493 = vmul.f32 %v1436, 0.70710677
        %v1494 = vmul.f32 %v1439, 0.70710677
        %v1495 = vmul.f32 %v1441, 0.70710677
        %v1496 = vmul.f32 %v1444, 0.70710677
        %v1497 = vand.u32 2147483647, %v1472
        %v1498 = vand.u32 2147483647, %v1473
        %v1499 = vand.u32 2147483647, %v1474
        %v1500 = vand.u32 2147483647, %v1475
        %v1501 = vand.u32 2147483647, %v1476
        %v1502 = vand.u32 2147483647, %v1477
        %v1503 = vand.u32 2147483647, %v1478
        %v1504 = vand.u32 2147483647, %v1479
        %v1505 = vand.u32 2147483647, %v1480
        %v1506 = vand.u32 2147483647, %v1481
        %v1507 = vand.u32 2147483647, %v1482
        %v1508 = vand.u32 2147483647, %v1483
        %v1509 = vand.u32 2147483647, %v1484
        %v1510 = vand.u32 2147483647, %v1485
        %v1511 = vand.u32 2147483647, %v1486
        %v1512 = vand.u32 2147483647, %v1487
        %v1513 = vand.u32 2147483647, %v1488
        %v1514 = vand.u32 2147483647, %v1489
        %v1515 = vand.u32 2147483647, %v1490
        %v1516 = vand.u32 2147483647, %v1491
        %v1517 = vand.u32 2147483647, %v1492
        %v1518 = vand.u32 2147483647, %v1493
        %v1519 = vand.u32 2147483647, %v1494
        %v1520 = vand.u32 2147483647, %v1495
        %v1521 = vand.u32 2147483647, %v1496
        %v1522 = vmul.f32 %v1497, 0.3275911
        %v1523 = vmul.f32 %v1498, 0.3275911
        %v1524 = vmul.f32 %v1499, 0.3275911
        %v1525 = vmul.f32 %v1500, 0.3275911
        %v1526 = vmul.f32 %v1501, 0.3275911
        %v1527 = vmul.f32 %v1502, 0.3275911
        %v1528 = vmul.f32 %v1503, 0.3275911
        %v1529 = vmul.f32 %v1504, 0.3275911
        %v1530 = vmul.f32 %v1505, 0.3275911
        %v1531 = vmul.f32 %v1506, 0.3275911
        %v1532 = vmul.f32 %v1507, 0.3275911
        %v1533 = vmul.f32 %v1508, 0.3275911
        %v1534 = vmul.f32 %v1509, 0.3275911
        %v1535 = vmul.f32 %v1510, 0.3275911
        %v1536 = vmul.f32 %v1511, 0.3275911
        %v1537 = vmul.f32 %v1512, 0.3275911
        %v1538 = vmul.f32 %v1513, 0.3275911
        %v1539 = vmul.f32 %v1514, 0.3275911
        %v1540 = vmul.f32 %v1515, 0.3275911
        %v1541 = vmul.f32 %v1516, 0.3275911
        %v1542 = vmul.f32 %v1517, 0.3275911
        %v1543 = vmul.f32 %v1518, 0.3275911
        %v1544 = vmul.f32 %v1519, 0.3275911
        %v1545 = vmul.f32 %v1520, 0.3275911
        %v1546 = vmul.f32 %v1521, 0.3275911
        %v1547 = vadd.f32 %v1522, 1.0
        %v1548 = vadd.f32 %v1523, 1.0
        %v1549 = vadd.f32 %v1524, 1.0
        %v1550 = vadd.f32 %v1525, 1.0
        %v1551 = vadd.f32 %v1526, 1.0
        %v1552 = vadd.f32 %v1527, 1.0
        %v1553 = vadd.f32 %v1528, 1.0
        %v1554 = vadd.f32 %v1529, 1.0
        %v1555 = vadd.f32 %v1530, 1.0
        %v1556 = vadd.f32 %v1531, 1.0
        %v1557 = vadd.f32 %v1532, 1.0
        %v1558 = vadd.f32 %v1533, 1.0
        %v1559 = vadd.f32 %v1534, 1.0
        %v1560 = vadd.f32 %v1535, 1.0
        %v1561 = vadd.f32 %v1536, 1.0
        %v1562 = vadd.f32 %v1537, 1.0
        %v1563 = vadd.f32 %v1538, 1.0
        %v1564 = vadd.f32 %v1539, 1.0
        %v1565 = vadd.f32 %v1540, 1.0
        %v1566 = vadd.f32 %v1541, 1.0
        %v1567 = vadd.f32 %v1542, 1.0
        %v1568 = vadd.f32 %v1543, 1.0
        %v1569 = vadd.f32 %v1544, 1.0
        %v1570 = vadd.f32 %v1545, 1.0
        %v1571 = vadd.f32 %v1546, 1.0
        %v1572 = vrcp.pop %v1547
        %v1573 = vmul.f32 %v1547, %v1572
        %v1574 = vsub.f32 1.0, %v1573
        %v1575 = vmul.f32 %v1572, %v1574
        %v1576 = vadd.f32 %v1572, %v1575
        %vm1577 = vweird.f32 %v1547
        %vm1578 = vweird.f32 %v1572
        %vm1579 = vmor %vm1577, %vm1578
        %v1580 = vsel %vm1579, %v1572, %v1576
        %v1581 = vand.u32 2147483647, %v1547
        %vm1582 = vcmp.eq.f32.partialorder %v1581, 8.507059e+37
        %v1583 = vand.u32 %v1547, 2147483648
        %v1584 = vor.u32 1.1754944e-38, %v1583
        %v1585 = vsel %vm1582, %v1584, %v1580
        %v1586 = vmul.f32 1.0, %v1585
        %v1587 = vrcp.pop %v1548
        %v1588 = vmul.f32 %v1548, %v1587
        %v1589 = vsub.f32 1.0, %v1588
        %v1590 = vmul.f32 %v1587, %v1589
        %v1591 = vadd.f32 %v1587, %v1590
        %vm1592 = vweird.f32 %v1548
        %vm1593 = vweird.f32 %v1587
        %vm1594 = vmor %vm1592, %vm1593
        %v1595 = vsel %vm1594, %v1587, %v1591
        %v1596 = vand.u32 2147483647, %v1548
        %vm1597 = vcmp.eq.f32.partialorder %v1596, 8.507059e+37
        %v1598 = vand.u32 %v1548, 2147483648
        %v1599 = vor.u32 1.1754944e-38, %v1598
        %v1600 = vsel %vm1597, %v1599, %v1595
        %v1601 = vmul.f32 1.0, %v1600
        %v1602 = vrcp.pop %v1549
        %v1603 = vmul.f32 %v1549, %v1602
        %v1604 = vsub.f32 1.0, %v1603
        %v1605 = vmul.f32 %v1602, %v1604
        %v1606 = vadd.f32 %v1602, %v1605
        %vm1607 = vweird.f32 %v1549
        %vm1608 = vweird.f32 %v1602
        %vm1609 = vmor %vm1607, %vm1608
        %v1610 = vsel %vm1609, %v1602, %v1606
        %v1611 = vand.u32 2147483647, %v1549
        %vm1612 = vcmp.eq.f32.partialorder %v1611, 8.507059e+37
        %v1613 = vand.u32 %v1549, 2147483648
        %v1614 = vor.u32 1.1754944e-38, %v1613
        %v1615 = vsel %vm1612, %v1614, %v1610
        %v1616 = vmul.f32 1.0, %v1615
        %v1617 = vrcp.pop %v1550
        %v1618 = vmul.f32 %v1550, %v1617
        %v1619 = vsub.f32 1.0, %v1618
        %v1620 = vmul.f32 %v1617, %v1619
        %v1621 = vadd.f32 %v1617, %v1620
        %vm1622 = vweird.f32 %v1550
        %vm1623 = vweird.f32 %v1617
        %vm1624 = vmor %vm1622, %vm1623
        %v1625 = vsel %vm1624, %v1617, %v1621
        %v1626 = vand.u32 2147483647, %v1550
        %vm1627 = vcmp.eq.f32.partialorder %v1626, 8.507059e+37
        %v1628 = vand.u32 %v1550, 2147483648
        %v1629 = vor.u32 1.1754944e-38, %v1628
        %v1630 = vsel %vm1627, %v1629, %v1625
        %v1631 = vmul.f32 1.0, %v1630
        %v1632 = vrcp.pop %v1551
        %v1633 = vmul.f32 %v1551, %v1632
        %v1634 = vsub.f32 1.0, %v1633
        %v1635 = vmul.f32 %v1632, %v1634
        %v1636 = vadd.f32 %v1632, %v1635
        %vm1637 = vweird.f32 %v1551
        %vm1638 = vweird.f32 %v1632
        %vm1639 = vmor %vm1637, %vm1638
        %v1640 = vsel %vm1639, %v1632, %v1636
        %v1641 = vand.u32 2147483647, %v1551
        %vm1642 = vcmp.eq.f32.partialorder %v1641, 8.507059e+37
        %v1643 = vand.u32 %v1551, 2147483648
        %v1644 = vor.u32 1.1754944e-38, %v1643
        %v1645 = vsel %vm1642, %v1644, %v1640
        %v1646 = vmul.f32 1.0, %v1645
        %v1647 = vrcp.pop %v1552
        %v1648 = vmul.f32 %v1552, %v1647
        %v1649 = vsub.f32 1.0, %v1648
        %v1650 = vmul.f32 %v1647, %v1649
        %v1651 = vadd.f32 %v1647, %v1650
        %vm1652 = vweird.f32 %v1552
        %vm1653 = vweird.f32 %v1647
        %vm1654 = vmor %vm1652, %vm1653
        %v1655 = vsel %vm1654, %v1647, %v1651
        %v1656 = vand.u32 2147483647, %v1552
        %vm1657 = vcmp.eq.f32.partialorder %v1656, 8.507059e+37
        %v1658 = vand.u32 %v1552, 2147483648
        %v1659 = vor.u32 1.1754944e-38, %v1658
        %v1660 = vsel %vm1657, %v1659, %v1655
        %v1661 = vmul.f32 1.0, %v1660
        %v1662 = vrcp.pop %v1553
        %v1663 = vmul.f32 %v1553, %v1662
        %v1664 = vsub.f32 1.0, %v1663
        %v1665 = vmul.f32 %v1662, %v1664
        %v1666 = vadd.f32 %v1662, %v1665
        %vm1667 = vweird.f32 %v1553
        %vm1668 = vweird.f32 %v1662
        %vm1669 = vmor %vm1667, %vm1668
        %v1670 = vsel %vm1669, %v1662, %v1666
        %v1671 = vand.u32 2147483647, %v1553
        %vm1672 = vcmp.eq.f32.partialorder %v1671, 8.507059e+37
        %v1673 = vand.u32 %v1553, 2147483648
        %v1674 = vor.u32 1.1754944e-38, %v1673
        %v1675 = vsel %vm1672, %v1674, %v1670
        %v1676 = vmul.f32 1.0, %v1675
        %v1677 = vrcp.pop %v1554
        %v1678 = vmul.f32 %v1554, %v1677
        %v1679 = vsub.f32 1.0, %v1678
        %v1680 = vmul.f32 %v1677, %v1679
        %v1681 = vadd.f32 %v1677, %v1680
        %vm1682 = vweird.f32 %v1554
        %vm1683 = vweird.f32 %v1677
        %vm1684 = vmor %vm1682, %vm1683
        %v1685 = vsel %vm1684, %v1677, %v1681
        %v1686 = vand.u32 2147483647, %v1554
        %vm1687 = vcmp.eq.f32.partialorder %v1686, 8.507059e+37
        %v1688 = vand.u32 %v1554, 2147483648
        %v1689 = vor.u32 1.1754944e-38, %v1688
        %v1690 = vsel %vm1687, %v1689, %v1685
        %v1691 = vmul.f32 1.0, %v1690
        %v1692 = vrcp.pop %v1555
        %v1693 = vmul.f32 %v1555, %v1692
        %v1694 = vsub.f32 1.0, %v1693
        %v1695 = vmul.f32 %v1692, %v1694
        %v1696 = vadd.f32 %v1692, %v1695
        %vm1697 = vweird.f32 %v1555
        %vm1698 = vweird.f32 %v1692
        %vm1699 = vmor %vm1697, %vm1698
        %v1700 = vsel %vm1699, %v1692, %v1696
        %v1701 = vand.u32 2147483647, %v1555
        %vm1702 = vcmp.eq.f32.partialorder %v1701, 8.507059e+37
        %v1703 = vand.u32 %v1555, 2147483648
        %v1704 = vor.u32 1.1754944e-38, %v1703
        %v1705 = vsel %vm1702, %v1704, %v1700
        %v1706 = vmul.f32 1.0, %v1705
        %v1707 = vrcp.pop %v1556
        %v1708 = vmul.f32 %v1556, %v1707
        %v1709 = vsub.f32 1.0, %v1708
        %v1710 = vmul.f32 %v1707, %v1709
        %v1711 = vadd.f32 %v1707, %v1710
        %vm1712 = vweird.f32 %v1556
        %vm1713 = vweird.f32 %v1707
        %vm1714 = vmor %vm1712, %vm1713
        %v1715 = vsel %vm1714, %v1707, %v1711
        %v1716 = vand.u32 2147483647, %v1556
        %vm1717 = vcmp.eq.f32.partialorder %v1716, 8.507059e+37
        %v1718 = vand.u32 %v1556, 2147483648
        %v1719 = vor.u32 1.1754944e-38, %v1718
        %v1720 = vsel %vm1717, %v1719, %v1715
        %v1721 = vmul.f32 1.0, %v1720
        %v1722 = vrcp.pop %v1557
        %v1723 = vmul.f32 %v1557, %v1722
        %v1724 = vsub.f32 1.0, %v1723
        %v1725 = vmul.f32 %v1722, %v1724
        %v1726 = vadd.f32 %v1722, %v1725
        %vm1727 = vweird.f32 %v1557
        %vm1728 = vweird.f32 %v1722
        %vm1729 = vmor %vm1727, %vm1728
        %v1730 = vsel %vm1729, %v1722, %v1726
        %v1731 = vand.u32 2147483647, %v1557
        %vm1732 = vcmp.eq.f32.partialorder %v1731, 8.507059e+37
        %v1733 = vand.u32 %v1557, 2147483648
        %v1734 = vor.u32 1.1754944e-38, %v1733
        %v1735 = vsel %vm1732, %v1734, %v1730
        %v1736 = vmul.f32 1.0, %v1735
        %v1737 = vrcp.pop %v1558
        %v1738 = vmul.f32 %v1558, %v1737
        %v1739 = vsub.f32 1.0, %v1738
        %v1740 = vmul.f32 %v1737, %v1739
        %v1741 = vadd.f32 %v1737, %v1740
        %vm1742 = vweird.f32 %v1558
        %vm1743 = vweird.f32 %v1737
        %vm1744 = vmor %vm1742, %vm1743
        %v1745 = vsel %vm1744, %v1737, %v1741
        %v1746 = vand.u32 2147483647, %v1558
        %vm1747 = vcmp.eq.f32.partialorder %v1746, 8.507059e+37
        %v1748 = vand.u32 %v1558, 2147483648
        %v1749 = vor.u32 1.1754944e-38, %v1748
        %v1750 = vsel %vm1747, %v1749, %v1745
        %v1751 = vmul.f32 1.0, %v1750
        %v1752 = vrcp.pop %v1559
        %v1753 = vmul.f32 %v1559, %v1752
        %v1754 = vsub.f32 1.0, %v1753
        %v1755 = vmul.f32 %v1752, %v1754
        %v1756 = vadd.f32 %v1752, %v1755
        %vm1757 = vweird.f32 %v1559
        %vm1758 = vweird.f32 %v1752
        %vm1759 = vmor %vm1757, %vm1758
        %v1760 = vsel %vm1759, %v1752, %v1756
        %v1761 = vand.u32 2147483647, %v1559
        %vm1762 = vcmp.eq.f32.partialorder %v1761, 8.507059e+37
        %v1763 = vand.u32 %v1559, 2147483648
        %v1764 = vor.u32 1.1754944e-38, %v1763
        %v1765 = vsel %vm1762, %v1764, %v1760
        %v1766 = vmul.f32 1.0, %v1765
        %v1767 = vrcp.pop %v1560
        %v1768 = vmul.f32 %v1560, %v1767
        %v1769 = vsub.f32 1.0, %v1768
        %v1770 = vmul.f32 %v1767, %v1769
        %v1771 = vadd.f32 %v1767, %v1770
        %vm1772 = vweird.f32 %v1560
        %vm1773 = vweird.f32 %v1767
        %vm1774 = vmor %vm1772, %vm1773
        %v1775 = vsel %vm1774, %v1767, %v1771
        %v1776 = vand.u32 2147483647, %v1560
        %vm1777 = vcmp.eq.f32.partialorder %v1776, 8.507059e+37
        %v1778 = vand.u32 %v1560, 2147483648
        %v1779 = vor.u32 1.1754944e-38, %v1778
        %v1780 = vsel %vm1777, %v1779, %v1775
        %v1781 = vmul.f32 1.0, %v1780
        %v1782 = vrcp.pop %v1561
        %v1783 = vmul.f32 %v1561, %v1782
        %v1784 = vsub.f32 1.0, %v1783
        %v1785 = vmul.f32 %v1782, %v1784
        %v1786 = vadd.f32 %v1782, %v1785
        %vm1787 = vweird.f32 %v1561
        %vm1788 = vweird.f32 %v1782
        %vm1789 = vmor %vm1787, %vm1788
        %v1790 = vsel %vm1789, %v1782, %v1786
        %v1791 = vand.u32 2147483647, %v1561
        %vm1792 = vcmp.eq.f32.partialorder %v1791, 8.507059e+37
        %v1793 = vand.u32 %v1561, 2147483648
        %v1794 = vor.u32 1.1754944e-38, %v1793
        %v1795 = vsel %vm1792, %v1794, %v1790
        %v1796 = vmul.f32 1.0, %v1795
        %v1797 = vrcp.pop %v1562
        %v1798 = vmul.f32 %v1562, %v1797
        %v1799 = vsub.f32 1.0, %v1798
        %v1800 = vmul.f32 %v1797, %v1799
        %v1801 = vadd.f32 %v1797, %v1800
        %vm1802 = vweird.f32 %v1562
        %vm1803 = vweird.f32 %v1797
        %vm1804 = vmor %vm1802, %vm1803
        %v1805 = vsel %vm1804, %v1797, %v1801
        %v1806 = vand.u32 2147483647, %v1562
        %vm1807 = vcmp.eq.f32.partialorder %v1806, 8.507059e+37
        %v1808 = vand.u32 %v1562, 2147483648
        %v1809 = vor.u32 1.1754944e-38, %v1808
        %v1810 = vsel %vm1807, %v1809, %v1805
        %v1811 = vmul.f32 1.0, %v1810
        %v1812 = vrcp.pop %v1563
        %v1813 = vmul.f32 %v1563, %v1812
        %v1814 = vsub.f32 1.0, %v1813
        %v1815 = vmul.f32 %v1812, %v1814
        %v1816 = vadd.f32 %v1812, %v1815
        %vm1817 = vweird.f32 %v1563
        %vm1818 = vweird.f32 %v1812
        %vm1819 = vmor %vm1817, %vm1818
        %v1820 = vsel %vm1819, %v1812, %v1816
        %v1821 = vand.u32 2147483647, %v1563
        %vm1822 = vcmp.eq.f32.partialorder %v1821, 8.507059e+37
        %v1823 = vand.u32 %v1563, 2147483648
        %v1824 = vor.u32 1.1754944e-38, %v1823
        %v1825 = vsel %vm1822, %v1824, %v1820
        %v1826 = vmul.f32 1.0, %v1825
        %v1827 = vrcp.pop %v1564
        %v1828 = vmul.f32 %v1564, %v1827
        %v1829 = vsub.f32 1.0, %v1828
        %v1830 = vmul.f32 %v1827, %v1829
        %v1831 = vadd.f32 %v1827, %v1830
        %vm1832 = vweird.f32 %v1564
        %vm1833 = vweird.f32 %v1827
        %vm1834 = vmor %vm1832, %vm1833
        %v1835 = vsel %vm1834, %v1827, %v1831
        %v1836 = vand.u32 2147483647, %v1564
        %vm1837 = vcmp.eq.f32.partialorder %v1836, 8.507059e+37
        %v1838 = vand.u32 %v1564, 2147483648
        %v1839 = vor.u32 1.1754944e-38, %v1838
        %v1840 = vsel %vm1837, %v1839, %v1835
        %v1841 = vmul.f32 1.0, %v1840
        %v1842 = vrcp.pop %v1565
        %v1843 = vmul.f32 %v1565, %v1842
        %v1844 = vsub.f32 1.0, %v1843
        %v1845 = vmul.f32 %v1842, %v1844
        %v1846 = vadd.f32 %v1842, %v1845
        %vm1847 = vweird.f32 %v1565
        %vm1848 = vweird.f32 %v1842
        %vm1849 = vmor %vm1847, %vm1848
        %v1850 = vsel %vm1849, %v1842, %v1846
        %v1851 = vand.u32 2147483647, %v1565
        %vm1852 = vcmp.eq.f32.partialorder %v1851, 8.507059e+37
        %v1853 = vand.u32 %v1565, 2147483648
        %v1854 = vor.u32 1.1754944e-38, %v1853
        %v1855 = vsel %vm1852, %v1854, %v1850
        %v1856 = vmul.f32 1.0, %v1855
        %v1857 = vrcp.pop %v1566
        %v1858 = vmul.f32 %v1566, %v1857
        %v1859 = vsub.f32 1.0, %v1858
        %v1860 = vmul.f32 %v1857, %v1859
        %v1861 = vadd.f32 %v1857, %v1860
        %vm1862 = vweird.f32 %v1566
        %vm1863 = vweird.f32 %v1857
        %vm1864 = vmor %vm1862, %vm1863
        %v1865 = vsel %vm1864, %v1857, %v1861
        %v1866 = vand.u32 2147483647, %v1566
        %vm1867 = vcmp.eq.f32.partialorder %v1866, 8.507059e+37
        %v1868 = vand.u32 %v1566, 2147483648
        %v1869 = vor.u32 1.1754944e-38, %v1868
        %v1870 = vsel %vm1867, %v1869, %v1865
        %v1871 = vmul.f32 1.0, %v1870
        %v1872 = vrcp.pop %v1567
        %v1873 = vmul.f32 %v1567, %v1872
        %v1874 = vsub.f32 1.0, %v1873
        %v1875 = vmul.f32 %v1872, %v1874
        %v1876 = vadd.f32 %v1872, %v1875
        %vm1877 = vweird.f32 %v1567
        %vm1878 = vweird.f32 %v1872
        %vm1879 = vmor %vm1877, %vm1878
        %v1880 = vsel %vm1879, %v1872, %v1876
        %v1881 = vand.u32 2147483647, %v1567
        %vm1882 = vcmp.eq.f32.partialorder %v1881, 8.507059e+37
        %v1883 = vand.u32 %v1567, 2147483648
        %v1884 = vor.u32 1.1754944e-38, %v1883
        %v1885 = vsel %vm1882, %v1884, %v1880
        %v1886 = vmul.f32 1.0, %v1885
        %v1887 = vrcp.pop %v1568
        %v1888 = vmul.f32 %v1568, %v1887
        %v1889 = vsub.f32 1.0, %v1888
        %v1890 = vmul.f32 %v1887, %v1889
        %v1891 = vadd.f32 %v1887, %v1890
        %vm1892 = vweird.f32 %v1568
        %vm1893 = vweird.f32 %v1887
        %vm1894 = vmor %vm1892, %vm1893
        %v1895 = vsel %vm1894, %v1887, %v1891
        %v1896 = vand.u32 2147483647, %v1568
        %vm1897 = vcmp.eq.f32.partialorder %v1896, 8.507059e+37
        %v1898 = vand.u32 %v1568, 2147483648
        %v1899 = vor.u32 1.1754944e-38, %v1898
        %v1900 = vsel %vm1897, %v1899, %v1895
        %v1901 = vmul.f32 1.0, %v1900
        %v1902 = vrcp.pop %v1569
        %v1903 = vmul.f32 %v1569, %v1902
        %v1904 = vsub.f32 1.0, %v1903
        %v1905 = vmul.f32 %v1902, %v1904
        %v1906 = vadd.f32 %v1902, %v1905
        %vm1907 = vweird.f32 %v1569
        %vm1908 = vweird.f32 %v1902
        %vm1909 = vmor %vm1907, %vm1908
        %v1910 = vsel %vm1909, %v1902, %v1906
        %v1911 = vand.u32 2147483647, %v1569
        %vm1912 = vcmp.eq.f32.partialorder %v1911, 8.507059e+37
        %v1913 = vand.u32 %v1569, 2147483648
        %v1914 = vor.u32 1.1754944e-38, %v1913
        %v1915 = vsel %vm1912, %v1914, %v1910
        %v1916 = vmul.f32 1.0, %v1915
        %v1917 = vrcp.pop %v1570
        %v1918 = vmul.f32 %v1570, %v1917
        %v1919 = vsub.f32 1.0, %v1918
        %v1920 = vmul.f32 %v1917, %v1919
        %v1921 = vadd.f32 %v1917, %v1920
        %vm1922 = vweird.f32 %v1570
        %vm1923 = vweird.f32 %v1917
        %vm1924 = vmor %vm1922, %vm1923
        %v1925 = vsel %vm1924, %v1917, %v1921
        %v1926 = vand.u32 2147483647, %v1570
        %vm1927 = vcmp.eq.f32.partialorder %v1926, 8.507059e+37
        %v1928 = vand.u32 %v1570, 2147483648
        %v1929 = vor.u32 1.1754944e-38, %v1928
        %v1930 = vsel %vm1927, %v1929, %v1925
        %v1931 = vmul.f32 1.0, %v1930
        %v1932 = vrcp.pop %v1571
        %v1933 = vmul.f32 %v1571, %v1932
        %v1934 = vsub.f32 1.0, %v1933
        %v1935 = vmul.f32 %v1932, %v1934
        %v1936 = vadd.f32 %v1932, %v1935
        %vm1937 = vweird.f32 %v1571
        %vm1938 = vweird.f32 %v1932
        %vm1939 = vmor %vm1937, %vm1938
        %v1940 = vsel %vm1939, %v1932, %v1936
        %v1941 = vand.u32 2147483647, %v1571
        %vm1942 = vcmp.eq.f32.partialorder %v1941, 8.507059e+37
        %v1943 = vand.u32 %v1571, 2147483648
        %v1944 = vor.u32 1.1754944e-38, %v1943
        %v1945 = vsel %vm1942, %v1944, %v1940
        %v1946 = vmul.f32 1.0, %v1945
        %v1947 = vmul.f32 %v1586, 1.0614054
        %v1948 = vmul.f32 %v1601, 1.0614054
        %v1949 = vmul.f32 %v1616, 1.0614054
        %v1950 = vmul.f32 %v1631, 1.0614054
        %v1951 = vmul.f32 %v1646, 1.0614054
        %v1952 = vmul.f32 %v1661, 1.0614054
        %v1953 = vmul.f32 %v1676, 1.0614054
        %v1954 = vmul.f32 %v1691, 1.0614054
        %v1955 = vmul.f32 %v1706, 1.0614054
        %v1956 = vmul.f32 %v1721, 1.0614054
        %v1957 = vmul.f32 %v1736, 1.0614054
        %v1958 = vmul.f32 %v1751, 1.0614054
        %v1959 = vmul.f32 %v1766, 1.0614054
        %v1960 = vmul.f32 %v1781, 1.0614054
        %v1961 = vmul.f32 %v1796, 1.0614054
        %v1962 = vmul.f32 %v1811, 1.0614054
        %v1963 = vmul.f32 %v1826, 1.0614054
        %v1964 = vmul.f32 %v1841, 1.0614054
        %v1965 = vmul.f32 %v1856, 1.0614054
        %v1966 = vmul.f32 %v1871, 1.0614054
        %v1967 = vmul.f32 %v1886, 1.0614054
        %v1968 = vmul.f32 %v1901, 1.0614054
        %v1969 = vmul.f32 %v1916, 1.0614054
        %v1970 = vmul.f32 %v1931, 1.0614054
        %v1971 = vmul.f32 %v1946, 1.0614054
        %v1972 = vadd.f32 %v1947, -1.4531521
        %v1973 = vadd.f32 %v1948, -1.4531521
        %v1974 = vadd.f32 %v1949, -1.4531521
        %v1975 = vadd.f32 %v1950, -1.4531521
        %v1976 = vadd.f32 %v1951, -1.4531521
        %v1977 = vadd.f32 %v1952, -1.4531521
        %v1978 = vadd.f32 %v1953, -1.4531521
        %v1979 = vadd.f32 %v1954, -1.4531521
        %v1980 = vadd.f32 %v1955, -1.4531521
        %v1981 = vadd.f32 %v1956, -1.4531521
        %v1982 = vadd.f32 %v1957, -1.4531521
        %v1983 = vadd.f32 %v1958, -1.4531521
        %v1984 = vadd.f32 %v1959, -1.4531521
        %v1985 = vadd.f32 %v1960, -1.4531521
        %v1986 = vadd.f32 %v1961, -1.4531521
        %v1987 = vadd.f32 %v1962, -1.4531521
        %v1988 = vadd.f32 %v1963, -1.4531521
        %v1989 = vadd.f32 %v1964, -1.4531521
        %v1990 = vadd.f32 %v1965, -1.4531521
        %v1991 = vadd.f32 %v1966, -1.4531521
        %v1992 = vadd.f32 %v1967, -1.4531521
        %v1993 = vadd.f32 %v1968, -1.4531521
        %v1994 = vadd.f32 %v1969, -1.4531521
        %v1995 = vadd.f32 %v1970, -1.4531521
        %v1996 = vadd.f32 %v1971, -1.4531521
        %v1997 = vmul.f32 %v1586, %v1972
        %v1998 = vmul.f32 %v1601, %v1973
        %v1999 = vmul.f32 %v1616, %v1974
        %v2000 = vmul.f32 %v1631, %v1975
        %v2001 = vmul.f32 %v1646, %v1976
        %v2002 = vmul.f32 %v1661, %v1977
        %v2003 = vmul.f32 %v1676, %v1978
        %v2004 = vmul.f32 %v1691, %v1979
        %v2005 = vmul.f32 %v1706, %v1980
        %v2006 = vmul.f32 %v1721, %v1981
        %v2007 = vmul.f32 %v1736, %v1982
        %v2008 = vmul.f32 %v1751, %v1983
        %v2009 = vmul.f32 %v1766, %v1984
        %v2010 = vmul.f32 %v1781, %v1985
        %v2011 = vmul.f32 %v1796, %v1986
        %v2012 = vmul.f32 %v1811, %v1987
        %v2013 = vmul.f32 %v1826, %v1988
        %v2014 = vmul.f32 %v1841, %v1989
        %v2015 = vmul.f32 %v1856, %v1990
        %v2016 = vmul.f32 %v1871, %v1991
        %v2017 = vmul.f32 %v1886, %v1992
        %v2018 = vmul.f32 %v1901, %v1993
        %v2019 = vmul.f32 %v1916, %v1994
        %v2020 = vmul.f32 %v1931, %v1995
        %v2021 = vmul.f32 %v1946, %v1996
        %v2022 = vadd.f32 %v1997, 1.4214138
        %v2023 = vadd.f32 %v1998, 1.4214138
        %v2024 = vadd.f32 %v1999, 1.4214138
        %v2025 = vadd.f32 %v2000, 1.4214138
        %v2026 = vadd.f32 %v2001, 1.4214138
        %v2027 = vadd.f32 %v2002, 1.4214138
        %v2028 = vadd.f32 %v2003, 1.4214138
        %v2029 = vadd.f32 %v2004, 1.4214138
        %v2030 = vadd.f32 %v2005, 1.4214138
        %v2031 = vadd.f32 %v2006, 1.4214138
        %v2032 = vadd.f32 %v2007, 1.4214138
        %v2033 = vadd.f32 %v2008, 1.4214138
        %v2034 = vadd.f32 %v2009, 1.4214138
        %v2035 = vadd.f32 %v2010, 1.4214138
        %v2036 = vadd.f32 %v2011, 1.4214138
        %v2037 = vadd.f32 %v2012, 1.4214138
        %v2038 = vadd.f32 %v2013, 1.4214138
        %v2039 = vadd.f32 %v2014, 1.4214138
        %v2040 = vadd.f32 %v2015, 1.4214138
        %v2041 = vadd.f32 %v2016, 1.4214138
        %v2042 = vadd.f32 %v2017, 1.4214138
        %v2043 = vadd.f32 %v2018, 1.4214138
        %v2044 = vadd.f32 %v2019, 1.4214138
        %v2045 = vadd.f32 %v2020, 1.4214138
        %v2046 = vadd.f32 %v2021, 1.4214138
        %v2047 = vmul.f32 %v1586, %v2022
        %v2048 = vmul.f32 %v1601, %v2023
        %v2049 = vmul.f32 %v1616, %v2024
        %v2050 = vmul.f32 %v1631, %v2025
        %v2051 = vmul.f32 %v1646, %v2026
        %v2052 = vmul.f32 %v1661, %v2027
        %v2053 = vmul.f32 %v1676, %v2028
        %v2054 = vmul.f32 %v1691, %v2029
        %v2055 = vmul.f32 %v1706, %v2030
        %v2056 = vmul.f32 %v1721, %v2031
        %v2057 = vmul.f32 %v1736, %v2032
        %v2058 = vmul.f32 %v1751, %v2033
        %v2059 = vmul.f32 %v1766, %v2034
        %v2060 = vmul.f32 %v1781, %v2035
        %v2061 = vmul.f32 %v1796, %v2036
        %v2062 = vmul.f32 %v1811, %v2037
        %v2063 = vmul.f32 %v1826, %v2038
        %v2064 = vmul.f32 %v1841, %v2039
        %v2065 = vmul.f32 %v1856, %v2040
        %v2066 = vmul.f32 %v1871, %v2041
        %v2067 = vmul.f32 %v1886, %v2042
        %v2068 = vmul.f32 %v1901, %v2043
        %v2069 = vmul.f32 %v1916, %v2044
        %v2070 = vmul.f32 %v1931, %v2045
        %v2071 = vmul.f32 %v1946, %v2046
        %v2072 = vadd.f32 %v2047, -0.28449672
        %v2073 = vadd.f32 %v2048, -0.28449672
        %v2074 = vadd.f32 %v2049, -0.28449672
        %v2075 = vadd.f32 %v2050, -0.28449672
        %v2076 = vadd.f32 %v2051, -0.28449672
        %v2077 = vadd.f32 %v2052, -0.28449672
        %v2078 = vadd.f32 %v2053, -0.28449672
        %v2079 = vadd.f32 %v2054, -0.28449672
        %v2080 = vadd.f32 %v2055, -0.28449672
        %v2081 = vadd.f32 %v2056, -0.28449672
        %v2082 = vadd.f32 %v2057, -0.28449672
        %v2083 = vadd.f32 %v2058, -0.28449672
        %v2084 = vadd.f32 %v2059, -0.28449672
        %v2085 = vadd.f32 %v2060, -0.28449672
        %v2086 = vadd.f32 %v2061, -0.28449672
        %v2087 = vadd.f32 %v2062, -0.28449672
        %v2088 = vadd.f32 %v2063, -0.28449672
        %v2089 = vadd.f32 %v2064, -0.28449672
        %v2090 = vadd.f32 %v2065, -0.28449672
        %v2091 = vadd.f32 %v2066, -0.28449672
        %v2092 = vadd.f32 %v2067, -0.28449672
        %v2093 = vadd.f32 %v2068, -0.28449672
        %v2094 = vadd.f32 %v2069, -0.28449672
        %v2095 = vadd.f32 %v2070, -0.28449672
        %v2096 = vadd.f32 %v2071, -0.28449672
        %v2097 = vmul.f32 %v1586, %v2072
        %v2098 = vmul.f32 %v1601, %v2073
        %v2099 = vmul.f32 %v1616, %v2074
        %v2100 = vmul.f32 %v1631, %v2075
        %v2101 = vmul.f32 %v1646, %v2076
        %v2102 = vmul.f32 %v1661, %v2077
        %v2103 = vmul.f32 %v1676, %v2078
        %v2104 = vmul.f32 %v1691, %v2079
        %v2105 = vmul.f32 %v1706, %v2080
        %v2106 = vmul.f32 %v1721, %v2081
        %v2107 = vmul.f32 %v1736, %v2082
        %v2108 = vmul.f32 %v1751, %v2083
        %v2109 = vmul.f32 %v1766, %v2084
        %v2110 = vmul.f32 %v1781, %v2085
        %v2111 = vmul.f32 %v1796, %v2086
        %v2112 = vmul.f32 %v1811, %v2087
        %v2113 = vmul.f32 %v1826, %v2088
        %v2114 = vmul.f32 %v1841, %v2089
        %v2115 = vmul.f32 %v1856, %v2090
        %v2116 = vmul.f32 %v1871, %v2091
        %v2117 = vmul.f32 %v1886, %v2092
        %v2118 = vmul.f32 %v1901, %v2093
        %v2119 = vmul.f32 %v1916, %v2094
        %v2120 = vmul.f32 %v1931, %v2095
        %v2121 = vmul.f32 %v1946, %v2096
        %v2122 = vadd.f32 %v2097, 0.2548296
        %v2123 = vadd.f32 %v2098, 0.2548296
        %v2124 = vadd.f32 %v2099, 0.2548296
        %v2125 = vadd.f32 %v2100, 0.2548296
        %v2126 = vadd.f32 %v2101, 0.2548296
        %v2127 = vadd.f32 %v2102, 0.2548296
        %v2128 = vadd.f32 %v2103, 0.2548296
        %v2129 = vadd.f32 %v2104, 0.2548296
        %v2130 = vadd.f32 %v2105, 0.2548296
        %v2131 = vadd.f32 %v2106, 0.2548296
        %v2132 = vadd.f32 %v2107, 0.2548296
        %v2133 = vadd.f32 %v2108, 0.2548296
        %v2134 = vadd.f32 %v2109, 0.2548296
        %v2135 = vadd.f32 %v2110, 0.2548296
        %v2136 = vadd.f32 %v2111, 0.2548296
        %v2137 = vadd.f32 %v2112, 0.2548296
        %v2138 = vadd.f32 %v2113, 0.2548296
        %v2139 = vadd.f32 %v2114, 0.2548296
        %v2140 = vadd.f32 %v2115, 0.2548296
        %v2141 = vadd.f32 %v2116, 0.2548296
        %v2142 = vadd.f32 %v2117, 0.2548296
        %v2143 = vadd.f32 %v2118, 0.2548296
        %v2144 = vadd.f32 %v2119, 0.2548296
        %v2145 = vadd.f32 %v2120, 0.2548296
        %v2146 = vadd.f32 %v2121, 0.2548296
        %v2147 = vmul.f32 %v1586, %v2122
        %v2148 = vmul.f32 %v1601, %v2123
        %v2149 = vmul.f32 %v1616, %v2124
        %v2150 = vmul.f32 %v1631, %v2125
        %v2151 = vmul.f32 %v1646, %v2126
        %v2152 = vmul.f32 %v1661, %v2127
        %v2153 = vmul.f32 %v1676, %v2128
        %v2154 = vmul.f32 %v1691, %v2129
        %v2155 = vmul.f32 %v1706, %v2130
        %v2156 = vmul.f32 %v1721, %v2131
        %v2157 = vmul.f32 %v1736, %v2132
        %v2158 = vmul.f32 %v1751, %v2133
        %v2159 = vmul.f32 %v1766, %v2134
        %v2160 = vmul.f32 %v1781, %v2135
        %v2161 = vmul.f32 %v1796, %v2136
        %v2162 = vmul.f32 %v1811, %v2137
        %v2163 = vmul.f32 %v1826, %v2138
        %v2164 = vmul.f32 %v1841, %v2139
        %v2165 = vmul.f32 %v1856, %v2140
        %v2166 = vmul.f32 %v1871, %v2141
        %v2167 = vmul.f32 %v1886, %v2142
        %v2168 = vmul.f32 %v1901, %v2143
        %v2169 = vmul.f32 %v1916, %v2144
        %v2170 = vmul.f32 %v1931, %v2145
        %v2171 = vmul.f32 %v1946, %v2146
        %v2172 = vsub.f32 0.0, %v1497
        %v2173 = vsub.f32 0.0, %v1498
        %v2174 = vsub.f32 0.0, %v1499
        %v2175 = vsub.f32 0.0, %v1500
        %v2176 = vsub.f32 0.0, %v1501
        %v2177 = vsub.f32 0.0, %v1502
        %v2178 = vsub.f32 0.0, %v1503
        %v2179 = vsub.f32 0.0, %v1504
        %v2180 = vsub.f32 0.0, %v1505
        %v2181 = vsub.f32 0.0, %v1506
        %v2182 = vsub.f32 0.0, %v1507
        %v2183 = vsub.f32 0.0, %v1508
        %v2184 = vsub.f32 0.0, %v1509
        %v2185 = vsub.f32 0.0, %v1510
        %v2186 = vsub.f32 0.0, %v1511
        %v2187 = vsub.f32 0.0, %v1512
        %v2188 = vsub.f32 0.0, %v1513
        %v2189 = vsub.f32 0.0, %v1514
        %v2190 = vsub.f32 0.0, %v1515
        %v2191 = vsub.f32 0.0, %v1516
        %v2192 = vsub.f32 0.0, %v1517
        %v2193 = vsub.f32 0.0, %v1518
        %v2194 = vsub.f32 0.0, %v1519
        %v2195 = vsub.f32 0.0, %v1520
        %v2196 = vsub.f32 0.0, %v1521
        %v2197 = vmul.f32 %v2172, %v1497
        %v2198 = vmul.f32 %v2173, %v1498
        %v2199 = vmul.f32 %v2174, %v1499
        %v2200 = vmul.f32 %v2175, %v1500
        %v2201 = vmul.f32 %v2176, %v1501
        %v2202 = vmul.f32 %v2177, %v1502
        %v2203 = vmul.f32 %v2178, %v1503
        %v2204 = vmul.f32 %v2179, %v1504
        %v2205 = vmul.f32 %v2180, %v1505
        %v2206 = vmul.f32 %v2181, %v1506
        %v2207 = vmul.f32 %v2182, %v1507
        %v2208 = vmul.f32 %v2183, %v1508
        %v2209 = vmul.f32 %v2184, %v1509
        %v2210 = vmul.f32 %v2185, %v1510
        %v2211 = vmul.f32 %v2186, %v1511
        %v2212 = vmul.f32 %v2187, %v1512
        %v2213 = vmul.f32 %v2188, %v1513
        %v2214 = vmul.f32 %v2189, %v1514
        %v2215 = vmul.f32 %v2190, %v1515
        %v2216 = vmul.f32 %v2191, %v1516
        %v2217 = vmul.f32 %v2192, %v1517
        %v2218 = vmul.f32 %v2193, %v1518
        %v2219 = vmul.f32 %v2194, %v1519
        %v2220 = vmul.f32 %v2195, %v1520
        %v2221 = vmul.f32 %v2196, %v1521
        %v2222 = vmul.f32 %v2197, 1.442695
        %v2223 = vpow.pop %v2222
        %v2224 = vmul.f32 %v2198, 1.442695
        %v2225 = vpow.pop %v2224
        %v2226 = vmul.f32 %v2199, 1.442695
        %v2227 = vpow.pop %v2226
        %v2228 = vmul.f32 %v2200, 1.442695
        %v2229 = vpow.pop %v2228
        %v2230 = vmul.f32 %v2201, 1.442695
        %v2231 = vpow.pop %v2230
        %v2232 = vmul.f32 %v2202, 1.442695
        %v2233 = vpow.pop %v2232
        %v2234 = vmul.f32 %v2203, 1.442695
        %v2235 = vpow.pop %v2234
        %v2236 = vmul.f32 %v2204, 1.442695
        %v2237 = vpow.pop %v2236
        %v2238 = vmul.f32 %v2205, 1.442695
        %v2239 = vpow.pop %v2238
        %v2240 = vmul.f32 %v2206, 1.442695
        %v2241 = vpow.pop %v2240
        %v2242 = vmul.f32 %v2207, 1.442695
        %v2243 = vpow.pop %v2242
        %v2244 = vmul.f32 %v2208, 1.442695
        %v2245 = vpow.pop %v2244
        %v2246 = vmul.f32 %v2209, 1.442695
        %v2247 = vpow.pop %v2246
        %v2248 = vmul.f32 %v2210, 1.442695
        %v2249 = vpow.pop %v2248
        %v2250 = vmul.f32 %v2211, 1.442695
        %v2251 = vpow.pop %v2250
        %v2252 = vmul.f32 %v2212, 1.442695
        %v2253 = vpow.pop %v2252
        %v2254 = vmul.f32 %v2213, 1.442695
        %v2255 = vpow.pop %v2254
        %v2256 = vmul.f32 %v2214, 1.442695
        %v2257 = vpow.pop %v2256
        %v2258 = vmul.f32 %v2215, 1.442695
        %v2259 = vpow.pop %v2258
        %v2260 = vmul.f32 %v2216, 1.442695
        %v2261 = vpow.pop %v2260
        %v2262 = vmul.f32 %v2217, 1.442695
        %v2263 = vpow.pop %v2262
        %v2264 = vmul.f32 %v2218, 1.442695
        %v2265 = vpow.pop %v2264
        %v2266 = vmul.f32 %v2219, 1.442695
        %v2267 = vpow.pop %v2266
        %v2268 = vmul.f32 %v2220, 1.442695
        %v2269 = vpow.pop %v2268
        %v2270 = vmul.f32 %v2221, 1.442695
        %v2271 = vpow.pop %v2270
        %v2272 = vmul.f32 %v2147, %v2223
        %v2273 = vmul.f32 %v2148, %v2225
        %v2274 = vmul.f32 %v2149, %v2227
        %v2275 = vmul.f32 %v2150, %v2229
        %v2276 = vmul.f32 %v2151, %v2231
        %v2277 = vmul.f32 %v2152, %v2233
        %v2278 = vmul.f32 %v2153, %v2235
        %v2279 = vmul.f32 %v2154, %v2237
        %v2280 = vmul.f32 %v2155, %v2239
        %v2281 = vmul.f32 %v2156, %v2241
        %v2282 = vmul.f32 %v2157, %v2243
        %v2283 = vmul.f32 %v2158, %v2245
        %v2284 = vmul.f32 %v2159, %v2247
        %v2285 = vmul.f32 %v2160, %v2249
        %v2286 = vmul.f32 %v2161, %v2251
        %v2287 = vmul.f32 %v2162, %v2253
        %v2288 = vmul.f32 %v2163, %v2255
        %v2289 = vmul.f32 %v2164, %v2257
        %v2290 = vmul.f32 %v2165, %v2259
        %v2291 = vmul.f32 %v2166, %v2261
        %v2292 = vmul.f32 %v2167, %v2263
        %v2293 = vmul.f32 %v2168, %v2265
        %v2294 = vmul.f32 %v2169, %v2267
        %v2295 = vmul.f32 %v2170, %v2269
        %v2296 = vmul.f32 %v2171, %v2271
        %v2297 = vsub.f32 1.0, %v2272
        %v2298 = vsub.f32 1.0, %v2273
        %v2299 = vsub.f32 1.0, %v2274
        %v2300 = vsub.f32 1.0, %v2275
        %v2301 = vsub.f32 1.0, %v2276
        %v2302 = vsub.f32 1.0, %v2277
        %v2303 = vsub.f32 1.0, %v2278
        %v2304 = vsub.f32 1.0, %v2279
        %v2305 = vsub.f32 1.0, %v2280
        %v2306 = vsub.f32 1.0, %v2281
        %v2307 = vsub.f32 1.0, %v2282
        %v2308 = vsub.f32 1.0, %v2283
        %v2309 = vsub.f32 1.0, %v2284
        %v2310 = vsub.f32 1.0, %v2285
        %v2311 = vsub.f32 1.0, %v2286
        %v2312 = vsub.f32 1.0, %v2287
        %v2313 = vsub.f32 1.0, %v2288
        %v2314 = vsub.f32 1.0, %v2289
        %v2315 = vsub.f32 1.0, %v2290
        %v2316 = vsub.f32 1.0, %v2291
        %v2317 = vsub.f32 1.0, %v2292
        %v2318 = vsub.f32 1.0, %v2293
        %v2319 = vsub.f32 1.0, %v2294
        %v2320 = vsub.f32 1.0, %v2295
        %v2321 = vsub.f32 1.0, %v2296
        %vm2322 = vcmp.ge.f32.partialorder %v1472, 0.0
        %vm2323 = vcmp.ge.f32.partialorder %v1473, 0.0
        %vm2324 = vcmp.ge.f32.partialorder %v1474, 0.0
        %vm2325 = vcmp.ge.f32.partialorder %v1475, 0.0
        %vm2326 = vcmp.ge.f32.partialorder %v1476, 0.0
        %vm2327 = vcmp.ge.f32.partialorder %v1477, 0.0
        %vm2328 = vcmp.ge.f32.partialorder %v1478, 0.0
        %vm2329 = vcmp.ge.f32.partialorder %v1479, 0.0
        %vm2330 = vcmp.ge.f32.partialorder %v1480, 0.0
        %vm2331 = vcmp.ge.f32.partialorder %v1481, 0.0
        %vm2332 = vcmp.ge.f32.partialorder %v1482, 0.0
        %vm2333 = vcmp.ge.f32.partialorder %v1483, 0.0
        %vm2334 = vcmp.ge.f32.partialorder %v1484, 0.0
        %vm2335 = vcmp.ge.f32.partialorder %v1485, 0.0
        %vm2336 = vcmp.ge.f32.partialorder %v1486, 0.0
        %vm2337 = vcmp.ge.f32.partialorder %v1487, 0.0
        %vm2338 = vcmp.ge.f32.partialorder %v1488, 0.0
        %vm2339 = vcmp.ge.f32.partialorder %v1489, 0.0
        %vm2340 = vcmp.ge.f32.partialorder %v1490, 0.0
        %vm2341 = vcmp.ge.f32.partialorder %v1491, 0.0
        %vm2342 = vcmp.ge.f32.partialorder %v1492, 0.0
        %vm2343 = vcmp.ge.f32.partialorder %v1493, 0.0
        %vm2344 = vcmp.ge.f32.partialorder %v1494, 0.0
        %vm2345 = vcmp.ge.f32.partialorder %v1495, 0.0
        %vm2346 = vcmp.ge.f32.partialorder %v1496, 0.0
        %v2347 = vsub.f32 0.0, %v2297
        %v2348 = vsub.f32 0.0, %v2298
        %v2349 = vsub.f32 0.0, %v2299
        %v2350 = vsub.f32 0.0, %v2300
        %v2351 = vsub.f32 0.0, %v2301
        %v2352 = vsub.f32 0.0, %v2302
        %v2353 = vsub.f32 0.0, %v2303
        %v2354 = vsub.f32 0.0, %v2304
        %v2355 = vsub.f32 0.0, %v2305
        %v2356 = vsub.f32 0.0, %v2306
        %v2357 = vsub.f32 0.0, %v2307
        %v2358 = vsub.f32 0.0, %v2308
        %v2359 = vsub.f32 0.0, %v2309
        %v2360 = vsub.f32 0.0, %v2310
        %v2361 = vsub.f32 0.0, %v2311
        %v2362 = vsub.f32 0.0, %v2312
        %v2363 = vsub.f32 0.0, %v2313
        %v2364 = vsub.f32 0.0, %v2314
        %v2365 = vsub.f32 0.0, %v2315
        %v2366 = vsub.f32 0.0, %v2316
        %v2367 = vsub.f32 0.0, %v2317
        %v2368 = vsub.f32 0.0, %v2318
        %v2369 = vsub.f32 0.0, %v2319
        %v2370 = vsub.f32 0.0, %v2320
        %v2371 = vsub.f32 0.0, %v2321
        %v2372 = vsel %vm2322, %v2297, %v2347
        %v2373 = vsel %vm2323, %v2298, %v2348
        %v2374 = vsel %vm2324, %v2299, %v2349
        %v2375 = vsel %vm2325, %v2300, %v2350
        %v2376 = vsel %vm2326, %v2301, %v2351
        %v2377 = vsel %vm2327, %v2302, %v2352
        %v2378 = vsel %vm2328, %v2303, %v2353
        %v2379 = vsel %vm2329, %v2304, %v2354
        %v2380 = vsel %vm2330, %v2305, %v2355
        %v2381 = vsel %vm2331, %v2306, %v2356
        %v2382 = vsel %vm2332, %v2307, %v2357
        %v2383 = vsel %vm2333, %v2308, %v2358
        %v2384 = vsel %vm2334, %v2309, %v2359
        %v2385 = vsel %vm2335, %v2310, %v2360
        %v2386 = vsel %vm2336, %v2311, %v2361
        %v2387 = vsel %vm2337, %v2312, %v2362
        %v2388 = vsel %vm2338, %v2313, %v2363
        %v2389 = vsel %vm2339, %v2314, %v2364
        %v2390 = vsel %vm2340, %v2315, %v2365
        %v2391 = vsel %vm2341, %v2316, %v2366
        %v2392 = vsel %vm2342, %v2317, %v2367
        %v2393 = vsel %vm2343, %v2318, %v2368
        %v2394 = vsel %vm2344, %v2319, %v2369
        %v2395 = vsel %vm2345, %v2320, %v2370
        %v2396 = vsel %vm2346, %v2321, %v2371
        %v2397 = vadd.f32 %v2372, 1.0
        %v2398 = vadd.f32 %v2373, 1.0
        %v2399 = vadd.f32 %v2374, 1.0
        %v2400 = vadd.f32 %v2375, 1.0
        %v2401 = vadd.f32 %v2376, 1.0
        %v2402 = vadd.f32 %v2377, 1.0
        %v2403 = vadd.f32 %v2378, 1.0
        %v2404 = vadd.f32 %v2379, 1.0
        %v2405 = vadd.f32 %v2380, 1.0
        %v2406 = vadd.f32 %v2381, 1.0
        %v2407 = vadd.f32 %v2382, 1.0
        %v2408 = vadd.f32 %v2383, 1.0
        %v2409 = vadd.f32 %v2384, 1.0
        %v2410 = vadd.f32 %v2385, 1.0
        %v2411 = vadd.f32 %v2386, 1.0
        %v2412 = vadd.f32 %v2387, 1.0
        %v2413 = vadd.f32 %v2388, 1.0
        %v2414 = vadd.f32 %v2389, 1.0
        %v2415 = vadd.f32 %v2390, 1.0
        %v2416 = vadd.f32 %v2391, 1.0
        %v2417 = vadd.f32 %v2392, 1.0
        %v2418 = vadd.f32 %v2393, 1.0
        %v2419 = vadd.f32 %v2394, 1.0
        %v2420 = vadd.f32 %v2395, 1.0
        %v2421 = vadd.f32 %v2396, 1.0
        %v2422 = vmul.f32 %v1447, %v2397
        %v2423 = vmul.f32 %v1448, %v2398
        %v2424 = vmul.f32 %v1449, %v2399
        %v2425 = vmul.f32 %v1450, %v2400
        %v2426 = vmul.f32 %v1451, %v2401
        %v2427 = vmul.f32 %v1452, %v2402
        %v2428 = vmul.f32 %v1453, %v2403
        %v2429 = vmul.f32 %v1454, %v2404
        %v2430 = vmul.f32 %v1455, %v2405
        %v2431 = vmul.f32 %v1456, %v2406
        %v2432 = vmul.f32 %v1457, %v2407
        %v2433 = vmul.f32 %v1458, %v2408
        %v2434 = vmul.f32 %v1459, %v2409
        %v2435 = vmul.f32 %v1460, %v2410
        %v2436 = vmul.f32 %v1461, %v2411
        %v2437 = vmul.f32 %v1462, %v2412
        %v2438 = vmul.f32 %v1463, %v2413
        %v2439 = vmul.f32 %v1464, %v2414
        %v2440 = vmul.f32 %v1465, %v2415
        %v2441 = vmul.f32 %v1466, %v2416
        %v2442 = vmul.f32 %v1467, %v2417
        %v2443 = vmul.f32 %v1468, %v2418
        %v2444 = vmul.f32 %v1469, %v2419
        %v2445 = vmul.f32 %v1470, %v2420
        %v2446 = vmul.f32 %v1471, %v2421
        %v2447 = vpack.c.bf16 %v2423, %v2422
        %v2448 = vpack.c.bf16 %v2425, %v2424
        %v2449 = vpack.c.bf16 %v2427, %v2426
        %v2450 = vpack.c.bf16 %v2429, %v2428
        %v2451 = vpack.c.bf16 %v2431, %v2430
        %v2452 = vpack.c.bf16 %v2433, %v2432
        %v2453 = vpack.c.bf16 %v2435, %v2434
        %v2454 = vpack.c.bf16 %v2437, %v2436
        %v2455 = vpack.c.bf16 %v2439, %v2438
        %v2456 = vpack.c.bf16 %v2441, %v2440
        %v2457 = vpack.c.bf16 %v2443, %v2442
        %v2458 = vpack.c.bf16 %v2445, %v2444
        %v2459 = vpack.c.bf16 %v2446, %v2446
        %v2460 = vld [vmem:[#allocation8] sm:$0xff]
        %v2461 = vld [vmem:[#allocation8 + $0x8] sm:$0xff]
        %v2462 = vld [vmem:[#allocation8 + $0x10] sm:$0xff]
        %v2463 = vld [vmem:[#allocation8 + $0x18] sm:$0xff]
        %v2464 = vld [vmem:[#allocation8 + $0x20] sm:$0xff]
        %v2465 = vld [vmem:[#allocation8 + $0x28] sm:$0xff]
        %v2466 = vld [vmem:[#allocation8 + $0x30] sm:$0xff]
        %v2467 = vld [vmem:[#allocation8 + $0x38] sm:$0xff]
        %v2468 = vld [vmem:[#allocation8 + $0x40] sm:$0xff]
        %v2469 = vld [vmem:[#allocation8 + $0x48] sm:$0xff]
        %v2470 = vld [vmem:[#allocation8 + $0x50] sm:$0xff]
        %v2471 = vld [vmem:[#allocation8 + $0x58] sm:$0xff]
        %v2472 = vld [vmem:[#allocation8 + $0x60] sm:$0xff]
        %v2473 = vld [vmem:[#allocation8 + $0x68] sm:$0xff]
        %v2474 = vld [vmem:[#allocation8 + $0x70] sm:$0xff]
        %v2475 = vld [vmem:[#allocation8 + $0x78] sm:$0xff]
        %v2476 = vld [vmem:[#allocation8 + $0x80] sm:$0xff]
        %v2477 = vld [vmem:[#allocation8 + $0x88] sm:$0xff]
        %v2478 = vld [vmem:[#allocation8 + $0x90] sm:$0xff]
        %v2479 = vld [vmem:[#allocation8 + $0x98] sm:$0xff]
        %v2480 = vld [vmem:[#allocation8 + $0xa0] sm:$0xff]
        %v2481 = vld [vmem:[#allocation8 + $0xa8] sm:$0xff]
        %v2482 = vld [vmem:[#allocation8 + $0xb0] sm:$0xff]
        %v2483 = vld [vmem:[#allocation8 + $0xb8] sm:$0xff]
        %v2484 = vld [vmem:[#allocation8 + $0xc0] sm:$0xff]
        %v2485 = vld [vmem:[#allocation8 + $0xc8] sm:$0xff]
        %v2486 = vld [vmem:[#allocation8 + $0xd0] sm:$0xff]
        %v2487 = vld [vmem:[#allocation8 + $0xd8] sm:$0xff]
        %v2488 = vld [vmem:[#allocation8 + $0xe0] sm:$0xff]
        %v2489 = vld [vmem:[#allocation8 + $0xe8] sm:$0xff]
        %v2490 = vld [vmem:[#allocation8 + $0xf0] sm:$0xff]
        %v2491 = vld [vmem:[#allocation8 + $0xf8] sm:$0xff]
        %v2492 = vld [vmem:[#allocation8 + $0x100] sm:$0xff]
        %v2493 = vld [vmem:[#allocation8 + $0x108] sm:$0xff]
        %v2494 = vld [vmem:[#allocation8 + $0x110] sm:$0xff]
        %v2495 = vld [vmem:[#allocation8 + $0x118] sm:$0xff]
        %v2496 = vld [vmem:[#allocation8 + $0x120] sm:$0xff]
        %v2497 = vld [vmem:[#allocation8 + $0x128] sm:$0xff]
        %v2498 = vld [vmem:[#allocation8 + $0x130] sm:$0xff]
        %v2499 = vld [vmem:[#allocation8 + $0x138] sm:$0xff]
        %v2500 = vld [vmem:[#allocation8 + $0x140] sm:$0xff]
        %v2501 = vld [vmem:[#allocation8 + $0x148] sm:$0xff]
        %v2502 = vld [vmem:[#allocation8 + $0x150] sm:$0xff]
        %v2503 = vld [vmem:[#allocation8 + $0x158] sm:$0xff]
        %v2504 = vld [vmem:[#allocation8 + $0x160] sm:$0xff]
        %v2505 = vld [vmem:[#allocation8 + $0x168] sm:$0xff]
        %v2506 = vld [vmem:[#allocation8 + $0x170] sm:$0xff]
        %v2507 = vld [vmem:[#allocation8 + $0x178] sm:$0xff]
        %v2508 = vld [vmem:[#allocation10] sm:$0x3f]
        %v2510 = vperm.slane %v2508, 0
        %v2511 = vperm.slane %v2508, 1
        %v2512 = vperm.slane %v2508, 2
        %v2513 = vperm.slane %v2508, 3
        %v2514 = vperm.slane %v2508, 4
        %v2515 = vperm.slane %v2508, 5
        %v2570 = vunpack.c.l.b16 %v2460
        %v2571 = vunpack.c.h.b16 %v2460
        %v2572 = vunpack.c.l.b16 %v2461
        %v2573 = vunpack.c.h.b16 %v2461
        %v2574 = vunpack.c.l.b16 %v2462
        %v2575 = vunpack.c.h.b16 %v2462
        %v2576 = vunpack.c.l.b16 %v2463
        %v2577 = vunpack.c.h.b16 %v2463
        %v2578 = vunpack.c.l.b16 %v2464
        %v2579 = vunpack.c.h.b16 %v2464
        %v2580 = vunpack.c.l.b16 %v2465
        %v2581 = vunpack.c.h.b16 %v2465
        %v2582 = vunpack.c.l.b16 %v2466
        %v2583 = vunpack.c.h.b16 %v2466
        %v2584 = vunpack.c.l.b16 %v2467
        %v2585 = vunpack.c.h.b16 %v2467
        %v2586 = vunpack.c.l.b16 %v2468
        %v2587 = vunpack.c.h.b16 %v2468
        %v2588 = vunpack.c.l.b16 %v2469
        %v2589 = vunpack.c.h.b16 %v2469
        %v2590 = vunpack.c.l.b16 %v2470
        %v2591 = vunpack.c.h.b16 %v2470
        %v2592 = vunpack.c.l.b16 %v2471
        %v2593 = vunpack.c.h.b16 %v2471
        %v2594 = vunpack.c.l.b16 %v2472
        %v2595 = vunpack.c.h.b16 %v2472
        %v2596 = vunpack.c.l.b16 %v2473
        %v2597 = vunpack.c.h.b16 %v2473
        %v2598 = vunpack.c.l.b16 %v2474
        %v2599 = vunpack.c.h.b16 %v2474
        %v2600 = vunpack.c.l.b16 %v2475
        %v2601 = vunpack.c.h.b16 %v2475
        %v2602 = vunpack.c.l.b16 %v2476
        %v2603 = vunpack.c.h.b16 %v2476
        %v2604 = vunpack.c.l.b16 %v2477
        %v2605 = vunpack.c.h.b16 %v2477
        %v2606 = vunpack.c.l.b16 %v2478
        %v2607 = vunpack.c.h.b16 %v2478
        %v2608 = vunpack.c.l.b16 %v2479
        %v2609 = vunpack.c.h.b16 %v2479
        %v2610 = vunpack.c.l.b16 %v2480
        %v2611 = vunpack.c.h.b16 %v2480
        %v2612 = vunpack.c.l.b16 %v2481
        %v2613 = vunpack.c.h.b16 %v2481
        %v2614 = vunpack.c.l.b16 %v2482
        %v2615 = vunpack.c.h.b16 %v2482
        %v2616 = vunpack.c.l.b16 %v2483
        %v2617 = vunpack.c.h.b16 %v2483
        %v2618 = vunpack.c.l.b16 %v2484
        %v2619 = vunpack.c.h.b16 %v2484
        %v2620 = vunpack.c.l.b16 %v2485
        %v2621 = vunpack.c.h.b16 %v2485
        %v2622 = vunpack.c.l.b16 %v2486
        %v2623 = vunpack.c.h.b16 %v2486
        %v2624 = vunpack.c.l.b16 %v2487
        %v2625 = vunpack.c.h.b16 %v2487
        %v2626 = vunpack.c.l.b16 %v2488
        %v2627 = vunpack.c.h.b16 %v2488
        %v2628 = vunpack.c.l.b16 %v2489
        %v2629 = vunpack.c.h.b16 %v2489
        %v2630 = vunpack.c.l.b16 %v2490
        %v2631 = vunpack.c.h.b16 %v2490
        %v2632 = vunpack.c.l.b16 %v2491
        %v2633 = vunpack.c.h.b16 %v2491
        %v2634 = vunpack.c.l.b16 %v2492
        %v2635 = vunpack.c.h.b16 %v2492
        %v2636 = vunpack.c.l.b16 %v2493
        %v2637 = vunpack.c.h.b16 %v2493
        %v2638 = vunpack.c.l.b16 %v2494
        %v2639 = vunpack.c.h.b16 %v2494
        %v2640 = vunpack.c.l.b16 %v2495
        %v2641 = vunpack.c.h.b16 %v2495
        %v2642 = vunpack.c.l.b16 %v2496
        %v2643 = vunpack.c.h.b16 %v2496
        %v2644 = vunpack.c.l.b16 %v2497
        %v2645 = vunpack.c.h.b16 %v2497
        %v2646 = vunpack.c.l.b16 %v2498
        %v2647 = vunpack.c.h.b16 %v2498
        %v2648 = vunpack.c.l.b16 %v2499
        %v2649 = vunpack.c.h.b16 %v2499
        %v2650 = vunpack.c.l.b16 %v2500
        %v2651 = vunpack.c.h.b16 %v2500
        %v2652 = vunpack.c.l.b16 %v2501
        %v2653 = vunpack.c.h.b16 %v2501
        %v2654 = vunpack.c.l.b16 %v2502
        %v2655 = vunpack.c.h.b16 %v2502
        %v2656 = vunpack.c.l.b16 %v2503
        %v2657 = vunpack.c.h.b16 %v2503
        %v2658 = vunpack.c.l.b16 %v2504
        %v2659 = vunpack.c.h.b16 %v2504
        %v2660 = vunpack.c.l.b16 %v2505
        %v2661 = vunpack.c.h.b16 %v2505
        %v2662 = vunpack.c.l.b16 %v2506
        %v2663 = vunpack.c.h.b16 %v2506
        %v2664 = vunpack.c.l.b16 %v2507
        %v2665 = vunpack.c.h.b16 %v2507
        %v2666 = vpack.c.b16 %v2576, %v2570
        %v2667 = vpack.c.b16 %v2577, %v2571
        %v2668 = vpack.c.b16 %v2578, %v2572
        %v2669 = vpack.c.b16 %v2579, %v2573
        %v2670 = vpack.c.b16 %v2580, %v2574
        %v2671 = vpack.c.b16 %v2581, %v2575
        %v2672 = vpack.c.b16 %v2588, %v2582
        %v2673 = vpack.c.b16 %v2589, %v2583
        %v2674 = vpack.c.b16 %v2590, %v2584
        %v2675 = vpack.c.b16 %v2591, %v2585
        %v2676 = vpack.c.b16 %v2592, %v2586
        %v2677 = vpack.c.b16 %v2593, %v2587
        %v2678 = vpack.c.b16 %v2600, %v2594
        %v2679 = vpack.c.b16 %v2601, %v2595
        %v2680 = vpack.c.b16 %v2602, %v2596
        %v2681 = vpack.c.b16 %v2603, %v2597
        %v2682 = vpack.c.b16 %v2604, %v2598
        %v2683 = vpack.c.b16 %v2605, %v2599
        %v2684 = vpack.c.b16 %v2612, %v2606
        %v2685 = vpack.c.b16 %v2613, %v2607
        %v2686 = vpack.c.b16 %v2614, %v2608
        %v2687 = vpack.c.b16 %v2615, %v2609
        %v2688 = vpack.c.b16 %v2616, %v2610
        %v2689 = vpack.c.b16 %v2617, %v2611
        %v2690 = vpack.c.b16 %v2624, %v2618
        %v2691 = vpack.c.b16 %v2625, %v2619
        %v2692 = vpack.c.b16 %v2626, %v2620
        %v2693 = vpack.c.b16 %v2627, %v2621
        %v2694 = vpack.c.b16 %v2628, %v2622
        %v2695 = vpack.c.b16 %v2629, %v2623
        %v2696 = vpack.c.b16 %v2636, %v2630
        %v2697 = vpack.c.b16 %v2637, %v2631
        %v2698 = vpack.c.b16 %v2638, %v2632
        %v2699 = vpack.c.b16 %v2639, %v2633
        %v2700 = vpack.c.b16 %v2640, %v2634
        %v2701 = vpack.c.b16 %v2641, %v2635
        %v2702 = vpack.c.b16 %v2648, %v2642
        %v2703 = vpack.c.b16 %v2649, %v2643
        %v2704 = vpack.c.b16 %v2650, %v2644
        %v2705 = vpack.c.b16 %v2651, %v2645
        %v2706 = vpack.c.b16 %v2652, %v2646
        %v2707 = vpack.c.b16 %v2653, %v2647
        %v2708 = vpack.c.b16 %v2660, %v2654
        %v2709 = vpack.c.b16 %v2661, %v2655
        %v2710 = vpack.c.b16 %v2662, %v2656
        %v2711 = vpack.c.b16 %v2663, %v2657
        %v2712 = vpack.c.b16 %v2664, %v2658
        %v2713 = vpack.c.b16 %v2665, %v2659
        %2762 = vmatpush.bf16.msra.mxu0 %v2708
        %2763 = vmatpush.bf16.msra.mxu0 %v2702
        %2764 = vmatpush.bf16.msra.mxu0 %v2696
        %2765 = vmatpush.bf16.msra.mxu0 %v2690
        %2766 = vmatpush.bf16.msra.mxu0 %v2684
        %2767 = vmatpush.bf16.msra.mxu0 %v2678
        %2768 = vmatpush.bf16.msra.mxu0 %v2672
        %2769 = vmatpush.bf16.msra.mxu0 %v2666
        %2770 = vmatmul.bf16.gmra.mxu0 %v2447
        %v2771 = vpop.f32.mrf.mxu0
        %v2772 = vadd.f32 %v2510, %v2771
        %v2773 = vpop.f32.mrf.mxu0
        %v2774 = vadd.f32 %v2510, %v2773
        %2775 = vmatmul.bf16.gmra.mxu0 %v2448
        %v2776 = vpop.f32.mrf.mxu0
        %v2777 = vadd.f32 %v2510, %v2776
        %v2778 = vpop.f32.mrf.mxu0
        %v2779 = vadd.f32 %v2510, %v2778
        %2780 = vmatmul.bf16.gmra.mxu0 %v2449
        %v2781 = vpop.f32.mrf.mxu0
        %v2782 = vadd.f32 %v2510, %v2781
        %v2783 = vpop.f32.mrf.mxu0
        %v2784 = vadd.f32 %v2510, %v2783
        %2785 = vmatmul.bf16.gmra.mxu0 %v2450
        %v2786 = vpop.f32.mrf.mxu0
        %v2787 = vadd.f32 %v2510, %v2786
        %v2788 = vpop.f32.mrf.mxu0
        %v2789 = vadd.f32 %v2510, %v2788
        %2790 = vmatmul.bf16.gmra.mxu0 %v2451
        %v2791 = vpop.f32.mrf.mxu0
        %v2792 = vadd.f32 %v2510, %v2791
        %v2793 = vpop.f32.mrf.mxu0
        %v2794 = vadd.f32 %v2510, %v2793
        %2795 = vmatmul.bf16.gmra.mxu0 %v2452
        %v2796 = vpop.f32.mrf.mxu0
        %v2797 = vadd.f32 %v2510, %v2796
        %v2798 = vpop.f32.mrf.mxu0
        %v2799 = vadd.f32 %v2510, %v2798
        %2800 = vmatmul.bf16.gmra.mxu0 %v2453
        %v2801 = vpop.f32.mrf.mxu0
        %v2802 = vadd.f32 %v2510, %v2801
        %v2803 = vpop.f32.mrf.mxu0
        %v2804 = vadd.f32 %v2510, %v2803
        %2805 = vmatmul.bf16.gmra.mxu0 %v2454
        %v2806 = vpop.f32.mrf.mxu0
        %v2807 = vadd.f32 %v2510, %v2806
        %v2808 = vpop.f32.mrf.mxu0
        %v2809 = vadd.f32 %v2510, %v2808
        %2810 = vmatmul.bf16.gmra.mxu0 %v2455
        %v2811 = vpop.f32.mrf.mxu0
        %v2812 = vadd.f32 %v2510, %v2811
        %v2813 = vpop.f32.mrf.mxu0
        %v2814 = vadd.f32 %v2510, %v2813
        %2815 = vmatmul.bf16.gmra.mxu0 %v2456
        %v2816 = vpop.f32.mrf.mxu0
        %v2817 = vadd.f32 %v2510, %v2816
        %v2818 = vpop.f32.mrf.mxu0
        %v2819 = vadd.f32 %v2510, %v2818
        %2820 = vmatmul.bf16.gmra.mxu0 %v2457
        %v2821 = vpop.f32.mrf.mxu0
        %v2822 = vadd.f32 %v2510, %v2821
        %v2823 = vpop.f32.mrf.mxu0
        %v2824 = vadd.f32 %v2510, %v2823
        %2825 = vmatmul.bf16.gmra.mxu0 %v2458
        %v2826 = vpop.f32.mrf.mxu0
        %v2827 = vadd.f32 %v2510, %v2826
        %v2828 = vpop.f32.mrf.mxu0
        %v2829 = vadd.f32 %v2510, %v2828
        %2830 = vmatmul.bf16.gmra.mxu0 %v2459
        %v2831 = vpop.f32.mrf.mxu0
        %v2832 = vadd.f32 %v2510, %v2831
        %v2833 = vpop.f32.mrf.mxu0
        %2834 = vdwg.mxu0
        %2835 = vmatpush.bf16.msra.mxu0 %v2709
        %2836 = vmatpush.bf16.msra.mxu0 %v2703
        %2837 = vmatpush.bf16.msra.mxu0 %v2697
        %2838 = vmatpush.bf16.msra.mxu0 %v2691
        %2839 = vmatpush.bf16.msra.mxu0 %v2685
        %2840 = vmatpush.bf16.msra.mxu0 %v2679
        %2841 = vmatpush.bf16.msra.mxu0 %v2673
        %2842 = vmatpush.bf16.msra.mxu0 %v2667
        %2843 = vmatmul.bf16.gmra.mxu0 %v2447
        %v2844 = vpop.f32.mrf.mxu0
        %v2845 = vadd.f32 %v2511, %v2844
        %v2846 = vpop.f32.mrf.mxu0
        %v2847 = vadd.f32 %v2511, %v2846
        %2848 = vmatmul.bf16.gmra.mxu0 %v2448
        %v2849 = vpop.f32.mrf.mxu0
        %v2850 = vadd.f32 %v2511, %v2849
        %v2851 = vpop.f32.mrf.mxu0
        %v2852 = vadd.f32 %v2511, %v2851
        %2853 = vmatmul.bf16.gmra.mxu0 %v2449
        %v2854 = vpop.f32.mrf.mxu0
        %v2855 = vadd.f32 %v2511, %v2854
        %v2856 = vpop.f32.mrf.mxu0
        %v2857 = vadd.f32 %v2511, %v2856
        %2858 = vmatmul.bf16.gmra.mxu0 %v2450
        %v2859 = vpop.f32.mrf.mxu0
        %v2860 = vadd.f32 %v2511, %v2859
        %v2861 = vpop.f32.mrf.mxu0
        %v2862 = vadd.f32 %v2511, %v2861
        %2863 = vmatmul.bf16.gmra.mxu0 %v2451
        %v2864 = vpop.f32.mrf.mxu0
        %v2865 = vadd.f32 %v2511, %v2864
        %v2866 = vpop.f32.mrf.mxu0
        %v2867 = vadd.f32 %v2511, %v2866
        %2868 = vmatmul.bf16.gmra.mxu0 %v2452
        %v2869 = vpop.f32.mrf.mxu0
        %v2870 = vadd.f32 %v2511, %v2869
        %v2871 = vpop.f32.mrf.mxu0
        %v2872 = vadd.f32 %v2511, %v2871
        %2873 = vmatmul.bf16.gmra.mxu0 %v2453
        %v2874 = vpop.f32.mrf.mxu0
        %v2875 = vadd.f32 %v2511, %v2874
        %v2876 = vpop.f32.mrf.mxu0
        %v2877 = vadd.f32 %v2511, %v2876
        %2878 = vmatmul.bf16.gmra.mxu0 %v2454
        %v2879 = vpop.f32.mrf.mxu0
        %v2880 = vadd.f32 %v2511, %v2879
        %v2881 = vpop.f32.mrf.mxu0
        %v2882 = vadd.f32 %v2511, %v2881
        %2883 = vmatmul.bf16.gmra.mxu0 %v2455
        %v2884 = vpop.f32.mrf.mxu0
        %v2885 = vadd.f32 %v2511, %v2884
        %v2886 = vpop.f32.mrf.mxu0
        %v2887 = vadd.f32 %v2511, %v2886
        %2888 = vmatmul.bf16.gmra.mxu0 %v2456
        %v2889 = vpop.f32.mrf.mxu0
        %v2890 = vadd.f32 %v2511, %v2889
        %v2891 = vpop.f32.mrf.mxu0
        %v2892 = vadd.f32 %v2511, %v2891
        %2893 = vmatmul.bf16.gmra.mxu0 %v2457
        %v2894 = vpop.f32.mrf.mxu0
        %v2895 = vadd.f32 %v2511, %v2894
        %v2896 = vpop.f32.mrf.mxu0
        %v2897 = vadd.f32 %v2511, %v2896
        %2898 = vmatmul.bf16.gmra.mxu0 %v2458
        %v2899 = vpop.f32.mrf.mxu0
        %v2900 = vadd.f32 %v2511, %v2899
        %v2901 = vpop.f32.mrf.mxu0
        %v2902 = vadd.f32 %v2511, %v2901
        %2903 = vmatmul.bf16.gmra.mxu0 %v2459
        %v2904 = vpop.f32.mrf.mxu0
        %v2905 = vadd.f32 %v2511, %v2904
        %v2906 = vpop.f32.mrf.mxu0
        %2907 = vdwg.mxu0
        %2908 = vmatpush.bf16.msra.mxu0 %v2710
        %2909 = vmatpush.bf16.msra.mxu0 %v2704
        %2910 = vmatpush.bf16.msra.mxu0 %v2698
        %2911 = vmatpush.bf16.msra.mxu0 %v2692
        %2912 = vmatpush.bf16.msra.mxu0 %v2686
        %2913 = vmatpush.bf16.msra.mxu0 %v2680
        %2914 = vmatpush.bf16.msra.mxu0 %v2674
        %2915 = vmatpush.bf16.msra.mxu0 %v2668
        %2916 = vmatmul.bf16.gmra.mxu0 %v2447
        %v2917 = vpop.f32.mrf.mxu0
        %v2918 = vadd.f32 %v2512, %v2917
        %v2919 = vpop.f32.mrf.mxu0
        %v2920 = vadd.f32 %v2512, %v2919
        %2921 = vmatmul.bf16.gmra.mxu0 %v2448
        %v2922 = vpop.f32.mrf.mxu0
        %v2923 = vadd.f32 %v2512, %v2922
        %v2924 = vpop.f32.mrf.mxu0
        %v2925 = vadd.f32 %v2512, %v2924
        %2926 = vmatmul.bf16.gmra.mxu0 %v2449
        %v2927 = vpop.f32.mrf.mxu0
        %v2928 = vadd.f32 %v2512, %v2927
        %v2929 = vpop.f32.mrf.mxu0
        %v2930 = vadd.f32 %v2512, %v2929
        %2931 = vmatmul.bf16.gmra.mxu0 %v2450
        %v2932 = vpop.f32.mrf.mxu0
        %v2933 = vadd.f32 %v2512, %v2932
        %v2934 = vpop.f32.mrf.mxu0
        %v2935 = vadd.f32 %v2512, %v2934
        %2936 = vmatmul.bf16.gmra.mxu0 %v2451
        %v2937 = vpop.f32.mrf.mxu0
        %v2938 = vadd.f32 %v2512, %v2937
        %v2939 = vpop.f32.mrf.mxu0
        %v2940 = vadd.f32 %v2512, %v2939
        %2941 = vmatmul.bf16.gmra.mxu0 %v2452
        %v2942 = vpop.f32.mrf.mxu0
        %v2943 = vadd.f32 %v2512, %v2942
        %v2944 = vpop.f32.mrf.mxu0
        %v2945 = vadd.f32 %v2512, %v2944
        %2946 = vmatmul.bf16.gmra.mxu0 %v2453
        %v2947 = vpop.f32.mrf.mxu0
        %v2948 = vadd.f32 %v2512, %v2947
        %v2949 = vpop.f32.mrf.mxu0
        %v2950 = vadd.f32 %v2512, %v2949
        %2951 = vmatmul.bf16.gmra.mxu0 %v2454
        %v2952 = vpop.f32.mrf.mxu0
        %v2953 = vadd.f32 %v2512, %v2952
        %v2954 = vpop.f32.mrf.mxu0
        %v2955 = vadd.f32 %v2512, %v2954
        %2956 = vmatmul.bf16.gmra.mxu0 %v2455
        %v2957 = vpop.f32.mrf.mxu0
        %v2958 = vadd.f32 %v2512, %v2957
        %v2959 = vpop.f32.mrf.mxu0
        %v2960 = vadd.f32 %v2512, %v2959
        %2961 = vmatmul.bf16.gmra.mxu0 %v2456
        %v2962 = vpop.f32.mrf.mxu0
        %v2963 = vadd.f32 %v2512, %v2962
        %v2964 = vpop.f32.mrf.mxu0
        %v2965 = vadd.f32 %v2512, %v2964
        %2966 = vmatmul.bf16.gmra.mxu0 %v2457
        %v2967 = vpop.f32.mrf.mxu0
        %v2968 = vadd.f32 %v2512, %v2967
        %v2969 = vpop.f32.mrf.mxu0
        %v2970 = vadd.f32 %v2512, %v2969
        %2971 = vmatmul.bf16.gmra.mxu0 %v2458
        %v2972 = vpop.f32.mrf.mxu0
        %v2973 = vadd.f32 %v2512, %v2972
        %v2974 = vpop.f32.mrf.mxu0
        %v2975 = vadd.f32 %v2512, %v2974
        %2976 = vmatmul.bf16.gmra.mxu0 %v2459
        %v2977 = vpop.f32.mrf.mxu0
        %v2978 = vadd.f32 %v2512, %v2977
        %v2979 = vpop.f32.mrf.mxu0
        %2980 = vdwg.mxu0
        %2981 = vmatpush.bf16.msra.mxu0 %v2711
        %2982 = vmatpush.bf16.msra.mxu0 %v2705
        %2983 = vmatpush.bf16.msra.mxu0 %v2699
        %2984 = vmatpush.bf16.msra.mxu0 %v2693
        %2985 = vmatpush.bf16.msra.mxu0 %v2687
        %2986 = vmatpush.bf16.msra.mxu0 %v2681
        %2987 = vmatpush.bf16.msra.mxu0 %v2675
        %2988 = vmatpush.bf16.msra.mxu0 %v2669
        %2989 = vmatmul.bf16.gmra.mxu0 %v2447
        %v2990 = vpop.f32.mrf.mxu0
        %v2991 = vadd.f32 %v2513, %v2990
        %v2992 = vpop.f32.mrf.mxu0
        %v2993 = vadd.f32 %v2513, %v2992
        %2994 = vmatmul.bf16.gmra.mxu0 %v2448
        %v2995 = vpop.f32.mrf.mxu0
        %v2996 = vadd.f32 %v2513, %v2995
        %v2997 = vpop.f32.mrf.mxu0
        %v2998 = vadd.f32 %v2513, %v2997
        %2999 = vmatmul.bf16.gmra.mxu0 %v2449
        %v3000 = vpop.f32.mrf.mxu0
        %v3001 = vadd.f32 %v2513, %v3000
        %v3002 = vpop.f32.mrf.mxu0
        %v3003 = vadd.f32 %v2513, %v3002
        %3004 = vmatmul.bf16.gmra.mxu0 %v2450
        %v3005 = vpop.f32.mrf.mxu0
        %v3006 = vadd.f32 %v2513, %v3005
        %v3007 = vpop.f32.mrf.mxu0
        %v3008 = vadd.f32 %v2513, %v3007
        %3009 = vmatmul.bf16.gmra.mxu0 %v2451
        %v3010 = vpop.f32.mrf.mxu0
        %v3011 = vadd.f32 %v2513, %v3010
        %v3012 = vpop.f32.mrf.mxu0
        %v3013 = vadd.f32 %v2513, %v3012
        %3014 = vmatmul.bf16.gmra.mxu0 %v2452
        %v3015 = vpop.f32.mrf.mxu0
        %v3016 = vadd.f32 %v2513, %v3015
        %v3017 = vpop.f32.mrf.mxu0
        %v3018 = vadd.f32 %v2513, %v3017
        %3019 = vmatmul.bf16.gmra.mxu0 %v2453
        %v3020 = vpop.f32.mrf.mxu0
        %v3021 = vadd.f32 %v2513, %v3020
        %v3022 = vpop.f32.mrf.mxu0
        %v3023 = vadd.f32 %v2513, %v3022
        %3024 = vmatmul.bf16.gmra.mxu0 %v2454
        %v3025 = vpop.f32.mrf.mxu0
        %v3026 = vadd.f32 %v2513, %v3025
        %v3027 = vpop.f32.mrf.mxu0
        %v3028 = vadd.f32 %v2513, %v3027
        %3029 = vmatmul.bf16.gmra.mxu0 %v2455
        %v3030 = vpop.f32.mrf.mxu0
        %v3031 = vadd.f32 %v2513, %v3030
        %v3032 = vpop.f32.mrf.mxu0
        %v3033 = vadd.f32 %v2513, %v3032
        %3034 = vmatmul.bf16.gmra.mxu0 %v2456
        %v3035 = vpop.f32.mrf.mxu0
        %v3036 = vadd.f32 %v2513, %v3035
        %v3037 = vpop.f32.mrf.mxu0
        %v3038 = vadd.f32 %v2513, %v3037
        %3039 = vmatmul.bf16.gmra.mxu0 %v2457
        %v3040 = vpop.f32.mrf.mxu0
        %v3041 = vadd.f32 %v2513, %v3040
        %v3042 = vpop.f32.mrf.mxu0
        %v3043 = vadd.f32 %v2513, %v3042
        %3044 = vmatmul.bf16.gmra.mxu0 %v2458
        %v3045 = vpop.f32.mrf.mxu0
        %v3046 = vadd.f32 %v2513, %v3045
        %v3047 = vpop.f32.mrf.mxu0
        %v3048 = vadd.f32 %v2513, %v3047
        %3049 = vmatmul.bf16.gmra.mxu0 %v2459
        %v3050 = vpop.f32.mrf.mxu0
        %v3051 = vadd.f32 %v2513, %v3050
        %v3052 = vpop.f32.mrf.mxu0
        %3053 = vdwg.mxu0
        %3054 = vmatpush.bf16.msra.mxu0 %v2712
        %3055 = vmatpush.bf16.msra.mxu0 %v2706
        %3056 = vmatpush.bf16.msra.mxu0 %v2700
        %3057 = vmatpush.bf16.msra.mxu0 %v2694
        %3058 = vmatpush.bf16.msra.mxu0 %v2688
        %3059 = vmatpush.bf16.msra.mxu0 %v2682
        %3060 = vmatpush.bf16.msra.mxu0 %v2676
        %3061 = vmatpush.bf16.msra.mxu0 %v2670
        %3062 = vmatmul.bf16.gmra.mxu0 %v2447
        %v3063 = vpop.f32.mrf.mxu0
        %v3064 = vadd.f32 %v2514, %v3063
        %v3065 = vpop.f32.mrf.mxu0
        %v3066 = vadd.f32 %v2514, %v3065
        %3067 = vmatmul.bf16.gmra.mxu0 %v2448
        %v3068 = vpop.f32.mrf.mxu0
        %v3069 = vadd.f32 %v2514, %v3068
        %v3070 = vpop.f32.mrf.mxu0
        %v3071 = vadd.f32 %v2514, %v3070
        %3072 = vmatmul.bf16.gmra.mxu0 %v2449
        %v3073 = vpop.f32.mrf.mxu0
        %v3074 = vadd.f32 %v2514, %v3073
        %v3075 = vpop.f32.mrf.mxu0
        %v3076 = vadd.f32 %v2514, %v3075
        %3077 = vmatmul.bf16.gmra.mxu0 %v2450
        %v3078 = vpop.f32.mrf.mxu0
        %v3079 = vadd.f32 %v2514, %v3078
        %v3080 = vpop.f32.mrf.mxu0
        %v3081 = vadd.f32 %v2514, %v3080
        %3082 = vmatmul.bf16.gmra.mxu0 %v2451
        %v3083 = vpop.f32.mrf.mxu0
        %v3084 = vadd.f32 %v2514, %v3083
        %v3085 = vpop.f32.mrf.mxu0
        %v3086 = vadd.f32 %v2514, %v3085
        %3087 = vmatmul.bf16.gmra.mxu0 %v2452
        %v3088 = vpop.f32.mrf.mxu0
        %v3089 = vadd.f32 %v2514, %v3088
        %v3090 = vpop.f32.mrf.mxu0
        %v3091 = vadd.f32 %v2514, %v3090
        %3092 = vmatmul.bf16.gmra.mxu0 %v2453
        %v3093 = vpop.f32.mrf.mxu0
        %v3094 = vadd.f32 %v2514, %v3093
        %v3095 = vpop.f32.mrf.mxu0
        %v3096 = vadd.f32 %v2514, %v3095
        %3097 = vmatmul.bf16.gmra.mxu0 %v2454
        %v3098 = vpop.f32.mrf.mxu0
        %v3099 = vadd.f32 %v2514, %v3098
        %v3100 = vpop.f32.mrf.mxu0
        %v3101 = vadd.f32 %v2514, %v3100
        %3102 = vmatmul.bf16.gmra.mxu0 %v2455
        %v3103 = vpop.f32.mrf.mxu0
        %v3104 = vadd.f32 %v2514, %v3103
        %v3105 = vpop.f32.mrf.mxu0
        %v3106 = vadd.f32 %v2514, %v3105
        %3107 = vmatmul.bf16.gmra.mxu0 %v2456
        %v3108 = vpop.f32.mrf.mxu0
        %v3109 = vadd.f32 %v2514, %v3108
        %v3110 = vpop.f32.mrf.mxu0
        %v3111 = vadd.f32 %v2514, %v3110
        %3112 = vmatmul.bf16.gmra.mxu0 %v2457
        %v3113 = vpop.f32.mrf.mxu0
        %v3114 = vadd.f32 %v2514, %v3113
        %v3115 = vpop.f32.mrf.mxu0
        %v3116 = vadd.f32 %v2514, %v3115
        %3117 = vmatmul.bf16.gmra.mxu0 %v2458
        %v3118 = vpop.f32.mrf.mxu0
        %v3119 = vadd.f32 %v2514, %v3118
        %v3120 = vpop.f32.mrf.mxu0
        %v3121 = vadd.f32 %v2514, %v3120
        %3122 = vmatmul.bf16.gmra.mxu0 %v2459
        %v3123 = vpop.f32.mrf.mxu0
        %v3124 = vadd.f32 %v2514, %v3123
        %v3125 = vpop.f32.mrf.mxu0
        %3126 = vdwg.mxu0
        %3127 = vmatpush.bf16.msra.mxu0 %v2713
        %3128 = vmatpush.bf16.msra.mxu0 %v2707
        %3129 = vmatpush.bf16.msra.mxu0 %v2701
        %3130 = vmatpush.bf16.msra.mxu0 %v2695
        %3131 = vmatpush.bf16.msra.mxu0 %v2689
        %3132 = vmatpush.bf16.msra.mxu0 %v2683
        %3133 = vmatpush.bf16.msra.mxu0 %v2677
        %3134 = vmatpush.bf16.msra.mxu0 %v2671
        %3135 = vmatmul.bf16.gmra.mxu0 %v2447
        %v3136 = vpop.f32.mrf.mxu0
        %v3137 = vadd.f32 %v2515, %v3136
        %v3138 = vpop.f32.mrf.mxu0
        %v3139 = vadd.f32 %v2515, %v3138
        %3140 = vmatmul.bf16.gmra.mxu0 %v2448
        %v3141 = vpop.f32.mrf.mxu0
        %v3142 = vadd.f32 %v2515, %v3141
        %v3143 = vpop.f32.mrf.mxu0
        %v3144 = vadd.f32 %v2515, %v3143
        %3145 = vmatmul.bf16.gmra.mxu0 %v2449
        %v3146 = vpop.f32.mrf.mxu0
        %v3147 = vadd.f32 %v2515, %v3146
        %v3148 = vpop.f32.mrf.mxu0
        %v3149 = vadd.f32 %v2515, %v3148
        %3150 = vmatmul.bf16.gmra.mxu0 %v2450
        %v3151 = vpop.f32.mrf.mxu0
        %v3152 = vadd.f32 %v2515, %v3151
        %v3153 = vpop.f32.mrf.mxu0
        %v3154 = vadd.f32 %v2515, %v3153
        %3155 = vmatmul.bf16.gmra.mxu0 %v2451
        %v3156 = vpop.f32.mrf.mxu0
        %v3157 = vadd.f32 %v2515, %v3156
        %v3158 = vpop.f32.mrf.mxu0
        %v3159 = vadd.f32 %v2515, %v3158
        %3160 = vmatmul.bf16.gmra.mxu0 %v2452
        %v3161 = vpop.f32.mrf.mxu0
        %v3162 = vadd.f32 %v2515, %v3161
        %v3163 = vpop.f32.mrf.mxu0
        %v3164 = vadd.f32 %v2515, %v3163
        %3165 = vmatmul.bf16.gmra.mxu0 %v2453
        %v3166 = vpop.f32.mrf.mxu0
        %v3167 = vadd.f32 %v2515, %v3166
        %v3168 = vpop.f32.mrf.mxu0
        %v3169 = vadd.f32 %v2515, %v3168
        %3170 = vmatmul.bf16.gmra.mxu0 %v2454
        %v3171 = vpop.f32.mrf.mxu0
        %v3172 = vadd.f32 %v2515, %v3171
        %v3173 = vpop.f32.mrf.mxu0
        %v3174 = vadd.f32 %v2515, %v3173
        %3175 = vmatmul.bf16.gmra.mxu0 %v2455
        %v3176 = vpop.f32.mrf.mxu0
        %v3177 = vadd.f32 %v2515, %v3176
        %v3178 = vpop.f32.mrf.mxu0
        %v3179 = vadd.f32 %v2515, %v3178
        %3180 = vmatmul.bf16.gmra.mxu0 %v2456
        %v3181 = vpop.f32.mrf.mxu0
        %v3182 = vadd.f32 %v2515, %v3181
        %v3183 = vpop.f32.mrf.mxu0
        %v3184 = vadd.f32 %v2515, %v3183
        %3185 = vmatmul.bf16.gmra.mxu0 %v2457
        %v3186 = vpop.f32.mrf.mxu0
        %v3187 = vadd.f32 %v2515, %v3186
        %v3188 = vpop.f32.mrf.mxu0
        %v3189 = vadd.f32 %v2515, %v3188
        %3190 = vmatmul.bf16.gmra.mxu0 %v2458
        %v3191 = vpop.f32.mrf.mxu0
        %v3192 = vadd.f32 %v2515, %v3191
        %v3193 = vpop.f32.mrf.mxu0
        %v3194 = vadd.f32 %v2515, %v3193
        %3195 = vmatmul.bf16.gmra.mxu0 %v2459
        %v3196 = vpop.f32.mrf.mxu0
        %v3197 = vadd.f32 %v2515, %v3196
        %v3198 = vpop.f32.mrf.mxu0
        %3199 = vdwg.mxu0
        %v3200 = vld [vmem:[#allocation11] sm:$0x3f]
        %v3201 = vld [vmem:[#allocation13] sm:$0x3f]
        %v3202 = vadd.f32 %v2772, %v2845
        %v3203 = vadd.f32 %v3202, %v2918
        %v3204 = vadd.f32 %v3203, %v2991
        %v3205 = vadd.f32 %v3204, %v3064
        %v3206 = vadd.f32 %v3205, %v3137
        %3207 = vadd.xlane.f32.xlu0 %v3206
        %v3208 = vpop.xlane.xlu0 %3207
        %v3209 = vadd.f32 %v2774, %v2847
        %v3210 = vadd.f32 %v3209, %v2920
        %v3211 = vadd.f32 %v3210, %v2993
        %v3212 = vadd.f32 %v3211, %v3066
        %v3213 = vadd.f32 %v3212, %v3139
        %3214 = vadd.xlane.f32.xlu0 %v3213
        %v3215 = vpop.xlane.xlu0 %3214
        %v3216 = vadd.f32 %v2777, %v2850
        %v3217 = vadd.f32 %v3216, %v2923
        %v3218 = vadd.f32 %v3217, %v2996
        %v3219 = vadd.f32 %v3218, %v3069
        %v3220 = vadd.f32 %v3219, %v3142
        %3221 = vadd.xlane.f32.xlu0 %v3220
        %v3222 = vpop.xlane.xlu0 %3221
        %v3223 = vadd.f32 %v2779, %v2852
        %v3224 = vadd.f32 %v3223, %v2925
        %v3225 = vadd.f32 %v3224, %v2998
        %v3226 = vadd.f32 %v3225, %v3071
        %v3227 = vadd.f32 %v3226, %v3144
        %3228 = vadd.xlane.f32.xlu0 %v3227
        %v3229 = vpop.xlane.xlu0 %3228
        %v3230 = vadd.f32 %v2782, %v2855
        %v3231 = vadd.f32 %v3230, %v2928
        %v3232 = vadd.f32 %v3231, %v3001
        %v3233 = vadd.f32 %v3232, %v3074
        %v3234 = vadd.f32 %v3233, %v3147
        %3235 = vadd.xlane.f32.xlu0 %v3234
        %v3236 = vpop.xlane.xlu0 %3235
        %v3237 = vadd.f32 %v2784, %v2857
        %v3238 = vadd.f32 %v3237, %v2930
        %v3239 = vadd.f32 %v3238, %v3003
        %v3240 = vadd.f32 %v3239, %v3076
        %v3241 = vadd.f32 %v3240, %v3149
        %3242 = vadd.xlane.f32.xlu0 %v3241
        %v3243 = vpop.xlane.xlu0 %3242
        %v3244 = vadd.f32 %v2787, %v2860
        %v3245 = vadd.f32 %v3244, %v2933
        %v3246 = vadd.f32 %v3245, %v3006
        %v3247 = vadd.f32 %v3246, %v3079
        %v3248 = vadd.f32 %v3247, %v3152
        %3249 = vadd.xlane.f32.xlu0 %v3248
        %v3250 = vpop.xlane.xlu0 %3249
        %v3251 = vadd.f32 %v2789, %v2862
        %v3252 = vadd.f32 %v3251, %v2935
        %v3253 = vadd.f32 %v3252, %v3008
        %v3254 = vadd.f32 %v3253, %v3081
        %v3255 = vadd.f32 %v3254, %v3154
        %3256 = vadd.xlane.f32.xlu0 %v3255
        %v3257 = vpop.xlane.xlu0 %3256
        %v3258 = vadd.f32 %v2792, %v2865
        %v3259 = vadd.f32 %v3258, %v2938
        %v3260 = vadd.f32 %v3259, %v3011
        %v3261 = vadd.f32 %v3260, %v3084
        %v3262 = vadd.f32 %v3261, %v3157
        %3263 = vadd.xlane.f32.xlu0 %v3262
        %v3264 = vpop.xlane.xlu0 %3263
        %v3265 = vadd.f32 %v2794, %v2867
        %v3266 = vadd.f32 %v3265, %v2940
        %v3267 = vadd.f32 %v3266, %v3013
        %v3268 = vadd.f32 %v3267, %v3086
        %v3269 = vadd.f32 %v3268, %v3159
        %3270 = vadd.xlane.f32.xlu0 %v3269
        %v3271 = vpop.xlane.xlu0 %3270
        %v3272 = vadd.f32 %v2797, %v2870
        %v3273 = vadd.f32 %v3272, %v2943
        %v3274 = vadd.f32 %v3273, %v3016
        %v3275 = vadd.f32 %v3274, %v3089
        %v3276 = vadd.f32 %v3275, %v3162
        %3277 = vadd.xlane.f32.xlu0 %v3276
        %v3278 = vpop.xlane.xlu0 %3277
        %v3279 = vadd.f32 %v2799, %v2872
        %v3280 = vadd.f32 %v3279, %v2945
        %v3281 = vadd.f32 %v3280, %v3018
        %v3282 = vadd.f32 %v3281, %v3091
        %v3283 = vadd.f32 %v3282, %v3164
        %3284 = vadd.xlane.f32.xlu0 %v3283
        %v3285 = vpop.xlane.xlu0 %3284
        %v3286 = vadd.f32 %v2802, %v2875
        %v3287 = vadd.f32 %v3286, %v2948
        %v3288 = vadd.f32 %v3287, %v3021
        %v3289 = vadd.f32 %v3288, %v3094
        %v3290 = vadd.f32 %v3289, %v3167
        %3291 = vadd.xlane.f32.xlu0 %v3290
        %v3292 = vpop.xlane.xlu0 %3291
        %v3293 = vadd.f32 %v2804, %v2877
        %v3294 = vadd.f32 %v3293, %v2950
        %v3295 = vadd.f32 %v3294, %v3023
        %v3296 = vadd.f32 %v3295, %v3096
        %v3297 = vadd.f32 %v3296, %v3169
        %3298 = vadd.xlane.f32.xlu0 %v3297
        %v3299 = vpop.xlane.xlu0 %3298
        %v3300 = vadd.f32 %v2807, %v2880
        %v3301 = vadd.f32 %v3300, %v2953
        %v3302 = vadd.f32 %v3301, %v3026
        %v3303 = vadd.f32 %v3302, %v3099
        %v3304 = vadd.f32 %v3303, %v3172
        %3305 = vadd.xlane.f32.xlu0 %v3304
        %v3306 = vpop.xlane.xlu0 %3305
        %v3307 = vadd.f32 %v2809, %v2882
        %v3308 = vadd.f32 %v3307, %v2955
        %v3309 = vadd.f32 %v3308, %v3028
        %v3310 = vadd.f32 %v3309, %v3101
        %v3311 = vadd.f32 %v3310, %v3174
        %3312 = vadd.xlane.f32.xlu0 %v3311
        %v3313 = vpop.xlane.xlu0 %3312
        %v3314 = vadd.f32 %v2812, %v2885
        %v3315 = vadd.f32 %v3314, %v2958
        %v3316 = vadd.f32 %v3315, %v3031
        %v3317 = vadd.f32 %v3316, %v3104
        %v3318 = vadd.f32 %v3317, %v3177
        %3319 = vadd.xlane.f32.xlu0 %v3318
        %v3320 = vpop.xlane.xlu0 %3319
        %v3321 = vadd.f32 %v2814, %v2887
        %v3322 = vadd.f32 %v3321, %v2960
        %v3323 = vadd.f32 %v3322, %v3033
        %v3324 = vadd.f32 %v3323, %v3106
        %v3325 = vadd.f32 %v3324, %v3179
        %3326 = vadd.xlane.f32.xlu0 %v3325
        %v3327 = vpop.xlane.xlu0 %3326
        %v3328 = vadd.f32 %v2817, %v2890
        %v3329 = vadd.f32 %v3328, %v2963
        %v3330 = vadd.f32 %v3329, %v3036
        %v3331 = vadd.f32 %v3330, %v3109
        %v3332 = vadd.f32 %v3331, %v3182
        %3333 = vadd.xlane.f32.xlu0 %v3332
        %v3334 = vpop.xlane.xlu0 %3333
        %v3335 = vadd.f32 %v2819, %v2892
        %v3336 = vadd.f32 %v3335, %v2965
        %v3337 = vadd.f32 %v3336, %v3038
        %v3338 = vadd.f32 %v3337, %v3111
        %v3339 = vadd.f32 %v3338, %v3184
        %3340 = vadd.xlane.f32.xlu0 %v3339
        %v3341 = vpop.xlane.xlu0 %3340
        %v3342 = vadd.f32 %v2822, %v2895
        %v3343 = vadd.f32 %v3342, %v2968
        %v3344 = vadd.f32 %v3343, %v3041
        %v3345 = vadd.f32 %v3344, %v3114
        %v3346 = vadd.f32 %v3345, %v3187
        %3347 = vadd.xlane.f32.xlu0 %v3346
        %v3348 = vpop.xlane.xlu0 %3347
        %v3349 = vadd.f32 %v2824, %v2897
        %v3350 = vadd.f32 %v3349, %v2970
        %v3351 = vadd.f32 %v3350, %v3043
        %v3352 = vadd.f32 %v3351, %v3116
        %v3353 = vadd.f32 %v3352, %v3189
        %3354 = vadd.xlane.f32.xlu0 %v3353
        %v3355 = vpop.xlane.xlu0 %3354
        %v3356 = vadd.f32 %v2827, %v2900
        %v3357 = vadd.f32 %v3356, %v2973
        %v3358 = vadd.f32 %v3357, %v3046
        %v3359 = vadd.f32 %v3358, %v3119
        %v3360 = vadd.f32 %v3359, %v3192
        %3361 = vadd.xlane.f32.xlu0 %v3360
        %v3362 = vpop.xlane.xlu0 %3361
        %v3363 = vadd.f32 %v2829, %v2902
        %v3364 = vadd.f32 %v3363, %v2975
        %v3365 = vadd.f32 %v3364, %v3048
        %v3366 = vadd.f32 %v3365, %v3121
        %v3367 = vadd.f32 %v3366, %v3194
        %3368 = vadd.xlane.f32.xlu0 %v3367
        %v3369 = vpop.xlane.xlu0 %3368
        %v3370 = vadd.f32 %v2832, %v2905
        %v3371 = vadd.f32 %v3370, %v2978
        %v3372 = vadd.f32 %v3371, %v3051
        %v3373 = vadd.f32 %v3372, %v3124
        %v3374 = vadd.f32 %v3373, %v3197
        %3375 = vadd.xlane.f32.xlu0 %v3374
        %v3376 = vpop.xlane.xlu0 %3375
        %v3377 = vrcp.pop 768.0
        %v3378 = vmul.f32 768.0, %v3377
        %v3379 = vsub.f32 1.0, %v3378
        %v3380 = vmul.f32 %v3377, %v3379
        %v3381 = vadd.f32 %v3377, %v3380
        %vm3382 = vweird.f32 %v3377
        %v3383 = vsel %vm3382, %v3377, %v3381
        %v3384 = vmul.f32 %v3208, %v3383
        %v3385 = vmul.f32 %v3215, %v3383
        %v3386 = vmul.f32 %v3222, %v3383
        %v3387 = vmul.f32 %v3229, %v3383
        %v3388 = vmul.f32 %v3236, %v3383
        %v3389 = vmul.f32 %v3243, %v3383
        %v3390 = vmul.f32 %v3250, %v3383
        %v3391 = vmul.f32 %v3257, %v3383
        %v3392 = vmul.f32 %v3264, %v3383
        %v3393 = vmul.f32 %v3271, %v3383
        %v3394 = vmul.f32 %v3278, %v3383
        %v3395 = vmul.f32 %v3285, %v3383
        %v3396 = vmul.f32 %v3292, %v3383
        %v3397 = vmul.f32 %v3299, %v3383
        %v3398 = vmul.f32 %v3306, %v3383
        %v3399 = vmul.f32 %v3313, %v3383
        %v3400 = vmul.f32 %v3320, %v3383
        %v3401 = vmul.f32 %v3327, %v3383
        %v3402 = vmul.f32 %v3334, %v3383
        %v3403 = vmul.f32 %v3341, %v3383
        %v3404 = vmul.f32 %v3348, %v3383
        %v3405 = vmul.f32 %v3355, %v3383
        %v3406 = vmul.f32 %v3362, %v3383
        %v3407 = vmul.f32 %v3369, %v3383
        %v3408 = vmul.f32 %v3376, %v3383
        %v3409 = vsub.f32 %v2772, %v3384
        %v3410 = vsub.f32 %v2845, %v3384
        %v3411 = vsub.f32 %v2918, %v3384
        %v3412 = vsub.f32 %v2991, %v3384
        %v3413 = vsub.f32 %v3064, %v3384
        %v3414 = vsub.f32 %v3137, %v3384
        %v3415 = vsub.f32 %v2774, %v3385
        %v3416 = vsub.f32 %v2847, %v3385
        %v3417 = vsub.f32 %v2920, %v3385
        %v3418 = vsub.f32 %v2993, %v3385
        %v3419 = vsub.f32 %v3066, %v3385
        %v3420 = vsub.f32 %v3139, %v3385
        %v3421 = vsub.f32 %v2777, %v3386
        %v3422 = vsub.f32 %v2850, %v3386
        %v3423 = vsub.f32 %v2923, %v3386
        %v3424 = vsub.f32 %v2996, %v3386
        %v3425 = vsub.f32 %v3069, %v3386
        %v3426 = vsub.f32 %v3142, %v3386
        %v3427 = vsub.f32 %v2779, %v3387
        %v3428 = vsub.f32 %v2852, %v3387
        %v3429 = vsub.f32 %v2925, %v3387
        %v3430 = vsub.f32 %v2998, %v3387
        %v3431 = vsub.f32 %v3071, %v3387
        %v3432 = vsub.f32 %v3144, %v3387
        %v3433 = vsub.f32 %v2782, %v3388
        %v3434 = vsub.f32 %v2855, %v3388
        %v3435 = vsub.f32 %v2928, %v3388
        %v3436 = vsub.f32 %v3001, %v3388
        %v3437 = vsub.f32 %v3074, %v3388
        %v3438 = vsub.f32 %v3147, %v3388
        %v3439 = vsub.f32 %v2784, %v3389
        %v3440 = vsub.f32 %v2857, %v3389
        %v3441 = vsub.f32 %v2930, %v3389
        %v3442 = vsub.f32 %v3003, %v3389
        %v3443 = vsub.f32 %v3076, %v3389
        %v3444 = vsub.f32 %v3149, %v3389
        %v3445 = vsub.f32 %v2787, %v3390
        %v3446 = vsub.f32 %v2860, %v3390
        %v3447 = vsub.f32 %v2933, %v3390
        %v3448 = vsub.f32 %v3006, %v3390
        %v3449 = vsub.f32 %v3079, %v3390
        %v3450 = vsub.f32 %v3152, %v3390
        %v3451 = vsub.f32 %v2789, %v3391
        %v3452 = vsub.f32 %v2862, %v3391
        %v3453 = vsub.f32 %v2935, %v3391
        %v3454 = vsub.f32 %v3008, %v3391
        %v3455 = vsub.f32 %v3081, %v3391
        %v3456 = vsub.f32 %v3154, %v3391
        %v3457 = vsub.f32 %v2792, %v3392
        %v3458 = vsub.f32 %v2865, %v3392
        %v3459 = vsub.f32 %v2938, %v3392
        %v3460 = vsub.f32 %v3011, %v3392
        %v3461 = vsub.f32 %v3084, %v3392
        %v3462 = vsub.f32 %v3157, %v3392
        %v3463 = vsub.f32 %v2794, %v3393
        %v3464 = vsub.f32 %v2867, %v3393
        %v3465 = vsub.f32 %v2940, %v3393
        %v3466 = vsub.f32 %v3013, %v3393
        %v3467 = vsub.f32 %v3086, %v3393
        %v3468 = vsub.f32 %v3159, %v3393
        %v3469 = vsub.f32 %v2797, %v3394
        %v3470 = vsub.f32 %v2870, %v3394
        %v3471 = vsub.f32 %v2943, %v3394
        %v3472 = vsub.f32 %v3016, %v3394
        %v3473 = vsub.f32 %v3089, %v3394
        %v3474 = vsub.f32 %v3162, %v3394
        %v3475 = vsub.f32 %v2799, %v3395
        %v3476 = vsub.f32 %v2872, %v3395
        %v3477 = vsub.f32 %v2945, %v3395
        %v3478 = vsub.f32 %v3018, %v3395
        %v3479 = vsub.f32 %v3091, %v3395
        %v3480 = vsub.f32 %v3164, %v3395
        %v3481 = vsub.f32 %v2802, %v3396
        %v3482 = vsub.f32 %v2875, %v3396
        %v3483 = vsub.f32 %v2948, %v3396
        %v3484 = vsub.f32 %v3021, %v3396
        %v3485 = vsub.f32 %v3094, %v3396
        %v3486 = vsub.f32 %v3167, %v3396
        %v3487 = vsub.f32 %v2804, %v3397
        %v3488 = vsub.f32 %v2877, %v3397
        %v3489 = vsub.f32 %v2950, %v3397
        %v3490 = vsub.f32 %v3023, %v3397
        %v3491 = vsub.f32 %v3096, %v3397
        %v3492 = vsub.f32 %v3169, %v3397
        %v3493 = vsub.f32 %v2807, %v3398
        %v3494 = vsub.f32 %v2880, %v3398
        %v3495 = vsub.f32 %v2953, %v3398
        %v3496 = vsub.f32 %v3026, %v3398
        %v3497 = vsub.f32 %v3099, %v3398
        %v3498 = vsub.f32 %v3172, %v3398
        %v3499 = vsub.f32 %v2809, %v3399
        %v3500 = vsub.f32 %v2882, %v3399
        %v3501 = vsub.f32 %v2955, %v3399
        %v3502 = vsub.f32 %v3028, %v3399
        %v3503 = vsub.f32 %v3101, %v3399
        %v3504 = vsub.f32 %v3174, %v3399
        %v3505 = vsub.f32 %v2812, %v3400
        %v3506 = vsub.f32 %v2885, %v3400
        %v3507 = vsub.f32 %v2958, %v3400
        %v3508 = vsub.f32 %v3031, %v3400
        %v3509 = vsub.f32 %v3104, %v3400
        %v3510 = vsub.f32 %v3177, %v3400
        %v3511 = vsub.f32 %v2814, %v3401
        %v3512 = vsub.f32 %v2887, %v3401
        %v3513 = vsub.f32 %v2960, %v3401
        %v3514 = vsub.f32 %v3033, %v3401
        %v3515 = vsub.f32 %v3106, %v3401
        %v3516 = vsub.f32 %v3179, %v3401
        %v3517 = vsub.f32 %v2817, %v3402
        %v3518 = vsub.f32 %v2890, %v3402
        %v3519 = vsub.f32 %v2963, %v3402
        %v3520 = vsub.f32 %v3036, %v3402
        %v3521 = vsub.f32 %v3109, %v3402
        %v3522 = vsub.f32 %v3182, %v3402
        %v3523 = vsub.f32 %v2819, %v3403
        %v3524 = vsub.f32 %v2892, %v3403
        %v3525 = vsub.f32 %v2965, %v3403
        %v3526 = vsub.f32 %v3038, %v3403
        %v3527 = vsub.f32 %v3111, %v3403
        %v3528 = vsub.f32 %v3184, %v3403
        %v3529 = vsub.f32 %v2822, %v3404
        %v3530 = vsub.f32 %v2895, %v3404
        %v3531 = vsub.f32 %v2968, %v3404
        %v3532 = vsub.f32 %v3041, %v3404
        %v3533 = vsub.f32 %v3114, %v3404
        %v3534 = vsub.f32 %v3187, %v3404
        %v3535 = vsub.f32 %v2824, %v3405
        %v3536 = vsub.f32 %v2897, %v3405
        %v3537 = vsub.f32 %v2970, %v3405
        %v3538 = vsub.f32 %v3043, %v3405
        %v3539 = vsub.f32 %v3116, %v3405
        %v3540 = vsub.f32 %v3189, %v3405
        %v3541 = vsub.f32 %v2827, %v3406
        %v3542 = vsub.f32 %v2900, %v3406
        %v3543 = vsub.f32 %v2973, %v3406
        %v3544 = vsub.f32 %v3046, %v3406
        %v3545 = vsub.f32 %v3119, %v3406
        %v3546 = vsub.f32 %v3192, %v3406
        %v3547 = vsub.f32 %v2829, %v3407
        %v3548 = vsub.f32 %v2902, %v3407
        %v3549 = vsub.f32 %v2975, %v3407
        %v3550 = vsub.f32 %v3048, %v3407
        %v3551 = vsub.f32 %v3121, %v3407
        %v3552 = vsub.f32 %v3194, %v3407
        %v3553 = vsub.f32 %v2832, %v3408
        %v3554 = vsub.f32 %v2905, %v3408
        %v3555 = vsub.f32 %v2978, %v3408
        %v3556 = vsub.f32 %v3051, %v3408
        %v3557 = vsub.f32 %v3124, %v3408
        %v3558 = vsub.f32 %v3197, %v3408
        %v3559 = vmul.f32 %v3409, %v3409
        %v3560 = vmul.f32 %v3410, %v3410
        %v3561 = vmul.f32 %v3411, %v3411
        %v3562 = vmul.f32 %v3412, %v3412
        %v3563 = vmul.f32 %v3413, %v3413
        %v3564 = vmul.f32 %v3414, %v3414
        %v3565 = vmul.f32 %v3415, %v3415
        %v3566 = vmul.f32 %v3416, %v3416
        %v3567 = vmul.f32 %v3417, %v3417
        %v3568 = vmul.f32 %v3418, %v3418
        %v3569 = vmul.f32 %v3419, %v3419
        %v3570 = vmul.f32 %v3420, %v3420
        %v3571 = vmul.f32 %v3421, %v3421
        %v3572 = vmul.f32 %v3422, %v3422
        %v3573 = vmul.f32 %v3423, %v3423
        %v3574 = vmul.f32 %v3424, %v3424
        %v3575 = vmul.f32 %v3425, %v3425
        %v3576 = vmul.f32 %v3426, %v3426
        %v3577 = vmul.f32 %v3427, %v3427
        %v3578 = vmul.f32 %v3428, %v3428
        %v3579 = vmul.f32 %v3429, %v3429
        %v3580 = vmul.f32 %v3430, %v3430
        %v3581 = vmul.f32 %v3431, %v3431
        %v3582 = vmul.f32 %v3432, %v3432
        %v3583 = vmul.f32 %v3433, %v3433
        %v3584 = vmul.f32 %v3434, %v3434
        %v3585 = vmul.f32 %v3435, %v3435
        %v3586 = vmul.f32 %v3436, %v3436
        %v3587 = vmul.f32 %v3437, %v3437
        %v3588 = vmul.f32 %v3438, %v3438
        %v3589 = vmul.f32 %v3439, %v3439
        %v3590 = vmul.f32 %v3440, %v3440
        %v3591 = vmul.f32 %v3441, %v3441
        %v3592 = vmul.f32 %v3442, %v3442
        %v3593 = vmul.f32 %v3443, %v3443
        %v3594 = vmul.f32 %v3444, %v3444
        %v3595 = vmul.f32 %v3445, %v3445
        %v3596 = vmul.f32 %v3446, %v3446
        %v3597 = vmul.f32 %v3447, %v3447
        %v3598 = vmul.f32 %v3448, %v3448
        %v3599 = vmul.f32 %v3449, %v3449
        %v3600 = vmul.f32 %v3450, %v3450
        %v3601 = vmul.f32 %v3451, %v3451
        %v3602 = vmul.f32 %v3452, %v3452
        %v3603 = vmul.f32 %v3453, %v3453
        %v3604 = vmul.f32 %v3454, %v3454
        %v3605 = vmul.f32 %v3455, %v3455
        %v3606 = vmul.f32 %v3456, %v3456
        %v3607 = vmul.f32 %v3457, %v3457
        %v3608 = vmul.f32 %v3458, %v3458
        %v3609 = vmul.f32 %v3459, %v3459
        %v3610 = vmul.f32 %v3460, %v3460
        %v3611 = vmul.f32 %v3461, %v3461
        %v3612 = vmul.f32 %v3462, %v3462
        %v3613 = vmul.f32 %v3463, %v3463
        %v3614 = vmul.f32 %v3464, %v3464
        %v3615 = vmul.f32 %v3465, %v3465
        %v3616 = vmul.f32 %v3466, %v3466
        %v3617 = vmul.f32 %v3467, %v3467
        %v3618 = vmul.f32 %v3468, %v3468
        %v3619 = vmul.f32 %v3469, %v3469
        %v3620 = vmul.f32 %v3470, %v3470
        %v3621 = vmul.f32 %v3471, %v3471
        %v3622 = vmul.f32 %v3472, %v3472
        %v3623 = vmul.f32 %v3473, %v3473
        %v3624 = vmul.f32 %v3474, %v3474
        %v3625 = vmul.f32 %v3475, %v3475
        %v3626 = vmul.f32 %v3476, %v3476
        %v3627 = vmul.f32 %v3477, %v3477
        %v3628 = vmul.f32 %v3478, %v3478
        %v3629 = vmul.f32 %v3479, %v3479
        %v3630 = vmul.f32 %v3480, %v3480
        %v3631 = vmul.f32 %v3481, %v3481
        %v3632 = vmul.f32 %v3482, %v3482
        %v3633 = vmul.f32 %v3483, %v3483
        %v3634 = vmul.f32 %v3484, %v3484
        %v3635 = vmul.f32 %v3485, %v3485
        %v3636 = vmul.f32 %v3486, %v3486
        %v3637 = vmul.f32 %v3487, %v3487
        %v3638 = vmul.f32 %v3488, %v3488
        %v3639 = vmul.f32 %v3489, %v3489
        %v3640 = vmul.f32 %v3490, %v3490
        %v3641 = vmul.f32 %v3491, %v3491
        %v3642 = vmul.f32 %v3492, %v3492
        %v3643 = vmul.f32 %v3493, %v3493
        %v3644 = vmul.f32 %v3494, %v3494
        %v3645 = vmul.f32 %v3495, %v3495
        %v3646 = vmul.f32 %v3496, %v3496
        %v3647 = vmul.f32 %v3497, %v3497
        %v3648 = vmul.f32 %v3498, %v3498
        %v3649 = vmul.f32 %v3499, %v3499
        %v3650 = vmul.f32 %v3500, %v3500
        %v3651 = vmul.f32 %v3501, %v3501
        %v3652 = vmul.f32 %v3502, %v3502
        %v3653 = vmul.f32 %v3503, %v3503
        %v3654 = vmul.f32 %v3504, %v3504
        %v3655 = vmul.f32 %v3505, %v3505
        %v3656 = vmul.f32 %v3506, %v3506
        %v3657 = vmul.f32 %v3507, %v3507
        %v3658 = vmul.f32 %v3508, %v3508
        %v3659 = vmul.f32 %v3509, %v3509
        %v3660 = vmul.f32 %v3510, %v3510
        %v3661 = vmul.f32 %v3511, %v3511
        %v3662 = vmul.f32 %v3512, %v3512
        %v3663 = vmul.f32 %v3513, %v3513
        %v3664 = vmul.f32 %v3514, %v3514
        %v3665 = vmul.f32 %v3515, %v3515
        %v3666 = vmul.f32 %v3516, %v3516
        %v3667 = vmul.f32 %v3517, %v3517
        %v3668 = vmul.f32 %v3518, %v3518
        %v3669 = vmul.f32 %v3519, %v3519
        %v3670 = vmul.f32 %v3520, %v3520
        %v3671 = vmul.f32 %v3521, %v3521
        %v3672 = vmul.f32 %v3522, %v3522
        %v3673 = vmul.f32 %v3523, %v3523
        %v3674 = vmul.f32 %v3524, %v3524
        %v3675 = vmul.f32 %v3525, %v3525
        %v3676 = vmul.f32 %v3526, %v3526
        %v3677 = vmul.f32 %v3527, %v3527
        %v3678 = vmul.f32 %v3528, %v3528
        %v3679 = vmul.f32 %v3529, %v3529
        %v3680 = vmul.f32 %v3530, %v3530
        %v3681 = vmul.f32 %v3531, %v3531
        %v3682 = vmul.f32 %v3532, %v3532
        %v3683 = vmul.f32 %v3533, %v3533
        %v3684 = vmul.f32 %v3534, %v3534
        %v3685 = vmul.f32 %v3535, %v3535
        %v3686 = vmul.f32 %v3536, %v3536
        %v3687 = vmul.f32 %v3537, %v3537
        %v3688 = vmul.f32 %v3538, %v3538
        %v3689 = vmul.f32 %v3539, %v3539
        %v3690 = vmul.f32 %v3540, %v3540
        %v3691 = vmul.f32 %v3541, %v3541
        %v3692 = vmul.f32 %v3542, %v3542
        %v3693 = vmul.f32 %v3543, %v3543
        %v3694 = vmul.f32 %v3544, %v3544
        %v3695 = vmul.f32 %v3545, %v3545
        %v3696 = vmul.f32 %v3546, %v3546
        %v3697 = vmul.f32 %v3547, %v3547
        %v3698 = vmul.f32 %v3548, %v3548
        %v3699 = vmul.f32 %v3549, %v3549
        %v3700 = vmul.f32 %v3550, %v3550
        %v3701 = vmul.f32 %v3551, %v3551
        %v3702 = vmul.f32 %v3552, %v3552
        %v3703 = vmul.f32 %v3553, %v3553
        %v3704 = vmul.f32 %v3554, %v3554
        %v3705 = vmul.f32 %v3555, %v3555
        %v3706 = vmul.f32 %v3556, %v3556
        %v3707 = vmul.f32 %v3557, %v3557
        %v3708 = vmul.f32 %v3558, %v3558
        %v3709 = vadd.f32 %v3559, %v3560
        %v3710 = vadd.f32 %v3709, %v3561
        %v3711 = vadd.f32 %v3710, %v3562
        %v3712 = vadd.f32 %v3711, %v3563
        %v3713 = vadd.f32 %v3712, %v3564
        %3714 = vadd.xlane.f32.xlu0 %v3713
        %v3715 = vpop.xlane.xlu0 %3714
        %v3716 = vadd.f32 %v3565, %v3566
        %v3717 = vadd.f32 %v3716, %v3567
        %v3718 = vadd.f32 %v3717, %v3568
        %v3719 = vadd.f32 %v3718, %v3569
        %v3720 = vadd.f32 %v3719, %v3570
        %3721 = vadd.xlane.f32.xlu0 %v3720
        %v3722 = vpop.xlane.xlu0 %3721
        %v3723 = vadd.f32 %v3571, %v3572
        %v3724 = vadd.f32 %v3723, %v3573
        %v3725 = vadd.f32 %v3724, %v3574
        %v3726 = vadd.f32 %v3725, %v3575
        %v3727 = vadd.f32 %v3726, %v3576
        %3728 = vadd.xlane.f32.xlu0 %v3727
        %v3729 = vpop.xlane.xlu0 %3728
        %v3730 = vadd.f32 %v3577, %v3578
        %v3731 = vadd.f32 %v3730, %v3579
        %v3732 = vadd.f32 %v3731, %v3580
        %v3733 = vadd.f32 %v3732, %v3581
        %v3734 = vadd.f32 %v3733, %v3582
        %3735 = vadd.xlane.f32.xlu0 %v3734
        %v3736 = vpop.xlane.xlu0 %3735
        %v3737 = vadd.f32 %v3583, %v3584
        %v3738 = vadd.f32 %v3737, %v3585
        %v3739 = vadd.f32 %v3738, %v3586
        %v3740 = vadd.f32 %v3739, %v3587
        %v3741 = vadd.f32 %v3740, %v3588
        %3742 = vadd.xlane.f32.xlu0 %v3741
        %v3743 = vpop.xlane.xlu0 %3742
        %v3744 = vadd.f32 %v3589, %v3590
        %v3745 = vadd.f32 %v3744, %v3591
        %v3746 = vadd.f32 %v3745, %v3592
        %v3747 = vadd.f32 %v3746, %v3593
        %v3748 = vadd.f32 %v3747, %v3594
        %3749 = vadd.xlane.f32.xlu0 %v3748
        %v3750 = vpop.xlane.xlu0 %3749
        %v3751 = vadd.f32 %v3595, %v3596
        %v3752 = vadd.f32 %v3751, %v3597
        %v3753 = vadd.f32 %v3752, %v3598
        %v3754 = vadd.f32 %v3753, %v3599
        %v3755 = vadd.f32 %v3754, %v3600
        %3756 = vadd.xlane.f32.xlu0 %v3755
        %v3757 = vpop.xlane.xlu0 %3756
        %v3758 = vadd.f32 %v3601, %v3602
        %v3759 = vadd.f32 %v3758, %v3603
        %v3760 = vadd.f32 %v3759, %v3604
        %v3761 = vadd.f32 %v3760, %v3605
        %v3762 = vadd.f32 %v3761, %v3606
        %3763 = vadd.xlane.f32.xlu0 %v3762
        %v3764 = vpop.xlane.xlu0 %3763
        %v3765 = vadd.f32 %v3607, %v3608
        %v3766 = vadd.f32 %v3765, %v3609
        %v3767 = vadd.f32 %v3766, %v3610
        %v3768 = vadd.f32 %v3767, %v3611
        %v3769 = vadd.f32 %v3768, %v3612
        %3770 = vadd.xlane.f32.xlu0 %v3769
        %v3771 = vpop.xlane.xlu0 %3770
        %v3772 = vadd.f32 %v3613, %v3614
        %v3773 = vadd.f32 %v3772, %v3615
        %v3774 = vadd.f32 %v3773, %v3616
        %v3775 = vadd.f32 %v3774, %v3617
        %v3776 = vadd.f32 %v3775, %v3618
        %3777 = vadd.xlane.f32.xlu0 %v3776
        %v3778 = vpop.xlane.xlu0 %3777
        %v3779 = vadd.f32 %v3619, %v3620
        %v3780 = vadd.f32 %v3779, %v3621
        %v3781 = vadd.f32 %v3780, %v3622
        %v3782 = vadd.f32 %v3781, %v3623
        %v3783 = vadd.f32 %v3782, %v3624
        %3784 = vadd.xlane.f32.xlu0 %v3783
        %v3785 = vpop.xlane.xlu0 %3784
        %v3786 = vadd.f32 %v3625, %v3626
        %v3787 = vadd.f32 %v3786, %v3627
        %v3788 = vadd.f32 %v3787, %v3628
        %v3789 = vadd.f32 %v3788, %v3629
        %v3790 = vadd.f32 %v3789, %v3630
        %3791 = vadd.xlane.f32.xlu0 %v3790
        %v3792 = vpop.xlane.xlu0 %3791
        %v3793 = vadd.f32 %v3631, %v3632
        %v3794 = vadd.f32 %v3793, %v3633
        %v3795 = vadd.f32 %v3794, %v3634
        %v3796 = vadd.f32 %v3795, %v3635
        %v3797 = vadd.f32 %v3796, %v3636
        %3798 = vadd.xlane.f32.xlu0 %v3797
        %v3799 = vpop.xlane.xlu0 %3798
        %v3800 = vadd.f32 %v3637, %v3638
        %v3801 = vadd.f32 %v3800, %v3639
        %v3802 = vadd.f32 %v3801, %v3640
        %v3803 = vadd.f32 %v3802, %v3641
        %v3804 = vadd.f32 %v3803, %v3642
        %3805 = vadd.xlane.f32.xlu0 %v3804
        %v3806 = vpop.xlane.xlu0 %3805
        %v3807 = vadd.f32 %v3643, %v3644
        %v3808 = vadd.f32 %v3807, %v3645
        %v3809 = vadd.f32 %v3808, %v3646
        %v3810 = vadd.f32 %v3809, %v3647
        %v3811 = vadd.f32 %v3810, %v3648
        %3812 = vadd.xlane.f32.xlu0 %v3811
        %v3813 = vpop.xlane.xlu0 %3812
        %v3814 = vadd.f32 %v3649, %v3650
        %v3815 = vadd.f32 %v3814, %v3651
        %v3816 = vadd.f32 %v3815, %v3652
        %v3817 = vadd.f32 %v3816, %v3653
        %v3818 = vadd.f32 %v3817, %v3654
        %3819 = vadd.xlane.f32.xlu0 %v3818
        %v3820 = vpop.xlane.xlu0 %3819
        %v3821 = vadd.f32 %v3655, %v3656
        %v3822 = vadd.f32 %v3821, %v3657
        %v3823 = vadd.f32 %v3822, %v3658
        %v3824 = vadd.f32 %v3823, %v3659
        %v3825 = vadd.f32 %v3824, %v3660
        %3826 = vadd.xlane.f32.xlu0 %v3825
        %v3827 = vpop.xlane.xlu0 %3826
        %v3828 = vadd.f32 %v3661, %v3662
        %v3829 = vadd.f32 %v3828, %v3663
        %v3830 = vadd.f32 %v3829, %v3664
        %v3831 = vadd.f32 %v3830, %v3665
        %v3832 = vadd.f32 %v3831, %v3666
        %3833 = vadd.xlane.f32.xlu0 %v3832
        %v3834 = vpop.xlane.xlu0 %3833
        %v3835 = vadd.f32 %v3667, %v3668
        %v3836 = vadd.f32 %v3835, %v3669
        %v3837 = vadd.f32 %v3836, %v3670
        %v3838 = vadd.f32 %v3837, %v3671
        %v3839 = vadd.f32 %v3838, %v3672
        %3840 = vadd.xlane.f32.xlu0 %v3839
        %v3841 = vpop.xlane.xlu0 %3840
        %v3842 = vadd.f32 %v3673, %v3674
        %v3843 = vadd.f32 %v3842, %v3675
        %v3844 = vadd.f32 %v3843, %v3676
        %v3845 = vadd.f32 %v3844, %v3677
        %v3846 = vadd.f32 %v3845, %v3678
        %3847 = vadd.xlane.f32.xlu0 %v3846
        %v3848 = vpop.xlane.xlu0 %3847
        %v3849 = vadd.f32 %v3679, %v3680
        %v3850 = vadd.f32 %v3849, %v3681
        %v3851 = vadd.f32 %v3850, %v3682
        %v3852 = vadd.f32 %v3851, %v3683
        %v3853 = vadd.f32 %v3852, %v3684
        %3854 = vadd.xlane.f32.xlu0 %v3853
        %v3855 = vpop.xlane.xlu0 %3854
        %v3856 = vadd.f32 %v3685, %v3686
        %v3857 = vadd.f32 %v3856, %v3687
        %v3858 = vadd.f32 %v3857, %v3688
        %v3859 = vadd.f32 %v3858, %v3689
        %v3860 = vadd.f32 %v3859, %v3690
        %3861 = vadd.xlane.f32.xlu0 %v3860
        %v3862 = vpop.xlane.xlu0 %3861
        %v3863 = vadd.f32 %v3691, %v3692
        %v3864 = vadd.f32 %v3863, %v3693
        %v3865 = vadd.f32 %v3864, %v3694
        %v3866 = vadd.f32 %v3865, %v3695
        %v3867 = vadd.f32 %v3866, %v3696
        %3868 = vadd.xlane.f32.xlu0 %v3867
        %v3869 = vpop.xlane.xlu0 %3868
        %v3870 = vadd.f32 %v3697, %v3698
        %v3871 = vadd.f32 %v3870, %v3699
        %v3872 = vadd.f32 %v3871, %v3700
        %v3873 = vadd.f32 %v3872, %v3701
        %v3874 = vadd.f32 %v3873, %v3702
        %3875 = vadd.xlane.f32.xlu0 %v3874
        %v3876 = vpop.xlane.xlu0 %3875
        %v3877 = vadd.f32 %v3703, %v3704
        %v3878 = vadd.f32 %v3877, %v3705
        %v3879 = vadd.f32 %v3878, %v3706
        %v3880 = vadd.f32 %v3879, %v3707
        %v3881 = vadd.f32 %v3880, %v3708
        %3882 = vadd.xlane.f32.xlu0 %v3881
        %v3883 = vpop.xlane.xlu0 %3882
        %v3884 = vmul.f32 %v3715, %v3383
        %v3885 = vmul.f32 %v3722, %v3383
        %v3886 = vmul.f32 %v3729, %v3383
        %v3887 = vmul.f32 %v3736, %v3383
        %v3888 = vmul.f32 %v3743, %v3383
        %v3889 = vmul.f32 %v3750, %v3383
        %v3890 = vmul.f32 %v3757, %v3383
        %v3891 = vmul.f32 %v3764, %v3383
        %v3892 = vmul.f32 %v3771, %v3383
        %v3893 = vmul.f32 %v3778, %v3383
        %v3894 = vmul.f32 %v3785, %v3383
        %v3895 = vmul.f32 %v3792, %v3383
        %v3896 = vmul.f32 %v3799, %v3383
        %v3897 = vmul.f32 %v3806, %v3383
        %v3898 = vmul.f32 %v3813, %v3383
        %v3899 = vmul.f32 %v3820, %v3383
        %v3900 = vmul.f32 %v3827, %v3383
        %v3901 = vmul.f32 %v3834, %v3383
        %v3902 = vmul.f32 %v3841, %v3383
        %v3903 = vmul.f32 %v3848, %v3383
        %v3904 = vmul.f32 %v3855, %v3383
        %v3905 = vmul.f32 %v3862, %v3383
        %v3906 = vmul.f32 %v3869, %v3383
        %v3907 = vmul.f32 %v3876, %v3383
        %v3908 = vmul.f32 %v3883, %v3383
        %v3909 = vadd.f32 %v3884, 1e-05
        %v3910 = vadd.f32 %v3885, 1e-05
        %v3911 = vadd.f32 %v3886, 1e-05
        %v3912 = vadd.f32 %v3887, 1e-05
        %v3913 = vadd.f32 %v3888, 1e-05
        %v3914 = vadd.f32 %v3889, 1e-05
        %v3915 = vadd.f32 %v3890, 1e-05
        %v3916 = vadd.f32 %v3891, 1e-05
        %v3917 = vadd.f32 %v3892, 1e-05
        %v3918 = vadd.f32 %v3893, 1e-05
        %v3919 = vadd.f32 %v3894, 1e-05
        %v3920 = vadd.f32 %v3895, 1e-05
        %v3921 = vadd.f32 %v3896, 1e-05
        %v3922 = vadd.f32 %v3897, 1e-05
        %v3923 = vadd.f32 %v3898, 1e-05
        %v3924 = vadd.f32 %v3899, 1e-05
        %v3925 = vadd.f32 %v3900, 1e-05
        %v3926 = vadd.f32 %v3901, 1e-05
        %v3927 = vadd.f32 %v3902, 1e-05
        %v3928 = vadd.f32 %v3903, 1e-05
        %v3929 = vadd.f32 %v3904, 1e-05
        %v3930 = vadd.f32 %v3905, 1e-05
        %v3931 = vadd.f32 %v3906, 1e-05
        %v3932 = vadd.f32 %v3907, 1e-05
        %v3933 = vadd.f32 %v3908, 1e-05
        %v3934 = vrsqrt.pop %v3909
        %v3935 = vmul.f32 %v3934, %v3909
        %v3936 = vmul.f32 %v3935, %v3934
        %v3937 = vmul.f32 0.5, %v3936
        %v3938 = vsub.f32 1.5, %v3937
        %v3939 = vmul.f32 %v3934, %v3938
        %vm3940 = vweird.f32 %v3909
        %vm3941 = vweird.f32 %v3934
        %vm3942 = vmor %vm3940, %vm3941
        %v3943 = vsel %vm3942, %v3934, %v3939
        %v3944 = vrsqrt.pop %v3910
        %v3945 = vmul.f32 %v3944, %v3910
        %v3946 = vmul.f32 %v3945, %v3944
        %v3947 = vmul.f32 0.5, %v3946
        %v3948 = vsub.f32 1.5, %v3947
        %v3949 = vmul.f32 %v3944, %v3948
        %vm3950 = vweird.f32 %v3910
        %vm3951 = vweird.f32 %v3944
        %vm3952 = vmor %vm3950, %vm3951
        %v3953 = vsel %vm3952, %v3944, %v3949
        %v3954 = vrsqrt.pop %v3911
        %v3955 = vmul.f32 %v3954, %v3911
        %v3956 = vmul.f32 %v3955, %v3954
        %v3957 = vmul.f32 0.5, %v3956
        %v3958 = vsub.f32 1.5, %v3957
        %v3959 = vmul.f32 %v3954, %v3958
        %vm3960 = vweird.f32 %v3911
        %vm3961 = vweird.f32 %v3954
        %vm3962 = vmor %vm3960, %vm3961
        %v3963 = vsel %vm3962, %v3954, %v3959
        %v3964 = vrsqrt.pop %v3912
        %v3965 = vmul.f32 %v3964, %v3912
        %v3966 = vmul.f32 %v3965, %v3964
        %v3967 = vmul.f32 0.5, %v3966
        %v3968 = vsub.f32 1.5, %v3967
        %v3969 = vmul.f32 %v3964, %v3968
        %vm3970 = vweird.f32 %v3912
        %vm3971 = vweird.f32 %v3964
        %vm3972 = vmor %vm3970, %vm3971
        %v3973 = vsel %vm3972, %v3964, %v3969
        %v3974 = vrsqrt.pop %v3913
        %v3975 = vmul.f32 %v3974, %v3913
        %v3976 = vmul.f32 %v3975, %v3974
        %v3977 = vmul.f32 0.5, %v3976
        %v3978 = vsub.f32 1.5, %v3977
        %v3979 = vmul.f32 %v3974, %v3978
        %vm3980 = vweird.f32 %v3913
        %vm3981 = vweird.f32 %v3974
        %vm3982 = vmor %vm3980, %vm3981
        %v3983 = vsel %vm3982, %v3974, %v3979
        %v3984 = vrsqrt.pop %v3914
        %v3985 = vmul.f32 %v3984, %v3914
        %v3986 = vmul.f32 %v3985, %v3984
        %v3987 = vmul.f32 0.5, %v3986
        %v3988 = vsub.f32 1.5, %v3987
        %v3989 = vmul.f32 %v3984, %v3988
        %vm3990 = vweird.f32 %v3914
        %vm3991 = vweird.f32 %v3984
        %vm3992 = vmor %vm3990, %vm3991
        %v3993 = vsel %vm3992, %v3984, %v3989
        %v3994 = vrsqrt.pop %v3915
        %v3995 = vmul.f32 %v3994, %v3915
        %v3996 = vmul.f32 %v3995, %v3994
        %v3997 = vmul.f32 0.5, %v3996
        %v3998 = vsub.f32 1.5, %v3997
        %v3999 = vmul.f32 %v3994, %v3998
        %vm4000 = vweird.f32 %v3915
        %vm4001 = vweird.f32 %v3994
        %vm4002 = vmor %vm4000, %vm4001
        %v4003 = vsel %vm4002, %v3994, %v3999
        %v4004 = vrsqrt.pop %v3916
        %v4005 = vmul.f32 %v4004, %v3916
        %v4006 = vmul.f32 %v4005, %v4004
        %v4007 = vmul.f32 0.5, %v4006
        %v4008 = vsub.f32 1.5, %v4007
        %v4009 = vmul.f32 %v4004, %v4008
        %vm4010 = vweird.f32 %v3916
        %vm4011 = vweird.f32 %v4004
        %vm4012 = vmor %vm4010, %vm4011
        %v4013 = vsel %vm4012, %v4004, %v4009
        %v4014 = vrsqrt.pop %v3917
        %v4015 = vmul.f32 %v4014, %v3917
        %v4016 = vmul.f32 %v4015, %v4014
        %v4017 = vmul.f32 0.5, %v4016
        %v4018 = vsub.f32 1.5, %v4017
        %v4019 = vmul.f32 %v4014, %v4018
        %vm4020 = vweird.f32 %v3917
        %vm4021 = vweird.f32 %v4014
        %vm4022 = vmor %vm4020, %vm4021
        %v4023 = vsel %vm4022, %v4014, %v4019
        %v4024 = vrsqrt.pop %v3918
        %v4025 = vmul.f32 %v4024, %v3918
        %v4026 = vmul.f32 %v4025, %v4024
        %v4027 = vmul.f32 0.5, %v4026
        %v4028 = vsub.f32 1.5, %v4027
        %v4029 = vmul.f32 %v4024, %v4028
        %vm4030 = vweird.f32 %v3918
        %vm4031 = vweird.f32 %v4024
        %vm4032 = vmor %vm4030, %vm4031
        %v4033 = vsel %vm4032, %v4024, %v4029
        %v4034 = vrsqrt.pop %v3919
        %v4035 = vmul.f32 %v4034, %v3919
        %v4036 = vmul.f32 %v4035, %v4034
        %v4037 = vmul.f32 0.5, %v4036
        %v4038 = vsub.f32 1.5, %v4037
        %v4039 = vmul.f32 %v4034, %v4038
        %vm4040 = vweird.f32 %v3919
        %vm4041 = vweird.f32 %v4034
        %vm4042 = vmor %vm4040, %vm4041
        %v4043 = vsel %vm4042, %v4034, %v4039
        %v4044 = vrsqrt.pop %v3920
        %v4045 = vmul.f32 %v4044, %v3920
        %v4046 = vmul.f32 %v4045, %v4044
        %v4047 = vmul.f32 0.5, %v4046
        %v4048 = vsub.f32 1.5, %v4047
        %v4049 = vmul.f32 %v4044, %v4048
        %vm4050 = vweird.f32 %v3920
        %vm4051 = vweird.f32 %v4044
        %vm4052 = vmor %vm4050, %vm4051
        %v4053 = vsel %vm4052, %v4044, %v4049
        %v4054 = vrsqrt.pop %v3921
        %v4055 = vmul.f32 %v4054, %v3921
        %v4056 = vmul.f32 %v4055, %v4054
        %v4057 = vmul.f32 0.5, %v4056
        %v4058 = vsub.f32 1.5, %v4057
        %v4059 = vmul.f32 %v4054, %v4058
        %vm4060 = vweird.f32 %v3921
        %vm4061 = vweird.f32 %v4054
        %vm4062 = vmor %vm4060, %vm4061
        %v4063 = vsel %vm4062, %v4054, %v4059
        %v4064 = vrsqrt.pop %v3922
        %v4065 = vmul.f32 %v4064, %v3922
        %v4066 = vmul.f32 %v4065, %v4064
        %v4067 = vmul.f32 0.5, %v4066
        %v4068 = vsub.f32 1.5, %v4067
        %v4069 = vmul.f32 %v4064, %v4068
        %vm4070 = vweird.f32 %v3922
        %vm4071 = vweird.f32 %v4064
        %vm4072 = vmor %vm4070, %vm4071
        %v4073 = vsel %vm4072, %v4064, %v4069
        %v4074 = vrsqrt.pop %v3923
        %v4075 = vmul.f32 %v4074, %v3923
        %v4076 = vmul.f32 %v4075, %v4074
        %v4077 = vmul.f32 0.5, %v4076
        %v4078 = vsub.f32 1.5, %v4077
        %v4079 = vmul.f32 %v4074, %v4078
        %vm4080 = vweird.f32 %v3923
        %vm4081 = vweird.f32 %v4074
        %vm4082 = vmor %vm4080, %vm4081
        %v4083 = vsel %vm4082, %v4074, %v4079
        %v4084 = vrsqrt.pop %v3924
        %v4085 = vmul.f32 %v4084, %v3924
        %v4086 = vmul.f32 %v4085, %v4084
        %v4087 = vmul.f32 0.5, %v4086
        %v4088 = vsub.f32 1.5, %v4087
        %v4089 = vmul.f32 %v4084, %v4088
        %vm4090 = vweird.f32 %v3924
        %vm4091 = vweird.f32 %v4084
        %vm4092 = vmor %vm4090, %vm4091
        %v4093 = vsel %vm4092, %v4084, %v4089
        %v4094 = vrsqrt.pop %v3925
        %v4095 = vmul.f32 %v4094, %v3925
        %v4096 = vmul.f32 %v4095, %v4094
        %v4097 = vmul.f32 0.5, %v4096
        %v4098 = vsub.f32 1.5, %v4097
        %v4099 = vmul.f32 %v4094, %v4098
        %vm4100 = vweird.f32 %v3925
        %vm4101 = vweird.f32 %v4094
        %vm4102 = vmor %vm4100, %vm4101
        %v4103 = vsel %vm4102, %v4094, %v4099
        %v4104 = vrsqrt.pop %v3926
        %v4105 = vmul.f32 %v4104, %v3926
        %v4106 = vmul.f32 %v4105, %v4104
        %v4107 = vmul.f32 0.5, %v4106
        %v4108 = vsub.f32 1.5, %v4107
        %v4109 = vmul.f32 %v4104, %v4108
        %vm4110 = vweird.f32 %v3926
        %vm4111 = vweird.f32 %v4104
        %vm4112 = vmor %vm4110, %vm4111
        %v4113 = vsel %vm4112, %v4104, %v4109
        %v4114 = vrsqrt.pop %v3927
        %v4115 = vmul.f32 %v4114, %v3927
        %v4116 = vmul.f32 %v4115, %v4114
        %v4117 = vmul.f32 0.5, %v4116
        %v4118 = vsub.f32 1.5, %v4117
        %v4119 = vmul.f32 %v4114, %v4118
        %vm4120 = vweird.f32 %v3927
        %vm4121 = vweird.f32 %v4114
        %vm4122 = vmor %vm4120, %vm4121
        %v4123 = vsel %vm4122, %v4114, %v4119
        %v4124 = vrsqrt.pop %v3928
        %v4125 = vmul.f32 %v4124, %v3928
        %v4126 = vmul.f32 %v4125, %v4124
        %v4127 = vmul.f32 0.5, %v4126
        %v4128 = vsub.f32 1.5, %v4127
        %v4129 = vmul.f32 %v4124, %v4128
        %vm4130 = vweird.f32 %v3928
        %vm4131 = vweird.f32 %v4124
        %vm4132 = vmor %vm4130, %vm4131
        %v4133 = vsel %vm4132, %v4124, %v4129
        %v4134 = vrsqrt.pop %v3929
        %v4135 = vmul.f32 %v4134, %v3929
        %v4136 = vmul.f32 %v4135, %v4134
        %v4137 = vmul.f32 0.5, %v4136
        %v4138 = vsub.f32 1.5, %v4137
        %v4139 = vmul.f32 %v4134, %v4138
        %vm4140 = vweird.f32 %v3929
        %vm4141 = vweird.f32 %v4134
        %vm4142 = vmor %vm4140, %vm4141
        %v4143 = vsel %vm4142, %v4134, %v4139
        %v4144 = vrsqrt.pop %v3930
        %v4145 = vmul.f32 %v4144, %v3930
        %v4146 = vmul.f32 %v4145, %v4144
        %v4147 = vmul.f32 0.5, %v4146
        %v4148 = vsub.f32 1.5, %v4147
        %v4149 = vmul.f32 %v4144, %v4148
        %vm4150 = vweird.f32 %v3930
        %vm4151 = vweird.f32 %v4144
        %vm4152 = vmor %vm4150, %vm4151
        %v4153 = vsel %vm4152, %v4144, %v4149
        %v4154 = vrsqrt.pop %v3931
        %v4155 = vmul.f32 %v4154, %v3931
        %v4156 = vmul.f32 %v4155, %v4154
        %v4157 = vmul.f32 0.5, %v4156
        %v4158 = vsub.f32 1.5, %v4157
        %v4159 = vmul.f32 %v4154, %v4158
        %vm4160 = vweird.f32 %v3931
        %vm4161 = vweird.f32 %v4154
        %vm4162 = vmor %vm4160, %vm4161
        %v4163 = vsel %vm4162, %v4154, %v4159
        %v4164 = vrsqrt.pop %v3932
        %v4165 = vmul.f32 %v4164, %v3932
        %v4166 = vmul.f32 %v4165, %v4164
        %v4167 = vmul.f32 0.5, %v4166
        %v4168 = vsub.f32 1.5, %v4167
        %v4169 = vmul.f32 %v4164, %v4168
        %vm4170 = vweird.f32 %v3932
        %vm4171 = vweird.f32 %v4164
        %vm4172 = vmor %vm4170, %vm4171
        %v4173 = vsel %vm4172, %v4164, %v4169
        %v4174 = vrsqrt.pop %v3933
        %v4175 = vmul.f32 %v4174, %v3933
        %v4176 = vmul.f32 %v4175, %v4174
        %v4177 = vmul.f32 0.5, %v4176
        %v4178 = vsub.f32 1.5, %v4177
        %v4179 = vmul.f32 %v4174, %v4178
        %vm4180 = vweird.f32 %v3933
        %vm4181 = vweird.f32 %v4174
        %vm4182 = vmor %vm4180, %vm4181
        %v4183 = vsel %vm4182, %v4174, %v4179
        %v4184 = vmul.f32 %v3409, %v3943
        %v4185 = vmul.f32 %v3410, %v3943
        %v4186 = vmul.f32 %v3411, %v3943
        %v4187 = vmul.f32 %v3412, %v3943
        %v4188 = vmul.f32 %v3413, %v3943
        %v4189 = vmul.f32 %v3414, %v3943
        %v4190 = vmul.f32 %v3415, %v3953
        %v4191 = vmul.f32 %v3416, %v3953
        %v4192 = vmul.f32 %v3417, %v3953
        %v4193 = vmul.f32 %v3418, %v3953
        %v4194 = vmul.f32 %v3419, %v3953
        %v4195 = vmul.f32 %v3420, %v3953
        %v4196 = vmul.f32 %v3421, %v3963
        %v4197 = vmul.f32 %v3422, %v3963
        %v4198 = vmul.f32 %v3423, %v3963
        %v4199 = vmul.f32 %v3424, %v3963
        %v4200 = vmul.f32 %v3425, %v3963
        %v4201 = vmul.f32 %v3426, %v3963
        %v4202 = vmul.f32 %v3427, %v3973
        %v4203 = vmul.f32 %v3428, %v3973
        %v4204 = vmul.f32 %v3429, %v3973
        %v4205 = vmul.f32 %v3430, %v3973
        %v4206 = vmul.f32 %v3431, %v3973
        %v4207 = vmul.f32 %v3432, %v3973
        %v4208 = vmul.f32 %v3433, %v3983
        %v4209 = vmul.f32 %v3434, %v3983
        %v4210 = vmul.f32 %v3435, %v3983
        %v4211 = vmul.f32 %v3436, %v3983
        %v4212 = vmul.f32 %v3437, %v3983
        %v4213 = vmul.f32 %v3438, %v3983
        %v4214 = vmul.f32 %v3439, %v3993
        %v4215 = vmul.f32 %v3440, %v3993
        %v4216 = vmul.f32 %v3441, %v3993
        %v4217 = vmul.f32 %v3442, %v3993
        %v4218 = vmul.f32 %v3443, %v3993
        %v4219 = vmul.f32 %v3444, %v3993
        %v4220 = vmul.f32 %v3445, %v4003
        %v4221 = vmul.f32 %v3446, %v4003
        %v4222 = vmul.f32 %v3447, %v4003
        %v4223 = vmul.f32 %v3448, %v4003
        %v4224 = vmul.f32 %v3449, %v4003
        %v4225 = vmul.f32 %v3450, %v4003
        %v4226 = vmul.f32 %v3451, %v4013
        %v4227 = vmul.f32 %v3452, %v4013
        %v4228 = vmul.f32 %v3453, %v4013
        %v4229 = vmul.f32 %v3454, %v4013
        %v4230 = vmul.f32 %v3455, %v4013
        %v4231 = vmul.f32 %v3456, %v4013
        %v4232 = vmul.f32 %v3457, %v4023
        %v4233 = vmul.f32 %v3458, %v4023
        %v4234 = vmul.f32 %v3459, %v4023
        %v4235 = vmul.f32 %v3460, %v4023
        %v4236 = vmul.f32 %v3461, %v4023
        %v4237 = vmul.f32 %v3462, %v4023
        %v4238 = vmul.f32 %v3463, %v4033
        %v4239 = vmul.f32 %v3464, %v4033
        %v4240 = vmul.f32 %v3465, %v4033
        %v4241 = vmul.f32 %v3466, %v4033
        %v4242 = vmul.f32 %v3467, %v4033
        %v4243 = vmul.f32 %v3468, %v4033
        %v4244 = vmul.f32 %v3469, %v4043
        %v4245 = vmul.f32 %v3470, %v4043
        %v4246 = vmul.f32 %v3471, %v4043
        %v4247 = vmul.f32 %v3472, %v4043
        %v4248 = vmul.f32 %v3473, %v4043
        %v4249 = vmul.f32 %v3474, %v4043
        %v4250 = vmul.f32 %v3475, %v4053
        %v4251 = vmul.f32 %v3476, %v4053
        %v4252 = vmul.f32 %v3477, %v4053
        %v4253 = vmul.f32 %v3478, %v4053
        %v4254 = vmul.f32 %v3479, %v4053
        %v4255 = vmul.f32 %v3480, %v4053
        %v4256 = vmul.f32 %v3481, %v4063
        %v4257 = vmul.f32 %v3482, %v4063
        %v4258 = vmul.f32 %v3483, %v4063
        %v4259 = vmul.f32 %v3484, %v4063
        %v4260 = vmul.f32 %v3485, %v4063
        %v4261 = vmul.f32 %v3486, %v4063
        %v4262 = vmul.f32 %v3487, %v4073
        %v4263 = vmul.f32 %v3488, %v4073
        %v4264 = vmul.f32 %v3489, %v4073
        %v4265 = vmul.f32 %v3490, %v4073
        %v4266 = vmul.f32 %v3491, %v4073
        %v4267 = vmul.f32 %v3492, %v4073
        %v4268 = vmul.f32 %v3493, %v4083
        %v4269 = vmul.f32 %v3494, %v4083
        %v4270 = vmul.f32 %v3495, %v4083
        %v4271 = vmul.f32 %v3496, %v4083
        %v4272 = vmul.f32 %v3497, %v4083
        %v4273 = vmul.f32 %v3498, %v4083
        %v4274 = vmul.f32 %v3499, %v4093
        %v4275 = vmul.f32 %v3500, %v4093
        %v4276 = vmul.f32 %v3501, %v4093
        %v4277 = vmul.f32 %v3502, %v4093
        %v4278 = vmul.f32 %v3503, %v4093
        %v4279 = vmul.f32 %v3504, %v4093
        %v4280 = vmul.f32 %v3505, %v4103
        %v4281 = vmul.f32 %v3506, %v4103
        %v4282 = vmul.f32 %v3507, %v4103
        %v4283 = vmul.f32 %v3508, %v4103
        %v4284 = vmul.f32 %v3509, %v4103
        %v4285 = vmul.f32 %v3510, %v4103
        %v4286 = vmul.f32 %v3511, %v4113
        %v4287 = vmul.f32 %v3512, %v4113
        %v4288 = vmul.f32 %v3513, %v4113
        %v4289 = vmul.f32 %v3514, %v4113
        %v4290 = vmul.f32 %v3515, %v4113
        %v4291 = vmul.f32 %v3516, %v4113
        %v4292 = vmul.f32 %v3517, %v4123
        %v4293 = vmul.f32 %v3518, %v4123
        %v4294 = vmul.f32 %v3519, %v4123
        %v4295 = vmul.f32 %v3520, %v4123
        %v4296 = vmul.f32 %v3521, %v4123
        %v4297 = vmul.f32 %v3522, %v4123
        %v4298 = vmul.f32 %v3523, %v4133
        %v4299 = vmul.f32 %v3524, %v4133
        %v4300 = vmul.f32 %v3525, %v4133
        %v4301 = vmul.f32 %v3526, %v4133
        %v4302 = vmul.f32 %v3527, %v4133
        %v4303 = vmul.f32 %v3528, %v4133
        %v4304 = vmul.f32 %v3529, %v4143
        %v4305 = vmul.f32 %v3530, %v4143
        %v4306 = vmul.f32 %v3531, %v4143
        %v4307 = vmul.f32 %v3532, %v4143
        %v4308 = vmul.f32 %v3533, %v4143
        %v4309 = vmul.f32 %v3534, %v4143
        %v4310 = vmul.f32 %v3535, %v4153
        %v4311 = vmul.f32 %v3536, %v4153
        %v4312 = vmul.f32 %v3537, %v4153
        %v4313 = vmul.f32 %v3538, %v4153
        %v4314 = vmul.f32 %v3539, %v4153
        %v4315 = vmul.f32 %v3540, %v4153
        %v4316 = vmul.f32 %v3541, %v4163
        %v4317 = vmul.f32 %v3542, %v4163
        %v4318 = vmul.f32 %v3543, %v4163
        %v4319 = vmul.f32 %v3544, %v4163
        %v4320 = vmul.f32 %v3545, %v4163
        %v4321 = vmul.f32 %v3546, %v4163
        %v4322 = vmul.f32 %v3547, %v4173
        %v4323 = vmul.f32 %v3548, %v4173
        %v4324 = vmul.f32 %v3549, %v4173
        %v4325 = vmul.f32 %v3550, %v4173
        %v4326 = vmul.f32 %v3551, %v4173
        %v4327 = vmul.f32 %v3552, %v4173
        %v4328 = vmul.f32 %v3553, %v4183
        %v4329 = vmul.f32 %v3554, %v4183
        %v4330 = vmul.f32 %v3555, %v4183
        %v4331 = vmul.f32 %v3556, %v4183
        %v4332 = vmul.f32 %v3557, %v4183
        %v4333 = vmul.f32 %v3558, %v4183
        %v4335 = vperm.slane %v3200, 0
        %v4336 = vperm.slane %v3200, 1
        %v4337 = vperm.slane %v3200, 2
        %v4338 = vperm.slane %v3200, 3
        %v4339 = vperm.slane %v3200, 4
        %v4340 = vperm.slane %v3200, 5
        %v4347 = vmul.f32 %v4184, %v4335
        %v4348 = vmul.f32 %v4185, %v4336
        %v4349 = vmul.f32 %v4186, %v4337
        %v4350 = vmul.f32 %v4187, %v4338
        %v4351 = vmul.f32 %v4188, %v4339
        %v4352 = vmul.f32 %v4189, %v4340
        %v4353 = vmul.f32 %v4190, %v4335
        %v4354 = vmul.f32 %v4191, %v4336
        %v4355 = vmul.f32 %v4192, %v4337
        %v4356 = vmul.f32 %v4193, %v4338
        %v4357 = vmul.f32 %v4194, %v4339
        %v4358 = vmul.f32 %v4195, %v4340
        %v4359 = vmul.f32 %v4196, %v4335
        %v4360 = vmul.f32 %v4197, %v4336
        %v4361 = vmul.f32 %v4198, %v4337
        %v4362 = vmul.f32 %v4199, %v4338
        %v4363 = vmul.f32 %v4200, %v4339
        %v4364 = vmul.f32 %v4201, %v4340
        %v4365 = vmul.f32 %v4202, %v4335
        %v4366 = vmul.f32 %v4203, %v4336
        %v4367 = vmul.f32 %v4204, %v4337
        %v4368 = vmul.f32 %v4205, %v4338
        %v4369 = vmul.f32 %v4206, %v4339
        %v4370 = vmul.f32 %v4207, %v4340
        %v4371 = vmul.f32 %v4208, %v4335
        %v4372 = vmul.f32 %v4209, %v4336
        %v4373 = vmul.f32 %v4210, %v4337
        %v4374 = vmul.f32 %v4211, %v4338
        %v4375 = vmul.f32 %v4212, %v4339
        %v4376 = vmul.f32 %v4213, %v4340
        %v4377 = vmul.f32 %v4214, %v4335
        %v4378 = vmul.f32 %v4215, %v4336
        %v4379 = vmul.f32 %v4216, %v4337
        %v4380 = vmul.f32 %v4217, %v4338
        %v4381 = vmul.f32 %v4218, %v4339
        %v4382 = vmul.f32 %v4219, %v4340
        %v4383 = vmul.f32 %v4220, %v4335
        %v4384 = vmul.f32 %v4221, %v4336
        %v4385 = vmul.f32 %v4222, %v4337
        %v4386 = vmul.f32 %v4223, %v4338
        %v4387 = vmul.f32 %v4224, %v4339
        %v4388 = vmul.f32 %v4225, %v4340
        %v4389 = vmul.f32 %v4226, %v4335
        %v4390 = vmul.f32 %v4227, %v4336
        %v4391 = vmul.f32 %v4228, %v4337
        %v4392 = vmul.f32 %v4229, %v4338
        %v4393 = vmul.f32 %v4230, %v4339
        %v4394 = vmul.f32 %v4231, %v4340
        %v4395 = vmul.f32 %v4232, %v4335
        %v4396 = vmul.f32 %v4233, %v4336
        %v4397 = vmul.f32 %v4234, %v4337
        %v4398 = vmul.f32 %v4235, %v4338
        %v4399 = vmul.f32 %v4236, %v4339
        %v4400 = vmul.f32 %v4237, %v4340
        %v4401 = vmul.f32 %v4238, %v4335
        %v4402 = vmul.f32 %v4239, %v4336
        %v4403 = vmul.f32 %v4240, %v4337
        %v4404 = vmul.f32 %v4241, %v4338
        %v4405 = vmul.f32 %v4242, %v4339
        %v4406 = vmul.f32 %v4243, %v4340
        %v4407 = vmul.f32 %v4244, %v4335
        %v4408 = vmul.f32 %v4245, %v4336
        %v4409 = vmul.f32 %v4246, %v4337
        %v4410 = vmul.f32 %v4247, %v4338
        %v4411 = vmul.f32 %v4248, %v4339
        %v4412 = vmul.f32 %v4249, %v4340
        %v4413 = vmul.f32 %v4250, %v4335
        %v4414 = vmul.f32 %v4251, %v4336
        %v4415 = vmul.f32 %v4252, %v4337
        %v4416 = vmul.f32 %v4253, %v4338
        %v4417 = vmul.f32 %v4254, %v4339
        %v4418 = vmul.f32 %v4255, %v4340
        %v4419 = vmul.f32 %v4256, %v4335
        %v4420 = vmul.f32 %v4257, %v4336
        %v4421 = vmul.f32 %v4258, %v4337
        %v4422 = vmul.f32 %v4259, %v4338
        %v4423 = vmul.f32 %v4260, %v4339
        %v4424 = vmul.f32 %v4261, %v4340
        %v4425 = vmul.f32 %v4262, %v4335
        %v4426 = vmul.f32 %v4263, %v4336
        %v4427 = vmul.f32 %v4264, %v4337
        %v4428 = vmul.f32 %v4265, %v4338
        %v4429 = vmul.f32 %v4266, %v4339
        %v4430 = vmul.f32 %v4267, %v4340
        %v4431 = vmul.f32 %v4268, %v4335
        %v4432 = vmul.f32 %v4269, %v4336
        %v4433 = vmul.f32 %v4270, %v4337
        %v4434 = vmul.f32 %v4271, %v4338
        %v4435 = vmul.f32 %v4272, %v4339
        %v4436 = vmul.f32 %v4273, %v4340
        %v4437 = vmul.f32 %v4274, %v4335
        %v4438 = vmul.f32 %v4275, %v4336
        %v4439 = vmul.f32 %v4276, %v4337
        %v4440 = vmul.f32 %v4277, %v4338
        %v4441 = vmul.f32 %v4278, %v4339
        %v4442 = vmul.f32 %v4279, %v4340
        %v4443 = vmul.f32 %v4280, %v4335
        %v4444 = vmul.f32 %v4281, %v4336
        %v4445 = vmul.f32 %v4282, %v4337
        %v4446 = vmul.f32 %v4283, %v4338
        %v4447 = vmul.f32 %v4284, %v4339
        %v4448 = vmul.f32 %v4285, %v4340
        %v4449 = vmul.f32 %v4286, %v4335
        %v4450 = vmul.f32 %v4287, %v4336
        %v4451 = vmul.f32 %v4288, %v4337
        %v4452 = vmul.f32 %v4289, %v4338
        %v4453 = vmul.f32 %v4290, %v4339
        %v4454 = vmul.f32 %v4291, %v4340
        %v4455 = vmul.f32 %v4292, %v4335
        %v4456 = vmul.f32 %v4293, %v4336
        %v4457 = vmul.f32 %v4294, %v4337
        %v4458 = vmul.f32 %v4295, %v4338
        %v4459 = vmul.f32 %v4296, %v4339
        %v4460 = vmul.f32 %v4297, %v4340
        %v4461 = vmul.f32 %v4298, %v4335
        %v4462 = vmul.f32 %v4299, %v4336
        %v4463 = vmul.f32 %v4300, %v4337
        %v4464 = vmul.f32 %v4301, %v4338
        %v4465 = vmul.f32 %v4302, %v4339
        %v4466 = vmul.f32 %v4303, %v4340
        %v4467 = vmul.f32 %v4304, %v4335
        %v4468 = vmul.f32 %v4305, %v4336
        %v4469 = vmul.f32 %v4306, %v4337
        %v4470 = vmul.f32 %v4307, %v4338
        %v4471 = vmul.f32 %v4308, %v4339
        %v4472 = vmul.f32 %v4309, %v4340
        %v4473 = vmul.f32 %v4310, %v4335
        %v4474 = vmul.f32 %v4311, %v4336
        %v4475 = vmul.f32 %v4312, %v4337
        %v4476 = vmul.f32 %v4313, %v4338
        %v4477 = vmul.f32 %v4314, %v4339
        %v4478 = vmul.f32 %v4315, %v4340
        %v4479 = vmul.f32 %v4316, %v4335
        %v4480 = vmul.f32 %v4317, %v4336
        %v4481 = vmul.f32 %v4318, %v4337
        %v4482 = vmul.f32 %v4319, %v4338
        %v4483 = vmul.f32 %v4320, %v4339
        %v4484 = vmul.f32 %v4321, %v4340
        %v4485 = vmul.f32 %v4322, %v4335
        %v4486 = vmul.f32 %v4323, %v4336
        %v4487 = vmul.f32 %v4324, %v4337
        %v4488 = vmul.f32 %v4325, %v4338
        %v4489 = vmul.f32 %v4326, %v4339
        %v4490 = vmul.f32 %v4327, %v4340
        %v4491 = vmul.f32 %v4328, %v4335
        %v4492 = vmul.f32 %v4329, %v4336
        %v4493 = vmul.f32 %v4330, %v4337
        %v4494 = vmul.f32 %v4331, %v4338
        %v4495 = vmul.f32 %v4332, %v4339
        %v4496 = vmul.f32 %v4333, %v4340
        %v4498 = vperm.slane %v3201, 0
        %v4499 = vperm.slane %v3201, 1
        %v4500 = vperm.slane %v3201, 2
        %v4501 = vperm.slane %v3201, 3
        %v4502 = vperm.slane %v3201, 4
        %v4503 = vperm.slane %v3201, 5
        %v4510 = vadd.f32 %v4347, %v4498
        %v4511 = vadd.f32 %v4348, %v4499
        %v4512 = vadd.f32 %v4349, %v4500
        %v4513 = vadd.f32 %v4350, %v4501
        %v4514 = vadd.f32 %v4351, %v4502
        %v4515 = vadd.f32 %v4352, %v4503
        %v4516 = vadd.f32 %v4353, %v4498
        %v4517 = vadd.f32 %v4354, %v4499
        %v4518 = vadd.f32 %v4355, %v4500
        %v4519 = vadd.f32 %v4356, %v4501
        %v4520 = vadd.f32 %v4357, %v4502
        %v4521 = vadd.f32 %v4358, %v4503
        %v4522 = vadd.f32 %v4359, %v4498
        %v4523 = vadd.f32 %v4360, %v4499
        %v4524 = vadd.f32 %v4361, %v4500
        %v4525 = vadd.f32 %v4362, %v4501
        %v4526 = vadd.f32 %v4363, %v4502
        %v4527 = vadd.f32 %v4364, %v4503
        %v4528 = vadd.f32 %v4365, %v4498
        %v4529 = vadd.f32 %v4366, %v4499
        %v4530 = vadd.f32 %v4367, %v4500
        %v4531 = vadd.f32 %v4368, %v4501
        %v4532 = vadd.f32 %v4369, %v4502
        %v4533 = vadd.f32 %v4370, %v4503
        %v4534 = vadd.f32 %v4371, %v4498
        %v4535 = vadd.f32 %v4372, %v4499
        %v4536 = vadd.f32 %v4373, %v4500
        %v4537 = vadd.f32 %v4374, %v4501
        %v4538 = vadd.f32 %v4375, %v4502
        %v4539 = vadd.f32 %v4376, %v4503
        %v4540 = vadd.f32 %v4377, %v4498
        %v4541 = vadd.f32 %v4378, %v4499
        %v4542 = vadd.f32 %v4379, %v4500
        %v4543 = vadd.f32 %v4380, %v4501
        %v4544 = vadd.f32 %v4381, %v4502
        %v4545 = vadd.f32 %v4382, %v4503
        %v4546 = vadd.f32 %v4383, %v4498
        %v4547 = vadd.f32 %v4384, %v4499
        %v4548 = vadd.f32 %v4385, %v4500
        %v4549 = vadd.f32 %v4386, %v4501
        %v4550 = vadd.f32 %v4387, %v4502
        %v4551 = vadd.f32 %v4388, %v4503
        %v4552 = vadd.f32 %v4389, %v4498
        %v4553 = vadd.f32 %v4390, %v4499
        %v4554 = vadd.f32 %v4391, %v4500
        %v4555 = vadd.f32 %v4392, %v4501
        %v4556 = vadd.f32 %v4393, %v4502
        %v4557 = vadd.f32 %v4394, %v4503
        %v4558 = vadd.f32 %v4395, %v4498
        %v4559 = vadd.f32 %v4396, %v4499
        %v4560 = vadd.f32 %v4397, %v4500
        %v4561 = vadd.f32 %v4398, %v4501
        %v4562 = vadd.f32 %v4399, %v4502
        %v4563 = vadd.f32 %v4400, %v4503
        %v4564 = vadd.f32 %v4401, %v4498
        %v4565 = vadd.f32 %v4402, %v4499
        %v4566 = vadd.f32 %v4403, %v4500
        %v4567 = vadd.f32 %v4404, %v4501
        %v4568 = vadd.f32 %v4405, %v4502
        %v4569 = vadd.f32 %v4406, %v4503
        %v4570 = vadd.f32 %v4407, %v4498
        %v4571 = vadd.f32 %v4408, %v4499
        %v4572 = vadd.f32 %v4409, %v4500
        %v4573 = vadd.f32 %v4410, %v4501
        %v4574 = vadd.f32 %v4411, %v4502
        %v4575 = vadd.f32 %v4412, %v4503
        %v4576 = vadd.f32 %v4413, %v4498
        %v4577 = vadd.f32 %v4414, %v4499
        %v4578 = vadd.f32 %v4415, %v4500
        %v4579 = vadd.f32 %v4416, %v4501
        %v4580 = vadd.f32 %v4417, %v4502
        %v4581 = vadd.f32 %v4418, %v4503
        %v4582 = vadd.f32 %v4419, %v4498
        %v4583 = vadd.f32 %v4420, %v4499
        %v4584 = vadd.f32 %v4421, %v4500
        %v4585 = vadd.f32 %v4422, %v4501
        %v4586 = vadd.f32 %v4423, %v4502
        %v4587 = vadd.f32 %v4424, %v4503
        %v4588 = vadd.f32 %v4425, %v4498
        %v4589 = vadd.f32 %v4426, %v4499
        %v4590 = vadd.f32 %v4427, %v4500
        %v4591 = vadd.f32 %v4428, %v4501
        %v4592 = vadd.f32 %v4429, %v4502
        %v4593 = vadd.f32 %v4430, %v4503
        %v4594 = vadd.f32 %v4431, %v4498
        %v4595 = vadd.f32 %v4432, %v4499
        %v4596 = vadd.f32 %v4433, %v4500
        %v4597 = vadd.f32 %v4434, %v4501
        %v4598 = vadd.f32 %v4435, %v4502
        %v4599 = vadd.f32 %v4436, %v4503
        %v4600 = vadd.f32 %v4437, %v4498
        %v4601 = vadd.f32 %v4438, %v4499
        %v4602 = vadd.f32 %v4439, %v4500
        %v4603 = vadd.f32 %v4440, %v4501
        %v4604 = vadd.f32 %v4441, %v4502
        %v4605 = vadd.f32 %v4442, %v4503
        %v4606 = vadd.f32 %v4443, %v4498
        %v4607 = vadd.f32 %v4444, %v4499
        %v4608 = vadd.f32 %v4445, %v4500
        %v4609 = vadd.f32 %v4446, %v4501
        %v4610 = vadd.f32 %v4447, %v4502
        %v4611 = vadd.f32 %v4448, %v4503
        %v4612 = vadd.f32 %v4449, %v4498
        %v4613 = vadd.f32 %v4450, %v4499
        %v4614 = vadd.f32 %v4451, %v4500
        %v4615 = vadd.f32 %v4452, %v4501
        %v4616 = vadd.f32 %v4453, %v4502
        %v4617 = vadd.f32 %v4454, %v4503
        %v4618 = vadd.f32 %v4455, %v4498
        %v4619 = vadd.f32 %v4456, %v4499
        %v4620 = vadd.f32 %v4457, %v4500
        %v4621 = vadd.f32 %v4458, %v4501
        %v4622 = vadd.f32 %v4459, %v4502
        %v4623 = vadd.f32 %v4460, %v4503
        %v4624 = vadd.f32 %v4461, %v4498
        %v4625 = vadd.f32 %v4462, %v4499
        %v4626 = vadd.f32 %v4463, %v4500
        %v4627 = vadd.f32 %v4464, %v4501
        %v4628 = vadd.f32 %v4465, %v4502
        %v4629 = vadd.f32 %v4466, %v4503
        %v4630 = vadd.f32 %v4467, %v4498
        %v4631 = vadd.f32 %v4468, %v4499
        %v4632 = vadd.f32 %v4469, %v4500
        %v4633 = vadd.f32 %v4470, %v4501
        %v4634 = vadd.f32 %v4471, %v4502
        %v4635 = vadd.f32 %v4472, %v4503
        %v4636 = vadd.f32 %v4473, %v4498
        %v4637 = vadd.f32 %v4474, %v4499
        %v4638 = vadd.f32 %v4475, %v4500
        %v4639 = vadd.f32 %v4476, %v4501
        %v4640 = vadd.f32 %v4477, %v4502
        %v4641 = vadd.f32 %v4478, %v4503
        %v4642 = vadd.f32 %v4479, %v4498
        %v4643 = vadd.f32 %v4480, %v4499
        %v4644 = vadd.f32 %v4481, %v4500
        %v4645 = vadd.f32 %v4482, %v4501
        %v4646 = vadd.f32 %v4483, %v4502
        %v4647 = vadd.f32 %v4484, %v4503
        %v4648 = vadd.f32 %v4485, %v4498
        %v4649 = vadd.f32 %v4486, %v4499
        %v4650 = vadd.f32 %v4487, %v4500
        %v4651 = vadd.f32 %v4488, %v4501
        %v4652 = vadd.f32 %v4489, %v4502
        %v4653 = vadd.f32 %v4490, %v4503
        %v4654 = vadd.f32 %v4491, %v4498
        %v4655 = vadd.f32 %v4492, %v4499
        %v4656 = vadd.f32 %v4493, %v4500
        %v4657 = vadd.f32 %v4494, %v4501
        %v4658 = vadd.f32 %v4495, %v4502
        %v4659 = vadd.f32 %v4496, %v4503
        %4660 = vst [vmem:[%s390] sm:$0xff] %v4510
        %4661 = vst [vmem:[%s390 + $0x8] sm:$0xff] %v4511
        %4662 = vst [vmem:[%s390 + $0x10] sm:$0xff] %v4512
        %4663 = vst [vmem:[%s390 + $0x18] sm:$0xff] %v4513
        %4664 = vst [vmem:[%s390 + $0x20] sm:$0xff] %v4514
        %4665 = vst [vmem:[%s390 + $0x28] sm:$0xff] %v4515
        %4666 = vst [vmem:[%s390 + $0x30] sm:$0xff] %v4516
        %4667 = vst [vmem:[%s390 + $0x38] sm:$0xff] %v4517
        %4668 = vst [vmem:[%s390 + $0x40] sm:$0xff] %v4518
        %4669 = vst [vmem:[%s390 + $0x48] sm:$0xff] %v4519
        %4670 = vst [vmem:[%s390 + $0x50] sm:$0xff] %v4520
        %4671 = vst [vmem:[%s390 + $0x58] sm:$0xff] %v4521
        %4672 = vst [vmem:[%s390 + $0x60] sm:$0xff] %v4522
        %4673 = vst [vmem:[%s390 + $0x68] sm:$0xff] %v4523
        %4674 = vst [vmem:[%s390 + $0x70] sm:$0xff] %v4524
        %4675 = vst [vmem:[%s390 + $0x78] sm:$0xff] %v4525
        %4676 = vst [vmem:[%s390 + $0x80] sm:$0xff] %v4526
        %4677 = vst [vmem:[%s390 + $0x88] sm:$0xff] %v4527
        %4678 = vst [vmem:[%s390 + $0x90] sm:$0xff] %v4528
        %4679 = vst [vmem:[%s390 + $0x98] sm:$0xff] %v4529
        %4680 = vst [vmem:[%s390 + $0xa0] sm:$0xff] %v4530
        %4681 = vst [vmem:[%s390 + $0xa8] sm:$0xff] %v4531
        %4682 = vst [vmem:[%s390 + $0xb0] sm:$0xff] %v4532
        %4683 = vst [vmem:[%s390 + $0xb8] sm:$0xff] %v4533
        %4684 = vst [vmem:[%s390 + $0xc0] sm:$0xff] %v4534
        %4685 = vst [vmem:[%s390 + $0xc8] sm:$0xff] %v4535
        %4686 = vst [vmem:[%s390 + $0xd0] sm:$0xff] %v4536
        %4687 = vst [vmem:[%s390 + $0xd8] sm:$0xff] %v4537
        %4688 = vst [vmem:[%s390 + $0xe0] sm:$0xff] %v4538
        %4689 = vst [vmem:[%s390 + $0xe8] sm:$0xff] %v4539
        %4690 = vst [vmem:[%s390 + $0xf0] sm:$0xff] %v4540
        %4691 = vst [vmem:[%s390 + $0xf8] sm:$0xff] %v4541
        %4692 = vst [vmem:[%s390 + $0x100] sm:$0xff] %v4542
        %4693 = vst [vmem:[%s390 + $0x108] sm:$0xff] %v4543
        %4694 = vst [vmem:[%s390 + $0x110] sm:$0xff] %v4544
        %4695 = vst [vmem:[%s390 + $0x118] sm:$0xff] %v4545
        %4696 = vst [vmem:[%s390 + $0x120] sm:$0xff] %v4546
        %4697 = vst [vmem:[%s390 + $0x128] sm:$0xff] %v4547
        %4698 = vst [vmem:[%s390 + $0x130] sm:$0xff] %v4548
        %4699 = vst [vmem:[%s390 + $0x138] sm:$0xff] %v4549
        %4700 = vst [vmem:[%s390 + $0x140] sm:$0xff] %v4550
        %4701 = vst [vmem:[%s390 + $0x148] sm:$0xff] %v4551
        %4702 = vst [vmem:[%s390 + $0x150] sm:$0xff] %v4552
        %4703 = vst [vmem:[%s390 + $0x158] sm:$0xff] %v4553
        %4704 = vst [vmem:[%s390 + $0x160] sm:$0xff] %v4554
        %4705 = vst [vmem:[%s390 + $0x168] sm:$0xff] %v4555
        %4706 = vst [vmem:[%s390 + $0x170] sm:$0xff] %v4556
        %4707 = vst [vmem:[%s390 + $0x178] sm:$0xff] %v4557
        %4708 = vst [vmem:[%s390 + $0x180] sm:$0xff] %v4558
        %4709 = vst [vmem:[%s390 + $0x188] sm:$0xff] %v4559
        %4710 = vst [vmem:[%s390 + $0x190] sm:$0xff] %v4560
        %4711 = vst [vmem:[%s390 + $0x198] sm:$0xff] %v4561
        %4712 = vst [vmem:[%s390 + $0x1a0] sm:$0xff] %v4562
        %4713 = vst [vmem:[%s390 + $0x1a8] sm:$0xff] %v4563
        %4714 = vst [vmem:[%s390 + $0x1b0] sm:$0xff] %v4564
        %4715 = vst [vmem:[%s390 + $0x1b8] sm:$0xff] %v4565
        %4716 = vst [vmem:[%s390 + $0x1c0] sm:$0xff] %v4566
        %4717 = vst [vmem:[%s390 + $0x1c8] sm:$0xff] %v4567
        %4718 = vst [vmem:[%s390 + $0x1d0] sm:$0xff] %v4568
        %4719 = vst [vmem:[%s390 + $0x1d8] sm:$0xff] %v4569
        %4720 = vst [vmem:[%s390 + $0x1e0] sm:$0xff] %v4570
        %4721 = vst [vmem:[%s390 + $0x1e8] sm:$0xff] %v4571
        %4722 = vst [vmem:[%s390 + $0x1f0] sm:$0xff] %v4572
        %4723 = vst [vmem:[%s390 + $0x1f8] sm:$0xff] %v4573
        %4724 = vst [vmem:[%s390 + $0x200] sm:$0xff] %v4574
        %4725 = vst [vmem:[%s390 + $0x208] sm:$0xff] %v4575
        %4726 = vst [vmem:[%s390 + $0x210] sm:$0xff] %v4576
        %4727 = vst [vmem:[%s390 + $0x218] sm:$0xff] %v4577
        %4728 = vst [vmem:[%s390 + $0x220] sm:$0xff] %v4578
        %4729 = vst [vmem:[%s390 + $0x228] sm:$0xff] %v4579
        %4730 = vst [vmem:[%s390 + $0x230] sm:$0xff] %v4580
        %4731 = vst [vmem:[%s390 + $0x238] sm:$0xff] %v4581
        %4732 = vst [vmem:[%s390 + $0x240] sm:$0xff] %v4582
        %4733 = vst [vmem:[%s390 + $0x248] sm:$0xff] %v4583
        %4734 = vst [vmem:[%s390 + $0x250] sm:$0xff] %v4584
        %4735 = vst [vmem:[%s390 + $0x258] sm:$0xff] %v4585
        %4736 = vst [vmem:[%s390 + $0x260] sm:$0xff] %v4586
        %4737 = vst [vmem:[%s390 + $0x268] sm:$0xff] %v4587
        %4738 = vst [vmem:[%s390 + $0x270] sm:$0xff] %v4588
        %4739 = vst [vmem:[%s390 + $0x278] sm:$0xff] %v4589
        %4740 = vst [vmem:[%s390 + $0x280] sm:$0xff] %v4590
        %4741 = vst [vmem:[%s390 + $0x288] sm:$0xff] %v4591
        %4742 = vst [vmem:[%s390 + $0x290] sm:$0xff] %v4592
        %4743 = vst [vmem:[%s390 + $0x298] sm:$0xff] %v4593
        %4744 = vst [vmem:[%s390 + $0x2a0] sm:$0xff] %v4594
        %4745 = vst [vmem:[%s390 + $0x2a8] sm:$0xff] %v4595
        %4746 = vst [vmem:[%s390 + $0x2b0] sm:$0xff] %v4596
        %4747 = vst [vmem:[%s390 + $0x2b8] sm:$0xff] %v4597
        %4748 = vst [vmem:[%s390 + $0x2c0] sm:$0xff] %v4598
        %4749 = vst [vmem:[%s390 + $0x2c8] sm:$0xff] %v4599
        %4750 = vst [vmem:[%s390 + $0x2d0] sm:$0xff] %v4600
        %4751 = vst [vmem:[%s390 + $0x2d8] sm:$0xff] %v4601
        %4752 = vst [vmem:[%s390 + $0x2e0] sm:$0xff] %v4602
        %4753 = vst [vmem:[%s390 + $0x2e8] sm:$0xff] %v4603
        %4754 = vst [vmem:[%s390 + $0x2f0] sm:$0xff] %v4604
        %4755 = vst [vmem:[%s390 + $0x2f8] sm:$0xff] %v4605
        %4756 = vst [vmem:[%s390 + $0x300] sm:$0xff] %v4606
        %4757 = vst [vmem:[%s390 + $0x308] sm:$0xff] %v4607
        %4758 = vst [vmem:[%s390 + $0x310] sm:$0xff] %v4608
        %4759 = vst [vmem:[%s390 + $0x318] sm:$0xff] %v4609
        %4760 = vst [vmem:[%s390 + $0x320] sm:$0xff] %v4610
        %4761 = vst [vmem:[%s390 + $0x328] sm:$0xff] %v4611
        %4762 = vst [vmem:[%s390 + $0x330] sm:$0xff] %v4612
        %4763 = vst [vmem:[%s390 + $0x338] sm:$0xff] %v4613
        %4764 = vst [vmem:[%s390 + $0x340] sm:$0xff] %v4614
        %4765 = vst [vmem:[%s390 + $0x348] sm:$0xff] %v4615
        %4766 = vst [vmem:[%s390 + $0x350] sm:$0xff] %v4616
        %4767 = vst [vmem:[%s390 + $0x358] sm:$0xff] %v4617
        %4768 = vst [vmem:[%s390 + $0x360] sm:$0xff] %v4618
        %4769 = vst [vmem:[%s390 + $0x368] sm:$0xff] %v4619
        %4770 = vst [vmem:[%s390 + $0x370] sm:$0xff] %v4620
        %4771 = vst [vmem:[%s390 + $0x378] sm:$0xff] %v4621
        %4772 = vst [vmem:[%s390 + $0x380] sm:$0xff] %v4622
        %4773 = vst [vmem:[%s390 + $0x388] sm:$0xff] %v4623
        %4774 = vst [vmem:[%s390 + $0x390] sm:$0xff] %v4624
        %4775 = vst [vmem:[%s390 + $0x398] sm:$0xff] %v4625
        %4776 = vst [vmem:[%s390 + $0x3a0] sm:$0xff] %v4626
        %4777 = vst [vmem:[%s390 + $0x3a8] sm:$0xff] %v4627
        %4778 = vst [vmem:[%s390 + $0x3b0] sm:$0xff] %v4628
        %4779 = vst [vmem:[%s390 + $0x3b8] sm:$0xff] %v4629
        %4780 = vst [vmem:[%s390 + $0x3c0] sm:$0xff] %v4630
        %4781 = vst [vmem:[%s390 + $0x3c8] sm:$0xff] %v4631
        %4782 = vst [vmem:[%s390 + $0x3d0] sm:$0xff] %v4632
        %4783 = vst [vmem:[%s390 + $0x3d8] sm:$0xff] %v4633
        %4784 = vst [vmem:[%s390 + $0x3e0] sm:$0xff] %v4634
        %4785 = vst [vmem:[%s390 + $0x3e8] sm:$0xff] %v4635
        %4786 = vst [vmem:[%s390 + $0x3f0] sm:$0xff] %v4636
        %4787 = vst [vmem:[%s390 + $0x3f8] sm:$0xff] %v4637
        %4788 = vst [vmem:[%s390 + $0x400] sm:$0xff] %v4638
        %4789 = vst [vmem:[%s390 + $0x408] sm:$0xff] %v4639
        %4790 = vst [vmem:[%s390 + $0x410] sm:$0xff] %v4640
        %4791 = vst [vmem:[%s390 + $0x418] sm:$0xff] %v4641
        %4792 = vst [vmem:[%s390 + $0x420] sm:$0xff] %v4642
        %4793 = vst [vmem:[%s390 + $0x428] sm:$0xff] %v4643
        %4794 = vst [vmem:[%s390 + $0x430] sm:$0xff] %v4644
        %4795 = vst [vmem:[%s390 + $0x438] sm:$0xff] %v4645
        %4796 = vst [vmem:[%s390 + $0x440] sm:$0xff] %v4646
        %4797 = vst [vmem:[%s390 + $0x448] sm:$0xff] %v4647
        %4798 = vst [vmem:[%s390 + $0x450] sm:$0xff] %v4648
        %4799 = vst [vmem:[%s390 + $0x458] sm:$0xff] %v4649
        %4800 = vst [vmem:[%s390 + $0x460] sm:$0xff] %v4650
        %4801 = vst [vmem:[%s390 + $0x468] sm:$0xff] %v4651
        %4802 = vst [vmem:[%s390 + $0x470] sm:$0xff] %v4652
        %4803 = vst [vmem:[%s390 + $0x478] sm:$0xff] %v4653
        %4804 = vst [vmem:[%s390 + $0x480] sm:$0xff] %v4654
        %4805 = vst [vmem:[%s390 + $0x488] sm:$0xff] %v4655
        %4806 = vst [vmem:[%s390 + $0x490] sm:$0xff] %v4656
        %4807 = vst [vmem:[%s390 + $0x498] sm:$0xff] %v4657
        %4808 = vst [vmem:[%s390 + $0x4a0] sm:$0xff] %v4658
        %4809 = vst [vmem:[%s390 + $0x4a8] sm:$0xff] %v4659
        %s4810 = sand.u32 %s187, 1
        %s4811 = scalar_lea.sflag [#allocation4], %s4810
        %s4812 = sand.u32 %s187, 1
        %s4813 = smul.addr %s4812, 1200
        %s4814 = scalar_lea.vmem [#allocation14], %s4813
        // Predicated region
        $region77: #{tpu_custom_call.1} parent=47 // pred_check
          %p4815 = pneg %p197
        $region78: #{tpu_custom_call.1} parent=47 // pred_check_branch
          %4817 = sbr.rel (%p4815) target = $region80
        $region79: #{tpu_custom_call.1} parent=47 // pred_region
          %s4818 = smul.u32 25, %s27
          %4820 = vsyncadd %s4811, 0
          %s4821 = smul.addr %s4818, 6
          %s4822 = smul.addr %s4821, 8
          %s4823 = scalar_lea.hbm %s7, %s4822
          %s4824 = sshll.u32 %s4814, 4
          %s4825 = int_to_ptr.vmem [resolvable:$true] %s4824
          %s4826 = sshll.u32 %s4823, 4
          %s4827 = int_to_ptr.hbm [resolvable:$true] %s4826
          %4832 = dma.vmem_to_hbm [thread:$0]  %s4825, 19200, %s4827, %s4811, 768, 768, 48
        $region80: #{tpu_custom_call.1} parent=47 // pred_fallthru
          _
      $region48: #{tpu_custom_call.1} parent=5 // pred_fallthru
        _
      %p4833 = scmp.le.s32.totalorder 2, %s22
      // Predicated region
      $region81: #{tpu_custom_call.1} parent=5 // pred_check
        %p4834 = pneg %p4833
      $region82: #{tpu_custom_call.1} parent=5 // pred_check_branch
        %4836 = sbr.rel (%p4834) target = $region84
      $region83: #{tpu_custom_call.1} parent=5 // pred_region
        %s4837 = ssub.s32 %s22, 2
        // Predicated region
        $region85: #{tpu_custom_call.1} parent=83 // pred_check
          %p4838 = pneg %p203
        $region86: #{tpu_custom_call.1} parent=83 // pred_check_branch
          %4840 = sbr.rel (%p4838) target = $region88
        $region87: #{tpu_custom_call.1} parent=83 // pred_region
          %s4841 = sand.u32 %s188, 1
          %s4842 = scalar_lea.sflag [#allocation4], %s4841
          %s4843 = sand.u32 %s188, 1
          %s4844 = smul.addr %s4843, 1200
          %s4845 = scalar_lea.vmem [#allocation14], %s4844
          %4847 = dma.done %s4842, 19200
        $region88: #{tpu_custom_call.1} parent=83 // pred_fallthru
          _
      $region84: #{tpu_custom_call.1} parent=5 // pred_fallthru
        _
    $region6: #{tpu_custom_call.1} parent=1 // loop_footer
      %s26 = sadd.s32 1, %s22
    $region7: #{tpu_custom_call.1} parent=1 // loop_footer_branch
      %21 = sbr.rel target = $region3
    $region8: #{tpu_custom_call.1} parent=1 // loop_exit
      _
    %4848 = vsyncpa [#allocation3], 1
    %s4849 = scalar_lea.sflag [#allocation3], 1
    %4850 = vsyncpa %s4849, 1
    %4851 = vsyncpa [#allocation6], 1
    %4852 = vsyncpa [#allocation9], 1
    %4853 = vsyncpa [#allocation12], 1
    %4854 = vsyncpa [#allocation4], 1
    %s4855 = scalar_lea.sflag [#allocation4], 1
    %4856 = vsyncpa %s4855, 1

</llo_original>
